<compile_context>
chip_gen: v5e
topology: v5e:2x2
jax: 0.10.0
libtpu: 0.0.40
codegen_flags: <defaults>
</compile_context>

<pallas_src>
import jax
import jax.numpy as jnp
import numpy as np
from jax.experimental import pallas as pl
from jax.experimental.pallas import tpu as pltpu

# Synthetic FloodConfig values (small shapes)
STATE_DIM = 12
ACTION_DIM = 4
HIDDEN_DIM = 32
GRU_LAYERS = 2
SEQ_LEN = 8
BATCH = 2

# Padded / packed-layout constants
SPAD = 16                  # state features padded to a sublane multiple
APAD = 8                   # action features padded
HP = 128                   # one full lane group per GRU gate
GW = 3 * HP                # 384 lanes: [ r | z | n ] blocks
H = HIDDEN_DIM
HH = HIDDEN_DIM // 2       # attention hidden width

# --- packed buffer A: GRU gate weights/biases, width GW (row offsets, 8-aligned) ---
R_WIH0 = 0                        # (SPAD, GW)   layer-0 input->gates
R_WHH0 = R_WIH0 + SPAD            # (HP, GW)     layer-0 recurrent
R_W1CAT = R_WHH0 + HP             # (2*HP, GW)   [wih1 (r,z,0) ; whh1 (r,z,n)]
R_BIAS = R_W1CAT + 2 * HP
R_B_IH0 = R_BIAS + 0
R_B_HH0 = R_BIAS + 1
R_B_1 = R_BIAS + 2                # layer-1 fused bias (r,z summed; n = b_hn only)
R_B_IH1N = R_BIAS + 3             # layer-1 n-gate input bias (lanes 0:HP)
RA = R_BIAS + 8                   # 408 rows

# --- packed buffer B: layer-1 n-gate input weights + attention + Q heads, width HP ---
R_WIH1N = 0                       # (HP, HP)
R_WA1 = R_WIH1N + HP              # (HP, HH)
R_WA2 = R_WA1 + HP                # (HH, 1)
R_QW1C = R_WA2 + 16               # (HP, 2H)  context part of fused twin Q layer 1
R_QW1A = R_QW1C + HP              # (APAD, 2H) action part
R_QW2 = R_QW1A + APAD             # (2H, 2H)  block-diagonal twin layer 2
R_QW3 = R_QW2 + 2 * H             # (2H, 2)   stacked twin heads -> [q1 | q2]
R_HB = R_QW3 + 2 * H
R_B_A1 = R_HB + 0
R_B_A2 = R_HB + 1
R_B_Q1 = R_HB + 2
R_B_Q2 = R_HB + 3
R_B_Q3 = R_HB + 4
RB = R_HB + 8                     # 544 rows


def flood_gru_critic_kernel(x_ref, act_ref, wa_ref, wb_ref, qq_ref, hid_ref, outs_ref):
    f32 = jnp.float32
    B, T, H2P = BATCH, SEQ_LEN, 2 * HP

    # ---- batched layer-0 input projection (all timesteps at once, off the chain) ----
    gi0_all = (jnp.dot(x_ref[...], wa_ref[R_WIH0:R_WIH0 + SPAD, :],
                       preferred_element_type=f32)
               + wa_ref[R_B_IH0:R_B_IH0 + 1, :])                          # (T*B, 384)

    # Small per-step biases: broadcast once (JAX does not CSE broadcast_in_dim).
    bhh0 = jnp.broadcast_to(wa_ref[R_B_HH0:R_B_HH0 + 1, :], (B, GW))
    b1 = jnp.broadcast_to(wa_ref[R_B_1:R_B_1 + 1, :], (B, GW))
    bi1n = jnp.broadcast_to(wa_ref[R_B_IH1N:R_B_IH1N + 1, 0:HP], (B, HP))

    h0 = jnp.zeros((B, HP), f32)
    h1 = jnp.zeros((B, HP), f32)

    # Fused two-layer GRU recurrence, fully unrolled (T is static).  Large weight
    # slabs are loaded at their point of use so they need not stay live in vregs.
    for t in range(T):
        # ---- layer 0: only the recurrent dot sits on the serial chain ----
        gi0 = gi0_all[t * B:(t + 1) * B, :]
        gh0 = jnp.dot(h0, wa_ref[R_WHH0:R_WHH0 + HP, :],
                      preferred_element_type=f32) + bhh0
        rz0 = jax.nn.sigmoid(gi0[:, :H2P] + gh0[:, :H2P])
        n0 = jnp.tanh(gi0[:, H2P:] + rz0[:, :HP] * gh0[:, H2P:])
        h0 = (1.0 - rz0[:, HP:]) * n0 + rz0[:, HP:] * h0

        # ---- layer 1: one fused [h0_t | h1_prev] dot on the chain; the n-gate
        #      input projection depends only on h0_t (off the h1 chain) ----
        gi1n = jnp.dot(h0, wb_ref[R_WIH1N:R_WIH1N + HP, :],
                       preferred_element_type=f32) + bi1n                 # (B, HP)
        s1 = jnp.dot(jnp.concatenate([h0, h1], axis=1),
                     wa_ref[R_W1CAT:R_W1CAT + 2 * HP, :],
                     preferred_element_type=f32) + b1                     # (B, 384)
        rz1 = jax.nn.sigmoid(s1[:, :H2P])
        n1 = jnp.tanh(gi1n + rz1[:, :HP] * s1[:, H2P:])
        h1 = (1.0 - rz1[:, HP:]) * n1 + rz1[:, HP:] * h1
        outs_ref[t * B:(t + 1) * B, :] = h1                               # spill to VMEM

    hid_ref[0, :, :] = h0[:, :H]
    hid_ref[1, :, :] = h1[:, :H]

    # ---- attention MLP: 2 batched matmuls over all timesteps (after the loop) ----
    out_all = outs_ref[...]                                               # (T*B, 128)
    a_h = jnp.maximum(jnp.dot(out_all, wb_ref[R_WA1:R_WA1 + HP, 0:HH],
                              preferred_element_type=f32)
                      + wb_ref[R_B_A1:R_B_A1 + 1, 0:HH], 0.0)             # (T*B, HH)
    sc = (jnp.dot(a_h, wb_ref[R_WA2:R_WA2 + HH, 0:1],
                  preferred_element_type=f32)
          + wb_ref[R_B_A2:R_B_A2 + 1, 0:1])                               # (T*B, 1)

    # ---- softmax over timesteps per batch row + weighted context ----
    m = sc[0:B, :]
    for t in range(1, T):
        m = jnp.maximum(m, sc[t * B:(t + 1) * B, :])
    den = jnp.zeros((B, 1), f32)
    num = jnp.zeros((B, HP), f32)
    for t in range(T):
        e_t = jnp.exp(sc[t * B:(t + 1) * B, :] - m)
        den = den + e_t
        num = num + e_t * outs_ref[t * B:(t + 1) * B, :]
    context = num / den                                                   # exact normalization

    # ---- fused twin Q heads (stacked / block-diagonal along the lane axis) ----
    act = act_ref[...]
    h1q = jnp.maximum(
        jnp.dot(context, wb_ref[R_QW1C:R_QW1C + HP, 0:2 * H], preferred_element_type=f32)
        + jnp.dot(act, wb_ref[R_QW1A:R_QW1A + APAD, 0:2 * H], preferred_element_type=f32)
        + wb_ref[R_B_Q1:R_B_Q1 + 1, 0:2 * H], 0.0)                        # (B, 2H)
    h2q = jnp.maximum(
        jnp.dot(h1q, wb_ref[R_QW2:R_QW2 + 2 * H, 0:2 * H], preferred_element_type=f32)
        + wb_ref[R_B_Q2:R_B_Q2 + 1, 0:2 * H], 0.0)                        # (B, 2H)
    qq_ref[...] = (jnp.dot(h2q, wb_ref[R_QW3:R_QW3 + 2 * H, 0:2], preferred_element_type=f32)
                   + wb_ref[R_B_Q3:R_B_Q3 + 1, 0:2])                      # (B, 2) = [q1|q2]


# ---------------------------------------------------------------------------
# Host-side weight packing.  Runs ONCE at parameter-init time, never per call.
# ---------------------------------------------------------------------------
def pack_params(p):
    def w_gates(w, rows):
        w = np.asarray(w, np.float32)
        out = np.zeros((rows, GW), np.float32)
        inn = w.shape[1]
        for g in range(3):                      # PyTorch gate order: r, z, n
            out[:inn, g * HP:g * HP + H] = w[g * H:(g + 1) * H, :].T
        return out

    def b_gates(b):
        b = np.asarray(b, np.float32)
        out = np.zeros((GW,), np.float32)
        for g in range(3):
            out[g * HP:g * HP + H] = b[g * H:(g + 1) * H]
        return out

    wa = np.zeros((RA, GW), np.float32)
    wa[R_WIH0:R_WIH0 + SPAD] = w_gates(p['w_ih0'], SPAD)
    wa[R_WHH0:R_WHH0 + HP] = w_gates(p['w_hh0'], HP)
    top = w_gates(p['w_ih1'], HP)
    top[:, 2 * HP:] = 0.0                       # n-gate input proj handled separately
    wa[R_W1CAT:R_W1CAT + HP] = top
    wa[R_W1CAT + HP:R_W1CAT + 2 * HP] = w_gates(p['w_hh1'], HP)
    wa[R_B_IH0] = b_gates(p['b_ih0'])
    wa[R_B_HH0] = b_gates(p['b_hh0'])
    b1 = b_gates(p['b_ih1']) + b_gates(p['b_hh1'])
    b1[2 * HP:] = b_gates(p['b_hh1'])[2 * HP:]  # n block: recurrent bias only
    wa[R_B_1] = b1
    wa[R_B_IH1N, :H] = np.asarray(p['b_ih1'], np.float32)[2 * H:3 * H]

    wb = np.zeros((RB, HP), np.float32)
    wb[R_WIH1N:R_WIH1N + H, :H] = np.asarray(p['w_ih1'], np.float32)[2 * H:3 * H, :].T
    wb[R_WA1:R_WA1 + H, :HH] = np.asarray(p['wa1'], np.float32).T
    wb[R_WA2:R_WA2 + HH, :1] = np.asarray(p['wa2'], np.float32).T
    q1w1 = np.asarray(p['q1w1'], np.float32)
    q2w1 = np.asarray(p['q2w1'], np.float32)
    wb[R_QW1C:R_QW1C + H, :H] = q1w1[:, :H].T
    wb[R_QW1C:R_QW1C + H, H:2 * H] = q2w1[:, :H].T
    wb[R_QW1A:R_QW1A + ACTION_DIM, :H] = q1w1[:, H:].T
    wb[R_QW1A:R_QW1A + ACTION_DIM, H:2 * H] = q2w1[:, H:].T
    wb[R_QW2:R_QW2 + H, :H] = np.asarray(p['q1w2'], np.float32).T
    wb[R_QW2 + H:R_QW2 + 2 * H, H:2 * H] = np.asarray(p['q2w2'], np.float32).T
    wb[R_QW3:R_QW3 + H, 0:1] = np.asarray(p['q1w3'], np.float32).T
    wb[R_QW3 + H:R_QW3 + 2 * H, 1:2] = np.asarray(p['q2w3'], np.float32).T
    wb[R_B_A1, :HH] = np.asarray(p['ba1'], np.float32)
    wb[R_B_A2, :1] = np.asarray(p['ba2'], np.float32)
    wb[R_B_Q1, :H] = np.asarray(p['q1b1'], np.float32)
    wb[R_B_Q1, H:2 * H] = np.asarray(p['q2b1'], np.float32)
    wb[R_B_Q2, :H] = np.asarray(p['q1b2'], np.float32)
    wb[R_B_Q2, H:2 * H] = np.asarray(p['q2b2'], np.float32)
    wb[R_B_Q3, 0:1] = np.asarray(p['q1b3'], np.float32)
    wb[R_B_Q3, 1:2] = np.asarray(p['q2b3'], np.float32)
    return jnp.asarray(wa), jnp.asarray(wb)


@jax.jit
def flood_gru_critic(state, action, wa_packed, wb_packed):
    """state: (B, T, STATE_DIM) batch-first; action: (B, ACTION_DIM)."""
    B, T, S = state.shape
    x = jnp.transpose(state, (1, 0, 2)).reshape(T * B, S).astype(jnp.float32)
    x = jnp.pad(x, ((0, 0), (0, SPAD - S)))                               # (T*B, SPAD)
    a = jnp.pad(action.astype(jnp.float32), ((0, 0), (0, APAD - ACTION_DIM)))

    vmem = pl.BlockSpec(memory_space=pltpu.MemorySpace.VMEM)
    qq, hid = pl.pallas_call(
        flood_gru_critic_kernel,
        out_shape=(jax.ShapeDtypeStruct((B, 2), jnp.float32),             # [q1 | q2]
                   jax.ShapeDtypeStruct((GRU_LAYERS, B, HIDDEN_DIM), jnp.float32)),
        in_specs=[vmem, vmem, vmem, vmem],
        out_specs=(vmem, vmem),
        scratch_shapes=[pltpu.VMEM((SEQ_LEN * BATCH, HP), jnp.float32)],  # per-step h1
        compiler_params=pltpu.CompilerParams(),
        cost_estimate=pl.CostEstimate(flops=5_600_000, transcendentals=16_000,
                                      bytes_accessed=910_000),
    )(x, a, wa_packed, wb_packed)
    return qq[:, 0:1], qq[:, 1:2], hid


# ---------------------------------------------------------------------------
# Pure-JAX reference (mirrors the PyTorch forward) for a correctness check.
# ---------------------------------------------------------------------------
def reference(state, action, p):
    B, T, S = state.shape

    def gru_layer(x_seq, w_ih, w_hh, b_ih, b_hh):
        def step(h, x):
            gi = x @ w_ih.T + b_ih
            gh = h @ w_hh.T + b_hh
            i_r, i_z, i_n = jnp.split(gi, 3, axis=-1)
            h_r, h_z, h_n = jnp.split(gh, 3, axis=-1)
            r = jax.nn.sigmoid(i_r + h_r)
            z = jax.nn.sigmoid(i_z + h_z)
            n = jnp.tanh(i_n + r * h_n)
            h_new = (1.0 - z) * n + z * h
            return h_new, h_new
        h0 = jnp.zeros((B, HIDDEN_DIM), jnp.float32)
        h_f, outs = jax.lax.scan(step, h0, jnp.transpose(x_seq, (1, 0, 2)))
        return jnp.transpose(outs, (1, 0, 2)), h_f

    out0, h0f = gru_layer(state, p['w_ih0'], p['w_hh0'], p['b_ih0'], p['b_hh0'])
    out1, h1f = gru_layer(out0, p['w_ih1'], p['w_hh1'], p['b_ih1'], p['b_hh1'])

    attn_h = jax.nn.relu(out1 @ p['wa1'].T + p['ba1'])
    scores = (attn_h @ p['wa2'].T + p['ba2'])[..., 0]        # (B, T)
    attn = jax.nn.softmax(scores, axis=1)
    context = jnp.einsum('bt,bth->bh', attn, out1)
    combined = jnp.concatenate([context, action], axis=1)

    def mlp(x, w1, b1, w2, b2, w3, b3):
        x = jax.nn.relu(x @ w1.T + b1)
        x = jax.nn.relu(x @ w2.T + b2)
        return x @ w3.T + b3

    q1 = mlp(combined, p['q1w1'], p['q1b1'], p['q1w2'], p['q1b2'], p['q1w3'], p['q1b3'])
    q2 = mlp(combined, p['q2w1'], p['q2b1'], p['q2w2'], p['q2b2'], p['q2w3'], p['q2b3'])
    return q1, q2, jnp.stack([h0f, h1f], axis=0)


def init_params(key):
    Hd, S, A = HIDDEN_DIM, STATE_DIM, ACTION_DIM
    Hh = Hd // 2
    C = Hd + A
    specs = {
        'w_ih0': ((3 * Hd, S), Hd), 'w_hh0': ((3 * Hd, Hd), Hd),
        'b_ih0': ((3 * Hd,), Hd),   'b_hh0': ((3 * Hd,), Hd),
        'w_ih1': ((3 * Hd, Hd), Hd), 'w_hh1': ((3 * Hd, Hd), Hd),
        'b_ih1': ((3 * Hd,), Hd),   'b_hh1': ((3 * Hd,), Hd),
        'wa1': ((Hh, Hd), Hd), 'ba1': ((Hh,), Hd),
        'wa2': ((1, Hh), Hh), 'ba2': ((1,), Hh),
        'q1w1': ((Hd, C), C), 'q1b1': ((Hd,), C),
        'q1w2': ((Hd, Hd), Hd), 'q1b2': ((Hd,), Hd),
        'q1w3': ((1, Hd), Hd), 'q1b3': ((1,), Hd),
        'q2w1': ((Hd, C), C), 'q2b1': ((Hd,), C),
        'q2w2': ((Hd, Hd), Hd), 'q2b2': ((Hd,), Hd),
        'q2w3': ((1, Hd), Hd), 'q2b3': ((1,), Hd),
    }
    keys = jax.random.split(key, len(specs))
    params = {}
    for k, (name, (shape, fan)) in zip(keys, specs.items()):
        bound = 1.0 / np.sqrt(fan)
        params[name] = jax.random.uniform(k, shape, jnp.float32, -bound, bound)
    return params


if __name__ == "__main__":
    key = jax.random.PRNGKey(0)
    k_state, k_action, k_params = jax.random.split(key, 3)

    state = jax.random.normal(k_state, (BATCH, SEQ_LEN, STATE_DIM), jnp.float32)
    action = jax.random.normal(k_action, (BATCH, ACTION_DIM), jnp.float32)
    params = init_params(k_params)

    # Weights packed ONCE (init time) -> two lane-aligned buffers, 2 weight DMAs per call.
    wa_packed, wb_packed = pack_params(params)

    q1, q2, new_hidden = jax.block_until_ready(
        flood_gru_critic(state, action, wa_packed, wb_packed))

    q1_ref, q2_ref, hid_ref = jax.block_until_ready(reference(state, action, params))
    np.testing.assert_allclose(np.asarray(q1), np.asarray(q1_ref), atol=1e-3, rtol=1e-3)
    np.testing.assert_allclose(np.asarray(q2), np.asarray(q2_ref), atol=1e-3, rtol=1e-3)
    np.testing.assert_allclose(np.asarray(new_hidden), np.asarray(hid_ref), atol=1e-3, rtol=1e-3)

    print("KERNEL_OK")
</pallas_src>

<mosaic_0001>
module attributes {stable_mosaic.version = 11 : i64} {
  func.func @flood_gru_critic_kernel(%arg0: memref<16x16xf32, #tpu.memory_space<vmem>>, %arg1: memref<2x8xf32, #tpu.memory_space<vmem>>, %arg2: memref<408x384xf32, #tpu.memory_space<vmem>>, %arg3: memref<544x128xf32, #tpu.memory_space<vmem>>, %arg4: memref<2x2xf32, #tpu.memory_space<vmem>>, %arg5: memref<2x2x32xf32, #tpu.memory_space<vmem>>, %arg6: memref<16x128xf32, #tpu.memory_space<vmem>>) attributes {dimension_semantics = [], scalar_prefetch = 0 : i64, scratch_operands = 1 : i64, tpu.core_type = #tpu.core_type<tc>} {
    %c0 = arith.constant 0 : index
    %c0_0 = arith.constant 0 : index
    %0 = vector.load %arg0[%c0, %c0_0] : memref<16x16xf32, #tpu.memory_space<vmem>>, vector<16x16xf32>
    %c0_1 = arith.constant 0 : index
    %c0_2 = arith.constant 0 : index
    %1 = vector.load %arg2[%c0_1, %c0_2] : memref<408x384xf32, #tpu.memory_space<vmem>>, vector<16x384xf32>
    %cst = arith.constant dense<0.000000e+00> : vector<16x384xf32>
    %2 = tpu.matmul %0, %1, %cst {dimension_numbers = #tpu.dot_dimension_numbers<[1], [0], [0], [1], [0, 0, 1, 1], [], []>} : vector<16x16xf32>, vector<16x384xf32>, vector<16x384xf32> -> vector<16x384xf32>
    %c400 = arith.constant 400 : index
    %c0_3 = arith.constant 0 : index
    %3 = vector.load %arg2[%c400, %c0_3] : memref<408x384xf32, #tpu.memory_space<vmem>>, vector<1x384xf32>
    %4 = vector.broadcast %3 : vector<1x384xf32> to vector<16x384xf32>
    %5 = arith.addf %2, %4 : vector<16x384xf32>
    %c401 = arith.constant 401 : index
    %c0_4 = arith.constant 0 : index
    %6 = vector.load %arg2[%c401, %c0_4] : memref<408x384xf32, #tpu.memory_space<vmem>>, vector<1x384xf32>
    %7 = vector.shape_cast %6 : vector<1x384xf32> to vector<1x384xf32>
    %8 = vector.broadcast %7 : vector<1x384xf32> to vector<2x384xf32>
    %c402 = arith.constant 402 : index
    %c0_5 = arith.constant 0 : index
    %9 = vector.load %arg2[%c402, %c0_5] : memref<408x384xf32, #tpu.memory_space<vmem>>, vector<1x384xf32>
    %10 = vector.shape_cast %9 : vector<1x384xf32> to vector<1x384xf32>
    %11 = vector.broadcast %10 : vector<1x384xf32> to vector<2x384xf32>
    %c403 = arith.constant 403 : index
    %c0_6 = arith.constant 0 : index
    %12 = vector.load %arg2[%c403, %c0_6] : memref<408x384xf32, #tpu.memory_space<vmem>>, vector<1x128xf32>
    %13 = vector.shape_cast %12 : vector<1x128xf32> to vector<1x128xf32>
    %14 = vector.broadcast %13 : vector<1x128xf32> to vector<2x128xf32>
    %cst_7 = arith.constant 0.000000e+00 : f32
    %15 = vector.broadcast %cst_7 : f32 to vector<2x128xf32>
    %cst_8 = arith.constant 0.000000e+00 : f32
    %16 = vector.broadcast %cst_8 : f32 to vector<2x128xf32>
    %17 = vector.extract_strided_slice %5 {offsets = [0, 0], sizes = [2, 384], strides = [1, 1]} : vector<16x384xf32> to vector<2x384xf32>
    %c16 = arith.constant 16 : index
    %c0_9 = arith.constant 0 : index
    %18 = vector.load %arg2[%c16, %c0_9] : memref<408x384xf32, #tpu.memory_space<vmem>>, vector<128x384xf32>
    %cst_10 = arith.constant dense<0.000000e+00> : vector<2x384xf32>
    %19 = tpu.matmul %15, %18, %cst_10 {dimension_numbers = #tpu.dot_dimension_numbers<[1], [0], [0], [1], [0, 0, 1, 1], [], []>} : vector<2x128xf32>, vector<128x384xf32>, vector<2x384xf32> -> vector<2x384xf32>
    %20 = arith.addf %19, %8 : vector<2x384xf32>
    %21 = vector.extract_strided_slice %17 {offsets = [0, 0], sizes = [2, 256], strides = [1, 1]} : vector<2x384xf32> to vector<2x256xf32>
    %22 = vector.extract_strided_slice %20 {offsets = [0, 0], sizes = [2, 256], strides = [1, 1]} : vector<2x384xf32> to vector<2x256xf32>
    %23 = arith.addf %21, %22 : vector<2x256xf32>
    %24 = arith.negf %23 : vector<2x256xf32>
    %25 = math.exp %24 : vector<2x256xf32>
    %cst_11 = arith.constant 1.000000e+00 : f32
    %26 = vector.broadcast %cst_11 : f32 to vector<2x256xf32>
    %27 = arith.addf %26, %25 : vector<2x256xf32>
    %28 = arith.divf %26, %27 : vector<2x256xf32>
    %29 = vector.extract_strided_slice %17 {offsets = [0, 256], sizes = [2, 128], strides = [1, 1]} : vector<2x384xf32> to vector<2x128xf32>
    %30 = vector.extract_strided_slice %28 {offsets = [0, 0], sizes = [2, 128], strides = [1, 1]} : vector<2x256xf32> to vector<2x128xf32>
    %31 = vector.extract_strided_slice %20 {offsets = [0, 256], sizes = [2, 128], strides = [1, 1]} : vector<2x384xf32> to vector<2x128xf32>
    %32 = arith.mulf %30, %31 : vector<2x128xf32>
    %33 = arith.addf %29, %32 : vector<2x128xf32>
    %34 = math.tanh %33 : vector<2x128xf32>
    %35 = vector.extract_strided_slice %28 {offsets = [0, 128], sizes = [2, 128], strides = [1, 1]} : vector<2x256xf32> to vector<2x128xf32>
    %cst_12 = arith.constant 1.000000e+00 : f32
    %36 = vector.broadcast %cst_12 : f32 to vector<2x128xf32>
    %37 = arith.subf %36, %35 : vector<2x128xf32>
    %38 = arith.mulf %37, %34 : vector<2x128xf32>
    %39 = vector.extract_strided_slice %28 {offsets = [0, 128], sizes = [2, 128], strides = [1, 1]} : vector<2x256xf32> to vector<2x128xf32>
    %40 = arith.mulf %39, %15 : vector<2x128xf32>
    %41 = arith.addf %38, %40 : vector<2x128xf32>
    %c0_13 = arith.constant 0 : index
    %c0_14 = arith.constant 0 : index
    %42 = vector.load %arg3[%c0_13, %c0_14] : memref<544x128xf32, #tpu.memory_space<vmem>>, vector<128x128xf32>
    %cst_15 = arith.constant dense<0.000000e+00> : vector<2x128xf32>
    %43 = tpu.matmul %41, %42, %cst_15 {dimension_numbers = #tpu.dot_dimension_numbers<[1], [0], [0], [1], [0, 0, 1, 1], [], []>} : vector<2x128xf32>, vector<128x128xf32>, vector<2x128xf32> -> vector<2x128xf32>
    %44 = arith.addf %43, %14 : vector<2x128xf32>
    %45 = tpu.concatenate %41, %16 in 1 : vector<2x128xf32>, vector<2x128xf32> -> vector<2x256xf32>
    %c144 = arith.constant 144 : index
    %c0_16 = arith.constant 0 : index
    %46 = vector.load %arg2[%c144, %c0_16] : memref<408x384xf32, #tpu.memory_space<vmem>>, vector<256x384xf32>
    %cst_17 = arith.constant dense<0.000000e+00> : vector<2x384xf32>
    %47 = tpu.matmul %45, %46, %cst_17 {dimension_numbers = #tpu.dot_dimension_numbers<[1], [0], [0], [1], [0, 0, 1, 1], [], []>} : vector<2x256xf32>, vector<256x384xf32>, vector<2x384xf32> -> vector<2x384xf32>
    %48 = arith.addf %47, %11 : vector<2x384xf32>
    %49 = vector.extract_strided_slice %48 {offsets = [0, 0], sizes = [2, 256], strides = [1, 1]} : vector<2x384xf32> to vector<2x256xf32>
    %50 = arith.negf %49 : vector<2x256xf32>
    %51 = math.exp %50 : vector<2x256xf32>
    %cst_18 = arith.constant 1.000000e+00 : f32
    %52 = vector.broadcast %cst_18 : f32 to vector<2x256xf32>
    %53 = arith.addf %52, %51 : vector<2x256xf32>
    %54 = arith.divf %52, %53 : vector<2x256xf32>
    %55 = vector.extract_strided_slice %54 {offsets = [0, 0], sizes = [2, 128], strides = [1, 1]} : vector<2x256xf32> to vector<2x128xf32>
    %56 = vector.extract_strided_slice %48 {offsets = [0, 256], sizes = [2, 128], strides = [1, 1]} : vector<2x384xf32> to vector<2x128xf32>
    %57 = arith.mulf %55, %56 : vector<2x128xf32>
    %58 = arith.addf %44, %57 : vector<2x128xf32>
    %59 = math.tanh %58 : vector<2x128xf32>
    %60 = vector.extract_strided_slice %54 {offsets = [0, 128], sizes = [2, 128], strides = [1, 1]} : vector<2x256xf32> to vector<2x128xf32>
    %cst_19 = arith.constant 1.000000e+00 : f32
    %61 = vector.broadcast %cst_19 : f32 to vector<2x128xf32>
    %62 = arith.subf %61, %60 : vector<2x128xf32>
    %63 = arith.mulf %62, %59 : vector<2x128xf32>
    %64 = vector.extract_strided_slice %54 {offsets = [0, 128], sizes = [2, 128], strides = [1, 1]} : vector<2x256xf32> to vector<2x128xf32>
    %65 = arith.mulf %64, %16 : vector<2x128xf32>
    %66 = arith.addf %63, %65 : vector<2x128xf32>
    %c0_20 = arith.constant 0 : index
    %c0_21 = arith.constant 0 : index
    %67 = vector.load %arg6[%c0_20, %c0_21] : memref<16x128xf32, #tpu.memory_space<vmem>>, vector<2x128xf32>
    tpu.vector_store %arg6[%c0_20, %c0_21], %66 {strides = array<i32>} : memref<16x128xf32, #tpu.memory_space<vmem>>, vector<2x128xf32>,
    %68 = vector.extract_strided_slice %5 {offsets = [2, 0], sizes = [2, 384], strides = [1, 1]} : vector<16x384xf32> to vector<2x384xf32>
    %c16_22 = arith.constant 16 : index
    %c0_23 = arith.constant 0 : index
    %69 = vector.load %arg2[%c16_22, %c0_23] : memref<408x384xf32, #tpu.memory_space<vmem>>, vector<128x384xf32>
    %cst_24 = arith.constant dense<0.000000e+00> : vector<2x384xf32>
    %70 = tpu.matmul %41, %69, %cst_24 {dimension_numbers = #tpu.dot_dimension_numbers<[1], [0], [0], [1], [0, 0, 1, 1], [], []>} : vector<2x128xf32>, vector<128x384xf32>, vector<2x384xf32> -> vector<2x384xf32>
    %71 = arith.addf %70, %8 : vector<2x384xf32>
    %72 = vector.extract_strided_slice %68 {offsets = [0, 0], sizes = [2, 256], strides = [1, 1]} : vector<2x384xf32> to vector<2x256xf32>
    %73 = vector.extract_strided_slice %71 {offsets = [0, 0], sizes = [2, 256], strides = [1, 1]} : vector<2x384xf32> to vector<2x256xf32>
    %74 = arith.addf %72, %73 : vector<2x256xf32>
    %75 = arith.negf %74 : vector<2x256xf32>
    %76 = math.exp %75 : vector<2x256xf32>
    %cst_25 = arith.constant 1.000000e+00 : f32
    %77 = vector.broadcast %cst_25 : f32 to vector<2x256xf32>
    %78 = arith.addf %77, %76 : vector<2x256xf32>
    %79 = arith.divf %77, %78 : vector<2x256xf32>
    %80 = vector.extract_strided_slice %68 {offsets = [0, 256], sizes = [2, 128], strides = [1, 1]} : vector<2x384xf32> to vector<2x128xf32>
    %81 = vector.extract_strided_slice %79 {offsets = [0, 0], sizes = [2, 128], strides = [1, 1]} : vector<2x256xf32> to vector<2x128xf32>
    %82 = vector.extract_strided_slice %71 {offsets = [0, 256], sizes = [2, 128], strides = [1, 1]} : vector<2x384xf32> to vector<2x128xf32>
    %83 = arith.mulf %81, %82 : vector<2x128xf32>
    %84 = arith.addf %80, %83 : vector<2x128xf32>
    %85 = math.tanh %84 : vector<2x128xf32>
    %86 = vector.extract_strided_slice %79 {offsets = [0, 128], sizes = [2, 128], strides = [1, 1]} : vector<2x256xf32> to vector<2x128xf32>
    %cst_26 = arith.constant 1.000000e+00 : f32
    %87 = vector.broadcast %cst_26 : f32 to vector<2x128xf32>
    %88 = arith.subf %87, %86 : vector<2x128xf32>
    %89 = arith.mulf %88, %85 : vector<2x128xf32>
    %90 = vector.extract_strided_slice %79 {offsets = [0, 128], sizes = [2, 128], strides = [1, 1]} : vector<2x256xf32> to vector<2x128xf32>
    %91 = arith.mulf %90, %41 : vector<2x128xf32>
    %92 = arith.addf %89, %91 : vector<2x128xf32>
    %c0_27 = arith.constant 0 : index
    %c0_28 = arith.constant 0 : index
    %93 = vector.load %arg3[%c0_27, %c0_28] : memref<544x128xf32, #tpu.memory_space<vmem>>, vector<128x128xf32>
    %cst_29 = arith.constant dense<0.000000e+00> : vector<2x128xf32>
    %94 = tpu.matmul %92, %93, %cst_29 {dimension_numbers = #tpu.dot_dimension_numbers<[1], [0], [0], [1], [0, 0, 1, 1], [], []>} : vector<2x128xf32>, vector<128x128xf32>, vector<2x128xf32> -> vector<2x128xf32>
    %95 = arith.addf %94, %14 : vector<2x128xf32>
    %96 = tpu.concatenate %92, %66 in 1 : vector<2x128xf32>, vector<2x128xf32> -> vector<2x256xf32>
    %c144_30 = arith.constant 144 : index
    %c0_31 = arith.constant 0 : index
    %97 = vector.load %arg2[%c144_30, %c0_31] : memref<408x384xf32, #tpu.memory_space<vmem>>, vector<256x384xf32>
    %cst_32 = arith.constant dense<0.000000e+00> : vector<2x384xf32>
    %98 = tpu.matmul %96, %97, %cst_32 {dimension_numbers = #tpu.dot_dimension_numbers<[1], [0], [0], [1], [0, 0, 1, 1], [], []>} : vector<2x256xf32>, vector<256x384xf32>, vector<2x384xf32> -> vector<2x384xf32>
    %99 = arith.addf %98, %11 : vector<2x384xf32>
    %100 = vector.extract_strided_slice %99 {offsets = [0, 0], sizes = [2, 256], strides = [1, 1]} : vector<2x384xf32> to vector<2x256xf32>
    %101 = arith.negf %100 : vector<2x256xf32>
    %102 = math.exp %101 : vector<2x256xf32>
    %cst_33 = arith.constant 1.000000e+00 : f32
    %103 = vector.broadcast %cst_33 : f32 to vector<2x256xf32>
    %104 = arith.addf %103, %102 : vector<2x256xf32>
    %105 = arith.divf %103, %104 : vector<2x256xf32>
    %106 = vector.extract_strided_slice %105 {offsets = [0, 0], sizes = [2, 128], strides = [1, 1]} : vector<2x256xf32> to vector<2x128xf32>
    %107 = vector.extract_strided_slice %99 {offsets = [0, 256], sizes = [2, 128], strides = [1, 1]} : vector<2x384xf32> to vector<2x128xf32>
    %108 = arith.mulf %106, %107 : vector<2x128xf32>
    %109 = arith.addf %95, %108 : vector<2x128xf32>
    %110 = math.tanh %109 : vector<2x128xf32>
    %111 = vector.extract_strided_slice %105 {offsets = [0, 128], sizes = [2, 128], strides = [1, 1]} : vector<2x256xf32> to vector<2x128xf32>
    %cst_34 = arith.constant 1.000000e+00 : f32
    %112 = vector.broadcast %cst_34 : f32 to vector<2x128xf32>
    %113 = arith.subf %112, %111 : vector<2x128xf32>
    %114 = arith.mulf %113, %110 : vector<2x128xf32>
    %115 = vector.extract_strided_slice %105 {offsets = [0, 128], sizes = [2, 128], strides = [1, 1]} : vector<2x256xf32> to vector<2x128xf32>
    %116 = arith.mulf %115, %66 : vector<2x128xf32>
    %117 = arith.addf %114, %116 : vector<2x128xf32>
    %c2 = arith.constant 2 : index
    %c0_35 = arith.constant 0 : index
    %118 = vector.load %arg6[%c2, %c0_35] : memref<16x128xf32, #tpu.memory_space<vmem>>, vector<2x128xf32>
    tpu.vector_store %arg6[%c2, %c0_35], %117 {strides = array<i32>} : memref<16x128xf32, #tpu.memory_space<vmem>>, vector<2x128xf32>,
    %119 = vector.extract_strided_slice %5 {offsets = [4, 0], sizes = [2, 384], strides = [1, 1]} : vector<16x384xf32> to vector<2x384xf32>
    %c16_36 = arith.constant 16 : index
    %c0_37 = arith.constant 0 : index
    %120 = vector.load %arg2[%c16_36, %c0_37] : memref<408x384xf32, #tpu.memory_space<vmem>>, vector<128x384xf32>
    %cst_38 = arith.constant dense<0.000000e+00> : vector<2x384xf32>
    %121 = tpu.matmul %92, %120, %cst_38 {dimension_numbers = #tpu.dot_dimension_numbers<[1], [0], [0], [1], [0, 0, 1, 1], [], []>} : vector<2x128xf32>, vector<128x384xf32>, vector<2x384xf32> -> vector<2x384xf32>
    %122 = arith.addf %121, %8 : vector<2x384xf32>
    %123 = vector.extract_strided_slice %119 {offsets = [0, 0], sizes = [2, 256], strides = [1, 1]} : vector<2x384xf32> to vector<2x256xf32>
    %124 = vector.extract_strided_slice %122 {offsets = [0, 0], sizes = [2, 256], strides = [1, 1]} : vector<2x384xf32> to vector<2x256xf32>
    %125 = arith.addf %123, %124 : vector<2x256xf32>
    %126 = arith.negf %125 : vector<2x256xf32>
    %127 = math.exp %126 : vector<2x256xf32>
    %cst_39 = arith.constant 1.000000e+00 : f32
    %128 = vector.broadcast %cst_39 : f32 to vector<2x256xf32>
    %129 = arith.addf %128, %127 : vector<2x256xf32>
    %130 = arith.divf %128, %129 : vector<2x256xf32>
    %131 = vector.extract_strided_slice %119 {offsets = [0, 256], sizes = [2, 128], strides = [1, 1]} : vector<2x384xf32> to vector<2x128xf32>
    %132 = vector.extract_strided_slice %130 {offsets = [0, 0], sizes = [2, 128], strides = [1, 1]} : vector<2x256xf32> to vector<2x128xf32>
    %133 = vector.extract_strided_slice %122 {offsets = [0, 256], sizes = [2, 128], strides = [1, 1]} : vector<2x384xf32> to vector<2x128xf32>
    %134 = arith.mulf %132, %133 : vector<2x128xf32>
    %135 = arith.addf %131, %134 : vector<2x128xf32>
    %136 = math.tanh %135 : vector<2x128xf32>
    %137 = vector.extract_strided_slice %130 {offsets = [0, 128], sizes = [2, 128], strides = [1, 1]} : vector<2x256xf32> to vector<2x128xf32>
    %cst_40 = arith.constant 1.000000e+00 : f32
    %138 = vector.broadcast %cst_40 : f32 to vector<2x128xf32>
    %139 = arith.subf %138, %137 : vector<2x128xf32>
    %140 = arith.mulf %139, %136 : vector<2x128xf32>
    %141 = vector.extract_strided_slice %130 {offsets = [0, 128], sizes = [2, 128], strides = [1, 1]} : vector<2x256xf32> to vector<2x128xf32>
    %142 = arith.mulf %141, %92 : vector<2x128xf32>
    %143 = arith.addf %140, %142 : vector<2x128xf32>
    %c0_41 = arith.constant 0 : index
    %c0_42 = arith.constant 0 : index
    %144 = vector.load %arg3[%c0_41, %c0_42] : memref<544x128xf32, #tpu.memory_space<vmem>>, vector<128x128xf32>
    %cst_43 = arith.constant dense<0.000000e+00> : vector<2x128xf32>
    %145 = tpu.matmul %143, %144, %cst_43 {dimension_numbers = #tpu.dot_dimension_numbers<[1], [0], [0], [1], [0, 0, 1, 1], [], []>} : vector<2x128xf32>, vector<128x128xf32>, vector<2x128xf32> -> vector<2x128xf32>
    %146 = arith.addf %145, %14 : vector<2x128xf32>
    %147 = tpu.concatenate %143, %117 in 1 : vector<2x128xf32>, vector<2x128xf32> -> vector<2x256xf32>
    %c144_44 = arith.constant 144 : index
    %c0_45 = arith.constant 0 : index
    %148 = vector.load %arg2[%c144_44, %c0_45] : memref<408x384xf32, #tpu.memory_space<vmem>>, vector<256x384xf32>
    %cst_46 = arith.constant dense<0.000000e+00> : vector<2x384xf32>
    %149 = tpu.matmul %147, %148, %cst_46 {dimension_numbers = #tpu.dot_dimension_numbers<[1], [0], [0], [1], [0, 0, 1, 1], [], []>} : vector<2x256xf32>, vector<256x384xf32>, vector<2x384xf32> -> vector<2x384xf32>
    %150 = arith.addf %149, %11 : vector<2x384xf32>
    %151 = vector.extract_strided_slice %150 {offsets = [0, 0], sizes = [2, 256], strides = [1, 1]} : vector<2x384xf32> to vector<2x256xf32>
    %152 = arith.negf %151 : vector<2x256xf32>
    %153 = math.exp %152 : vector<2x256xf32>
    %cst_47 = arith.constant 1.000000e+00 : f32
    %154 = vector.broadcast %cst_47 : f32 to vector<2x256xf32>
    %155 = arith.addf %154, %153 : vector<2x256xf32>
    %156 = arith.divf %154, %155 : vector<2x256xf32>
    %157 = vector.extract_strided_slice %156 {offsets = [0, 0], sizes = [2, 128], strides = [1, 1]} : vector<2x256xf32> to vector<2x128xf32>
    %158 = vector.extract_strided_slice %150 {offsets = [0, 256], sizes = [2, 128], strides = [1, 1]} : vector<2x384xf32> to vector<2x128xf32>
    %159 = arith.mulf %157, %158 : vector<2x128xf32>
    %160 = arith.addf %146, %159 : vector<2x128xf32>
    %161 = math.tanh %160 : vector<2x128xf32>
    %162 = vector.extract_strided_slice %156 {offsets = [0, 128], sizes = [2, 128], strides = [1, 1]} : vector<2x256xf32> to vector<2x128xf32>
    %cst_48 = arith.constant 1.000000e+00 : f32
    %163 = vector.broadcast %cst_48 : f32 to vector<2x128xf32>
    %164 = arith.subf %163, %162 : vector<2x128xf32>
    %165 = arith.mulf %164, %161 : vector<2x128xf32>
    %166 = vector.extract_strided_slice %156 {offsets = [0, 128], sizes = [2, 128], strides = [1, 1]} : vector<2x256xf32> to vector<2x128xf32>
    %167 = arith.mulf %166, %117 : vector<2x128xf32>
    %168 = arith.addf %165, %167 : vector<2x128xf32>
    %c4 = arith.constant 4 : index
    %c0_49 = arith.constant 0 : index
    %169 = vector.load %arg6[%c4, %c0_49] : memref<16x128xf32, #tpu.memory_space<vmem>>, vector<2x128xf32>
    tpu.vector_store %arg6[%c4, %c0_49], %168 {strides = array<i32>} : memref<16x128xf32, #tpu.memory_space<vmem>>, vector<2x128xf32>,
    %170 = vector.extract_strided_slice %5 {offsets = [6, 0], sizes = [2, 384], strides = [1, 1]} : vector<16x384xf32> to vector<2x384xf32>
    %c16_50 = arith.constant 16 : index
    %c0_51 = arith.constant 0 : index
    %171 = vector.load %arg2[%c16_50, %c0_51] : memref<408x384xf32, #tpu.memory_space<vmem>>, vector<128x384xf32>
    %cst_52 = arith.constant dense<0.000000e+00> : vector<2x384xf32>
    %172 = tpu.matmul %143, %171, %cst_52 {dimension_numbers = #tpu.dot_dimension_numbers<[1], [0], [0], [1], [0, 0, 1, 1], [], []>} : vector<2x128xf32>, vector<128x384xf32>, vector<2x384xf32> -> vector<2x384xf32>
    %173 = arith.addf %172, %8 : vector<2x384xf32>
    %174 = vector.extract_strided_slice %170 {offsets = [0, 0], sizes = [2, 256], strides = [1, 1]} : vector<2x384xf32> to vector<2x256xf32>
    %175 = vector.extract_strided_slice %173 {offsets = [0, 0], sizes = [2, 256], strides = [1, 1]} : vector<2x384xf32> to vector<2x256xf32>
    %176 = arith.addf %174, %175 : vector<2x256xf32>
    %177 = arith.negf %176 : vector<2x256xf32>
    %178 = math.exp %177 : vector<2x256xf32>
    %cst_53 = arith.constant 1.000000e+00 : f32
    %179 = vector.broadcast %cst_53 : f32 to vector<2x256xf32>
    %180 = arith.addf %179, %178 : vector<2x256xf32>
    %181 = arith.divf %179, %180 : vector<2x256xf32>
    %182 = vector.extract_strided_slice %170 {offsets = [0, 256], sizes = [2, 128], strides = [1, 1]} : vector<2x384xf32> to vector<2x128xf32>
    %183 = vector.extract_strided_slice %181 {offsets = [0, 0], sizes = [2, 128], strides = [1, 1]} : vector<2x256xf32> to vector<2x128xf32>
    %184 = vector.extract_strided_slice %173 {offsets = [0, 256], sizes = [2, 128], strides = [1, 1]} : vector<2x384xf32> to vector<2x128xf32>
    %185 = arith.mulf %183, %184 : vector<2x128xf32>
    %186 = arith.addf %182, %185 : vector<2x128xf32>
    %187 = math.tanh %186 : vector<2x128xf32>
    %188 = vector.extract_strided_slice %181 {offsets = [0, 128], sizes = [2, 128], strides = [1, 1]} : vector<2x256xf32> to vector<2x128xf32>
    %cst_54 = arith.constant 1.000000e+00 : f32
    %189 = vector.broadcast %cst_54 : f32 to vector<2x128xf32>
    %190 = arith.subf %189, %188 : vector<2x128xf32>
    %191 = arith.mulf %190, %187 : vector<2x128xf32>
    %192 = vector.extract_strided_slice %181 {offsets = [0, 128], sizes = [2, 128], strides = [1, 1]} : vector<2x256xf32> to vector<2x128xf32>
    %193 = arith.mulf %192, %143 : vector<2x128xf32>
    %194 = arith.addf %191, %193 : vector<2x128xf32>
    %c0_55 = arith.constant 0 : index
    %c0_56 = arith.constant 0 : index
    %195 = vector.load %arg3[%c0_55, %c0_56] : memref<544x128xf32, #tpu.memory_space<vmem>>, vector<128x128xf32>
    %cst_57 = arith.constant dense<0.000000e+00> : vector<2x128xf32>
    %196 = tpu.matmul %194, %195, %cst_57 {dimension_numbers = #tpu.dot_dimension_numbers<[1], [0], [0], [1], [0, 0, 1, 1], [], []>} : vector<2x128xf32>, vector<128x128xf32>, vector<2x128xf32> -> vector<2x128xf32>
    %197 = arith.addf %196, %14 : vector<2x128xf32>
    %198 = tpu.concatenate %194, %168 in 1 : vector<2x128xf32>, vector<2x128xf32> -> vector<2x256xf32>
    %c144_58 = arith.constant 144 : index
    %c0_59 = arith.constant 0 : index
    %199 = vector.load %arg2[%c144_58, %c0_59] : memref<408x384xf32, #tpu.memory_space<vmem>>, vector<256x384xf32>
    %cst_60 = arith.constant dense<0.000000e+00> : vector<2x384xf32>
    %200 = tpu.matmul %198, %199, %cst_60 {dimension_numbers = #tpu.dot_dimension_numbers<[1], [0], [0], [1], [0, 0, 1, 1], [], []>} : vector<2x256xf32>, vector<256x384xf32>, vector<2x384xf32> -> vector<2x384xf32>
    %201 = arith.addf %200, %11 : vector<2x384xf32>
    %202 = vector.extract_strided_slice %201 {offsets = [0, 0], sizes = [2, 256], strides = [1, 1]} : vector<2x384xf32> to vector<2x256xf32>
    %203 = arith.negf %202 : vector<2x256xf32>
    %204 = math.exp %203 : vector<2x256xf32>
    %cst_61 = arith.constant 1.000000e+00 : f32
    %205 = vector.broadcast %cst_61 : f32 to vector<2x256xf32>
    %206 = arith.addf %205, %204 : vector<2x256xf32>
    %207 = arith.divf %205, %206 : vector<2x256xf32>
    %208 = vector.extract_strided_slice %207 {offsets = [0, 0], sizes = [2, 128], strides = [1, 1]} : vector<2x256xf32> to vector<2x128xf32>
    %209 = vector.extract_strided_slice %201 {offsets = [0, 256], sizes = [2, 128], strides = [1, 1]} : vector<2x384xf32> to vector<2x128xf32>
    %210 = arith.mulf %208, %209 : vector<2x128xf32>
    %211 = arith.addf %197, %210 : vector<2x128xf32>
    %212 = math.tanh %211 : vector<2x128xf32>
    %213 = vector.extract_strided_slice %207 {offsets = [0, 128], sizes = [2, 128], strides = [1, 1]} : vector<2x256xf32> to vector<2x128xf32>
    %cst_62 = arith.constant 1.000000e+00 : f32
    %214 = vector.broadcast %cst_62 : f32 to vector<2x128xf32>
    %215 = arith.subf %214, %213 : vector<2x128xf32>
    %216 = arith.mulf %215, %212 : vector<2x128xf32>
    %217 = vector.extract_strided_slice %207 {offsets = [0, 128], sizes = [2, 128], strides = [1, 1]} : vector<2x256xf32> to vector<2x128xf32>
    %218 = arith.mulf %217, %168 : vector<2x128xf32>
    %219 = arith.addf %216, %218 : vector<2x128xf32>
    %c6 = arith.constant 6 : index
    %c0_63 = arith.constant 0 : index
    %220 = vector.load %arg6[%c6, %c0_63] : memref<16x128xf32, #tpu.memory_space<vmem>>, vector<2x128xf32>
    tpu.vector_store %arg6[%c6, %c0_63], %219 {strides = array<i32>} : memref<16x128xf32, #tpu.memory_space<vmem>>, vector<2x128xf32>,
    %221 = vector.extract_strided_slice %5 {offsets = [8, 0], sizes = [2, 384], strides = [1, 1]} : vector<16x384xf32> to vector<2x384xf32>
    %c16_64 = arith.constant 16 : index
    %c0_65 = arith.constant 0 : index
    %222 = vector.load %arg2[%c16_64, %c0_65] : memref<408x384xf32, #tpu.memory_space<vmem>>, vector<128x384xf32>
    %cst_66 = arith.constant dense<0.000000e+00> : vector<2x384xf32>
    %223 = tpu.matmul %194, %222, %cst_66 {dimension_numbers = #tpu.dot_dimension_numbers<[1], [0], [0], [1], [0, 0, 1, 1], [], []>} : vector<2x128xf32>, vector<128x384xf32>, vector<2x384xf32> -> vector<2x384xf32>
    %224 = arith.addf %223, %8 : vector<2x384xf32>
    %225 = vector.extract_strided_slice %221 {offsets = [0, 0], sizes = [2, 256], strides = [1, 1]} : vector<2x384xf32> to vector<2x256xf32>
    %226 = vector.extract_strided_slice %224 {offsets = [0, 0], sizes = [2, 256], strides = [1, 1]} : vector<2x384xf32> to vector<2x256xf32>
    %227 = arith.addf %225, %226 : vector<2x256xf32>
    %228 = arith.negf %227 : vector<2x256xf32>
    %229 = math.exp %228 : vector<2x256xf32>
    %cst_67 = arith.constant 1.000000e+00 : f32
    %230 = vector.broadcast %cst_67 : f32 to vector<2x256xf32>
    %231 = arith.addf %230, %229 : vector<2x256xf32>
    %232 = arith.divf %230, %231 : vector<2x256xf32>
    %233 = vector.extract_strided_slice %221 {offsets = [0, 256], sizes = [2, 128], strides = [1, 1]} : vector<2x384xf32> to vector<2x128xf32>
    %234 = vector.extract_strided_slice %232 {offsets = [0, 0], sizes = [2, 128], strides = [1, 1]} : vector<2x256xf32> to vector<2x128xf32>
    %235 = vector.extract_strided_slice %224 {offsets = [0, 256], sizes = [2, 128], strides = [1, 1]} : vector<2x384xf32> to vector<2x128xf32>
    %236 = arith.mulf %234, %235 : vector<2x128xf32>
    %237 = arith.addf %233, %236 : vector<2x128xf32>
    %238 = math.tanh %237 : vector<2x128xf32>
    %239 = vector.extract_strided_slice %232 {offsets = [0, 128], sizes = [2, 128], strides = [1, 1]} : vector<2x256xf32> to vector<2x128xf32>
    %cst_68 = arith.constant 1.000000e+00 : f32
    %240 = vector.broadcast %cst_68 : f32 to vector<2x128xf32>
    %241 = arith.subf %240, %239 : vector<2x128xf32>
    %242 = arith.mulf %241, %238 : vector<2x128xf32>
    %243 = vector.extract_strided_slice %232 {offsets = [0, 128], sizes = [2, 128], strides = [1, 1]} : vector<2x256xf32> to vector<2x128xf32>
    %244 = arith.mulf %243, %194 : vector<2x128xf32>
    %245 = arith.addf %242, %244 : vector<2x128xf32>
    %c0_69 = arith.constant 0 : index
    %c0_70 = arith.constant 0 : index
    %246 = vector.load %arg3[%c0_69, %c0_70] : memref<544x128xf32, #tpu.memory_space<vmem>>, vector<128x128xf32>
    %cst_71 = arith.constant dense<0.000000e+00> : vector<2x128xf32>
    %247 = tpu.matmul %245, %246, %cst_71 {dimension_numbers = #tpu.dot_dimension_numbers<[1], [0], [0], [1], [0, 0, 1, 1], [], []>} : vector<2x128xf32>, vector<128x128xf32>, vector<2x128xf32> -> vector<2x128xf32>
    %248 = arith.addf %247, %14 : vector<2x128xf32>
    %249 = tpu.concatenate %245, %219 in 1 : vector<2x128xf32>, vector<2x128xf32> -> vector<2x256xf32>
    %c144_72 = arith.constant 144 : index
    %c0_73 = arith.constant 0 : index
    %250 = vector.load %arg2[%c144_72, %c0_73] : memref<408x384xf32, #tpu.memory_space<vmem>>, vector<256x384xf32>
    %cst_74 = arith.constant dense<0.000000e+00> : vector<2x384xf32>
    %251 = tpu.matmul %249, %250, %cst_74 {dimension_numbers = #tpu.dot_dimension_numbers<[1], [0], [0], [1], [0, 0, 1, 1], [], []>} : vector<2x256xf32>, vector<256x384xf32>, vector<2x384xf32> -> vector<2x384xf32>
    %252 = arith.addf %251, %11 : vector<2x384xf32>
    %253 = vector.extract_strided_slice %252 {offsets = [0, 0], sizes = [2, 256], strides = [1, 1]} : vector<2x384xf32> to vector<2x256xf32>
    %254 = arith.negf %253 : vector<2x256xf32>
    %255 = math.exp %254 : vector<2x256xf32>
    %cst_75 = arith.constant 1.000000e+00 : f32
    %256 = vector.broadcast %cst_75 : f32 to vector<2x256xf32>
    %257 = arith.addf %256, %255 : vector<2x256xf32>
    %258 = arith.divf %256, %257 : vector<2x256xf32>
    %259 = vector.extract_strided_slice %258 {offsets = [0, 0], sizes = [2, 128], strides = [1, 1]} : vector<2x256xf32> to vector<2x128xf32>
    %260 = vector.extract_strided_slice %252 {offsets = [0, 256], sizes = [2, 128], strides = [1, 1]} : vector<2x384xf32> to vector<2x128xf32>
    %261 = arith.mulf %259, %260 : vector<2x128xf32>
    %262 = arith.addf %248, %261 : vector<2x128xf32>
    %263 = math.tanh %262 : vector<2x128xf32>
    %264 = vector.extract_strided_slice %258 {offsets = [0, 128], sizes = [2, 128], strides = [1, 1]} : vector<2x256xf32> to vector<2x128xf32>
    %cst_76 = arith.constant 1.000000e+00 : f32
    %265 = vector.broadcast %cst_76 : f32 to vector<2x128xf32>
    %266 = arith.subf %265, %264 : vector<2x128xf32>
    %267 = arith.mulf %266, %263 : vector<2x128xf32>
    %268 = vector.extract_strided_slice %258 {offsets = [0, 128], sizes = [2, 128], strides = [1, 1]} : vector<2x256xf32> to vector<2x128xf32>
    %269 = arith.mulf %268, %219 : vector<2x128xf32>
    %270 = arith.addf %267, %269 : vector<2x128xf32>
    %c8 = arith.constant 8 : index
    %c0_77 = arith.constant 0 : index
    %271 = vector.load %arg6[%c8, %c0_77] : memref<16x128xf32, #tpu.memory_space<vmem>>, vector<2x128xf32>
    tpu.vector_store %arg6[%c8, %c0_77], %270 {strides = array<i32>} : memref<16x128xf32, #tpu.memory_space<vmem>>, vector<2x128xf32>,
    %272 = vector.extract_strided_slice %5 {offsets = [10, 0], sizes = [2, 384], strides = [1, 1]} : vector<16x384xf32> to vector<2x384xf32>
    %c16_78 = arith.constant 16 : index
    %c0_79 = arith.constant 0 : index
    %273 = vector.load %arg2[%c16_78, %c0_79] : memref<408x384xf32, #tpu.memory_space<vmem>>, vector<128x384xf32>
    %cst_80 = arith.constant dense<0.000000e+00> : vector<2x384xf32>
    %274 = tpu.matmul %245, %273, %cst_80 {dimension_numbers = #tpu.dot_dimension_numbers<[1], [0], [0], [1], [0, 0, 1, 1], [], []>} : vector<2x128xf32>, vector<128x384xf32>, vector<2x384xf32> -> vector<2x384xf32>
    %275 = arith.addf %274, %8 : vector<2x384xf32>
    %276 = vector.extract_strided_slice %272 {offsets = [0, 0], sizes = [2, 256], strides = [1, 1]} : vector<2x384xf32> to vector<2x256xf32>
    %277 = vector.extract_strided_slice %275 {offsets = [0, 0], sizes = [2, 256], strides = [1, 1]} : vector<2x384xf32> to vector<2x256xf32>
    %278 = arith.addf %276, %277 : vector<2x256xf32>
    %279 = arith.negf %278 : vector<2x256xf32>
    %280 = math.exp %279 : vector<2x256xf32>
    %cst_81 = arith.constant 1.000000e+00 : f32
    %281 = vector.broadcast %cst_81 : f32 to vector<2x256xf32>
    %282 = arith.addf %281, %280 : vector<2x256xf32>
    %283 = arith.divf %281, %282 : vector<2x256xf32>
    %284 = vector.extract_strided_slice %272 {offsets = [0, 256], sizes = [2, 128], strides = [1, 1]} : vector<2x384xf32> to vector<2x128xf32>
    %285 = vector.extract_strided_slice %283 {offsets = [0, 0], sizes = [2, 128], strides = [1, 1]} : vector<2x256xf32> to vector<2x128xf32>
    %286 = vector.extract_strided_slice %275 {offsets = [0, 256], sizes = [2, 128], strides = [1, 1]} : vector<2x384xf32> to vector<2x128xf32>
    %287 = arith.mulf %285, %286 : vector<2x128xf32>
    %288 = arith.addf %284, %287 : vector<2x128xf32>
    %289 = math.tanh %288 : vector<2x128xf32>
    %290 = vector.extract_strided_slice %283 {offsets = [0, 128], sizes = [2, 128], strides = [1, 1]} : vector<2x256xf32> to vector<2x128xf32>
    %cst_82 = arith.constant 1.000000e+00 : f32
    %291 = vector.broadcast %cst_82 : f32 to vector<2x128xf32>
    %292 = arith.subf %291, %290 : vector<2x128xf32>
    %293 = arith.mulf %292, %289 : vector<2x128xf32>
    %294 = vector.extract_strided_slice %283 {offsets = [0, 128], sizes = [2, 128], strides = [1, 1]} : vector<2x256xf32> to vector<2x128xf32>
    %295 = arith.mulf %294, %245 : vector<2x128xf32>
    %296 = arith.addf %293, %295 : vector<2x128xf32>
    %c0_83 = arith.constant 0 : index
    %c0_84 = arith.constant 0 : index
    %297 = vector.load %arg3[%c0_83, %c0_84] : memref<544x128xf32, #tpu.memory_space<vmem>>, vector<128x128xf32>
    %cst_85 = arith.constant dense<0.000000e+00> : vector<2x128xf32>
    %298 = tpu.matmul %296, %297, %cst_85 {dimension_numbers = #tpu.dot_dimension_numbers<[1], [0], [0], [1], [0, 0, 1, 1], [], []>} : vector<2x128xf32>, vector<128x128xf32>, vector<2x128xf32> -> vector<2x128xf32>
    %299 = arith.addf %298, %14 : vector<2x128xf32>
    %300 = tpu.concatenate %296, %270 in 1 : vector<2x128xf32>, vector<2x128xf32> -> vector<2x256xf32>
    %c144_86 = arith.constant 144 : index
    %c0_87 = arith.constant 0 : index
    %301 = vector.load %arg2[%c144_86, %c0_87] : memref<408x384xf32, #tpu.memory_space<vmem>>, vector<256x384xf32>
    %cst_88 = arith.constant dense<0.000000e+00> : vector<2x384xf32>
    %302 = tpu.matmul %300, %301, %cst_88 {dimension_numbers = #tpu.dot_dimension_numbers<[1], [0], [0], [1], [0, 0, 1, 1], [], []>} : vector<2x256xf32>, vector<256x384xf32>, vector<2x384xf32> -> vector<2x384xf32>
    %303 = arith.addf %302, %11 : vector<2x384xf32>
    %304 = vector.extract_strided_slice %303 {offsets = [0, 0], sizes = [2, 256], strides = [1, 1]} : vector<2x384xf32> to vector<2x256xf32>
    %305 = arith.negf %304 : vector<2x256xf32>
    %306 = math.exp %305 : vector<2x256xf32>
    %cst_89 = arith.constant 1.000000e+00 : f32
    %307 = vector.broadcast %cst_89 : f32 to vector<2x256xf32>
    %308 = arith.addf %307, %306 : vector<2x256xf32>
    %309 = arith.divf %307, %308 : vector<2x256xf32>
    %310 = vector.extract_strided_slice %309 {offsets = [0, 0], sizes = [2, 128], strides = [1, 1]} : vector<2x256xf32> to vector<2x128xf32>
    %311 = vector.extract_strided_slice %303 {offsets = [0, 256], sizes = [2, 128], strides = [1, 1]} : vector<2x384xf32> to vector<2x128xf32>
    %312 = arith.mulf %310, %311 : vector<2x128xf32>
    %313 = arith.addf %299, %312 : vector<2x128xf32>
    %314 = math.tanh %313 : vector<2x128xf32>
    %315 = vector.extract_strided_slice %309 {offsets = [0, 128], sizes = [2, 128], strides = [1, 1]} : vector<2x256xf32> to vector<2x128xf32>
    %cst_90 = arith.constant 1.000000e+00 : f32
    %316 = vector.broadcast %cst_90 : f32 to vector<2x128xf32>
    %317 = arith.subf %316, %315 : vector<2x128xf32>
    %318 = arith.mulf %317, %314 : vector<2x128xf32>
    %319 = vector.extract_strided_slice %309 {offsets = [0, 128], sizes = [2, 128], strides = [1, 1]} : vector<2x256xf32> to vector<2x128xf32>
    %320 = arith.mulf %319, %270 : vector<2x128xf32>
    %321 = arith.addf %318, %320 : vector<2x128xf32>
    %c10 = arith.constant 10 : index
    %c0_91 = arith.constant 0 : index
    %322 = vector.load %arg6[%c10, %c0_91] : memref<16x128xf32, #tpu.memory_space<vmem>>, vector<2x128xf32>
    tpu.vector_store %arg6[%c10, %c0_91], %321 {strides = array<i32>} : memref<16x128xf32, #tpu.memory_space<vmem>>, vector<2x128xf32>,
    %323 = vector.extract_strided_slice %5 {offsets = [12, 0], sizes = [2, 384], strides = [1, 1]} : vector<16x384xf32> to vector<2x384xf32>
    %c16_92 = arith.constant 16 : index
    %c0_93 = arith.constant 0 : index
    %324 = vector.load %arg2[%c16_92, %c0_93] : memref<408x384xf32, #tpu.memory_space<vmem>>, vector<128x384xf32>
    %cst_94 = arith.constant dense<0.000000e+00> : vector<2x384xf32>
    %325 = tpu.matmul %296, %324, %cst_94 {dimension_numbers = #tpu.dot_dimension_numbers<[1], [0], [0], [1], [0, 0, 1, 1], [], []>} : vector<2x128xf32>, vector<128x384xf32>, vector<2x384xf32> -> vector<2x384xf32>
    %326 = arith.addf %325, %8 : vector<2x384xf32>
    %327 = vector.extract_strided_slice %323 {offsets = [0, 0], sizes = [2, 256], strides = [1, 1]} : vector<2x384xf32> to vector<2x256xf32>
    %328 = vector.extract_strided_slice %326 {offsets = [0, 0], sizes = [2, 256], strides = [1, 1]} : vector<2x384xf32> to vector<2x256xf32>
    %329 = arith.addf %327, %328 : vector<2x256xf32>
    %330 = arith.negf %329 : vector<2x256xf32>
    %331 = math.exp %330 : vector<2x256xf32>
    %cst_95 = arith.constant 1.000000e+00 : f32
    %332 = vector.broadcast %cst_95 : f32 to vector<2x256xf32>
    %333 = arith.addf %332, %331 : vector<2x256xf32>
    %334 = arith.divf %332, %333 : vector<2x256xf32>
    %335 = vector.extract_strided_slice %323 {offsets = [0, 256], sizes = [2, 128], strides = [1, 1]} : vector<2x384xf32> to vector<2x128xf32>
    %336 = vector.extract_strided_slice %334 {offsets = [0, 0], sizes = [2, 128], strides = [1, 1]} : vector<2x256xf32> to vector<2x128xf32>
    %337 = vector.extract_strided_slice %326 {offsets = [0, 256], sizes = [2, 128], strides = [1, 1]} : vector<2x384xf32> to vector<2x128xf32>
    %338 = arith.mulf %336, %337 : vector<2x128xf32>
    %339 = arith.addf %335, %338 : vector<2x128xf32>
    %340 = math.tanh %339 : vector<2x128xf32>
    %341 = vector.extract_strided_slice %334 {offsets = [0, 128], sizes = [2, 128], strides = [1, 1]} : vector<2x256xf32> to vector<2x128xf32>
    %cst_96 = arith.constant 1.000000e+00 : f32
    %342 = vector.broadcast %cst_96 : f32 to vector<2x128xf32>
    %343 = arith.subf %342, %341 : vector<2x128xf32>
    %344 = arith.mulf %343, %340 : vector<2x128xf32>
    %345 = vector.extract_strided_slice %334 {offsets = [0, 128], sizes = [2, 128], strides = [1, 1]} : vector<2x256xf32> to vector<2x128xf32>
    %346 = arith.mulf %345, %296 : vector<2x128xf32>
    %347 = arith.addf %344, %346 : vector<2x128xf32>
    %c0_97 = arith.constant 0 : index
    %c0_98 = arith.constant 0 : index
    %348 = vector.load %arg3[%c0_97, %c0_98] : memref<544x128xf32, #tpu.memory_space<vmem>>, vector<128x128xf32>
    %cst_99 = arith.constant dense<0.000000e+00> : vector<2x128xf32>
    %349 = tpu.matmul %347, %348, %cst_99 {dimension_numbers = #tpu.dot_dimension_numbers<[1], [0], [0], [1], [0, 0, 1, 1], [], []>} : vector<2x128xf32>, vector<128x128xf32>, vector<2x128xf32> -> vector<2x128xf32>
    %350 = arith.addf %349, %14 : vector<2x128xf32>
    %351 = tpu.concatenate %347, %321 in 1 : vector<2x128xf32>, vector<2x128xf32> -> vector<2x256xf32>
    %c144_100 = arith.constant 144 : index
    %c0_101 = arith.constant 0 : index
    %352 = vector.load %arg2[%c144_100, %c0_101] : memref<408x384xf32, #tpu.memory_space<vmem>>, vector<256x384xf32>
    %cst_102 = arith.constant dense<0.000000e+00> : vector<2x384xf32>
    %353 = tpu.matmul %351, %352, %cst_102 {dimension_numbers = #tpu.dot_dimension_numbers<[1], [0], [0], [1], [0, 0, 1, 1], [], []>} : vector<2x256xf32>, vector<256x384xf32>, vector<2x384xf32> -> vector<2x384xf32>
    %354 = arith.addf %353, %11 : vector<2x384xf32>
    %355 = vector.extract_strided_slice %354 {offsets = [0, 0], sizes = [2, 256], strides = [1, 1]} : vector<2x384xf32> to vector<2x256xf32>
    %356 = arith.negf %355 : vector<2x256xf32>
    %357 = math.exp %356 : vector<2x256xf32>
    %cst_103 = arith.constant 1.000000e+00 : f32
    %358 = vector.broadcast %cst_103 : f32 to vector<2x256xf32>
    %359 = arith.addf %358, %357 : vector<2x256xf32>
    %360 = arith.divf %358, %359 : vector<2x256xf32>
    %361 = vector.extract_strided_slice %360 {offsets = [0, 0], sizes = [2, 128], strides = [1, 1]} : vector<2x256xf32> to vector<2x128xf32>
    %362 = vector.extract_strided_slice %354 {offsets = [0, 256], sizes = [2, 128], strides = [1, 1]} : vector<2x384xf32> to vector<2x128xf32>
    %363 = arith.mulf %361, %362 : vector<2x128xf32>
    %364 = arith.addf %350, %363 : vector<2x128xf32>
    %365 = math.tanh %364 : vector<2x128xf32>
    %366 = vector.extract_strided_slice %360 {offsets = [0, 128], sizes = [2, 128], strides = [1, 1]} : vector<2x256xf32> to vector<2x128xf32>
    %cst_104 = arith.constant 1.000000e+00 : f32
    %367 = vector.broadcast %cst_104 : f32 to vector<2x128xf32>
    %368 = arith.subf %367, %366 : vector<2x128xf32>
    %369 = arith.mulf %368, %365 : vector<2x128xf32>
    %370 = vector.extract_strided_slice %360 {offsets = [0, 128], sizes = [2, 128], strides = [1, 1]} : vector<2x256xf32> to vector<2x128xf32>
    %371 = arith.mulf %370, %321 : vector<2x128xf32>
    %372 = arith.addf %369, %371 : vector<2x128xf32>
    %c12 = arith.constant 12 : index
    %c0_105 = arith.constant 0 : index
    %373 = vector.load %arg6[%c12, %c0_105] : memref<16x128xf32, #tpu.memory_space<vmem>>, vector<2x128xf32>
    tpu.vector_store %arg6[%c12, %c0_105], %372 {strides = array<i32>} : memref<16x128xf32, #tpu.memory_space<vmem>>, vector<2x128xf32>,
    %374 = vector.extract_strided_slice %5 {offsets = [14, 0], sizes = [2, 384], strides = [1, 1]} : vector<16x384xf32> to vector<2x384xf32>
    %c16_106 = arith.constant 16 : index
    %c0_107 = arith.constant 0 : index
    %375 = vector.load %arg2[%c16_106, %c0_107] : memref<408x384xf32, #tpu.memory_space<vmem>>, vector<128x384xf32>
    %cst_108 = arith.constant dense<0.000000e+00> : vector<2x384xf32>
    %376 = tpu.matmul %347, %375, %cst_108 {dimension_numbers = #tpu.dot_dimension_numbers<[1], [0], [0], [1], [0, 0, 1, 1], [], []>} : vector<2x128xf32>, vector<128x384xf32>, vector<2x384xf32> -> vector<2x384xf32>
    %377 = arith.addf %376, %8 : vector<2x384xf32>
    %378 = vector.extract_strided_slice %374 {offsets = [0, 0], sizes = [2, 256], strides = [1, 1]} : vector<2x384xf32> to vector<2x256xf32>
    %379 = vector.extract_strided_slice %377 {offsets = [0, 0], sizes = [2, 256], strides = [1, 1]} : vector<2x384xf32> to vector<2x256xf32>
    %380 = arith.addf %378, %379 : vector<2x256xf32>
    %381 = arith.negf %380 : vector<2x256xf32>
    %382 = math.exp %381 : vector<2x256xf32>
    %cst_109 = arith.constant 1.000000e+00 : f32
    %383 = vector.broadcast %cst_109 : f32 to vector<2x256xf32>
    %384 = arith.addf %383, %382 : vector<2x256xf32>
    %385 = arith.divf %383, %384 : vector<2x256xf32>
    %386 = vector.extract_strided_slice %374 {offsets = [0, 256], sizes = [2, 128], strides = [1, 1]} : vector<2x384xf32> to vector<2x128xf32>
    %387 = vector.extract_strided_slice %385 {offsets = [0, 0], sizes = [2, 128], strides = [1, 1]} : vector<2x256xf32> to vector<2x128xf32>
    %388 = vector.extract_strided_slice %377 {offsets = [0, 256], sizes = [2, 128], strides = [1, 1]} : vector<2x384xf32> to vector<2x128xf32>
    %389 = arith.mulf %387, %388 : vector<2x128xf32>
    %390 = arith.addf %386, %389 : vector<2x128xf32>
    %391 = math.tanh %390 : vector<2x128xf32>
    %392 = vector.extract_strided_slice %385 {offsets = [0, 128], sizes = [2, 128], strides = [1, 1]} : vector<2x256xf32> to vector<2x128xf32>
    %cst_110 = arith.constant 1.000000e+00 : f32
    %393 = vector.broadcast %cst_110 : f32 to vector<2x128xf32>
    %394 = arith.subf %393, %392 : vector<2x128xf32>
    %395 = arith.mulf %394, %391 : vector<2x128xf32>
    %396 = vector.extract_strided_slice %385 {offsets = [0, 128], sizes = [2, 128], strides = [1, 1]} : vector<2x256xf32> to vector<2x128xf32>
    %397 = arith.mulf %396, %347 : vector<2x128xf32>
    %398 = arith.addf %395, %397 : vector<2x128xf32>
    %c0_111 = arith.constant 0 : index
    %c0_112 = arith.constant 0 : index
    %399 = vector.load %arg3[%c0_111, %c0_112] : memref<544x128xf32, #tpu.memory_space<vmem>>, vector<128x128xf32>
    %cst_113 = arith.constant dense<0.000000e+00> : vector<2x128xf32>
    %400 = tpu.matmul %398, %399, %cst_113 {dimension_numbers = #tpu.dot_dimension_numbers<[1], [0], [0], [1], [0, 0, 1, 1], [], []>} : vector<2x128xf32>, vector<128x128xf32>, vector<2x128xf32> -> vector<2x128xf32>
    %401 = arith.addf %400, %14 : vector<2x128xf32>
    %402 = tpu.concatenate %398, %372 in 1 : vector<2x128xf32>, vector<2x128xf32> -> vector<2x256xf32>
    %c144_114 = arith.constant 144 : index
    %c0_115 = arith.constant 0 : index
    %403 = vector.load %arg2[%c144_114, %c0_115] : memref<408x384xf32, #tpu.memory_space<vmem>>, vector<256x384xf32>
    %cst_116 = arith.constant dense<0.000000e+00> : vector<2x384xf32>
    %404 = tpu.matmul %402, %403, %cst_116 {dimension_numbers = #tpu.dot_dimension_numbers<[1], [0], [0], [1], [0, 0, 1, 1], [], []>} : vector<2x256xf32>, vector<256x384xf32>, vector<2x384xf32> -> vector<2x384xf32>
    %405 = arith.addf %404, %11 : vector<2x384xf32>
    %406 = vector.extract_strided_slice %405 {offsets = [0, 0], sizes = [2, 256], strides = [1, 1]} : vector<2x384xf32> to vector<2x256xf32>
    %407 = arith.negf %406 : vector<2x256xf32>
    %408 = math.exp %407 : vector<2x256xf32>
    %cst_117 = arith.constant 1.000000e+00 : f32
    %409 = vector.broadcast %cst_117 : f32 to vector<2x256xf32>
    %410 = arith.addf %409, %408 : vector<2x256xf32>
    %411 = arith.divf %409, %410 : vector<2x256xf32>
    %412 = vector.extract_strided_slice %411 {offsets = [0, 0], sizes = [2, 128], strides = [1, 1]} : vector<2x256xf32> to vector<2x128xf32>
    %413 = vector.extract_strided_slice %405 {offsets = [0, 256], sizes = [2, 128], strides = [1, 1]} : vector<2x384xf32> to vector<2x128xf32>
    %414 = arith.mulf %412, %413 : vector<2x128xf32>
    %415 = arith.addf %401, %414 : vector<2x128xf32>
    %416 = math.tanh %415 : vector<2x128xf32>
    %417 = vector.extract_strided_slice %411 {offsets = [0, 128], sizes = [2, 128], strides = [1, 1]} : vector<2x256xf32> to vector<2x128xf32>
    %cst_118 = arith.constant 1.000000e+00 : f32
    %418 = vector.broadcast %cst_118 : f32 to vector<2x128xf32>
    %419 = arith.subf %418, %417 : vector<2x128xf32>
    %420 = arith.mulf %419, %416 : vector<2x128xf32>
    %421 = vector.extract_strided_slice %411 {offsets = [0, 128], sizes = [2, 128], strides = [1, 1]} : vector<2x256xf32> to vector<2x128xf32>
    %422 = arith.mulf %421, %372 : vector<2x128xf32>
    %423 = arith.addf %420, %422 : vector<2x128xf32>
    %c14 = arith.constant 14 : index
    %c0_119 = arith.constant 0 : index
    %424 = vector.load %arg6[%c14, %c0_119] : memref<16x128xf32, #tpu.memory_space<vmem>>, vector<2x128xf32>
    tpu.vector_store %arg6[%c14, %c0_119], %423 {strides = array<i32>} : memref<16x128xf32, #tpu.memory_space<vmem>>, vector<2x128xf32>,
    %425 = vector.extract_strided_slice %398 {offsets = [0, 0], sizes = [2, 32], strides = [1, 1]} : vector<2x128xf32> to vector<2x32xf32>
    %c0_120 = arith.constant 0 : index
    %c0_121 = arith.constant 0 : index
    %c0_122 = arith.constant 0 : index
    %426 = vector.load %arg5[%c0_120, %c0_121, %c0_122] : memref<2x2x32xf32, #tpu.memory_space<vmem>>, vector<1x2x32xf32>
    %427 = vector.shape_cast %426 : vector<1x2x32xf32> to vector<2x32xf32>
    %428 = vector.shape_cast %425 : vector<2x32xf32> to vector<1x2x32xf32>
    tpu.vector_store %arg5[%c0_120, %c0_121, %c0_122], %428 {strides = array<i32>} : memref<2x2x32xf32, #tpu.memory_space<vmem>>, vector<1x2x32xf32>,
    %429 = vector.extract_strided_slice %423 {offsets = [0, 0], sizes = [2, 32], strides = [1, 1]} : vector<2x128xf32> to vector<2x32xf32>
    %c1 = arith.constant 1 : index
    %c0_123 = arith.constant 0 : index
    %c0_124 = arith.constant 0 : index
    %430 = vector.load %arg5[%c1, %c0_123, %c0_124] : memref<2x2x32xf32, #tpu.memory_space<vmem>>, vector<1x2x32xf32>
    %431 = vector.shape_cast %430 : vector<1x2x32xf32> to vector<2x32xf32>
    %432 = vector.shape_cast %429 : vector<2x32xf32> to vector<1x2x32xf32>
    tpu.vector_store %arg5[%c1, %c0_123, %c0_124], %432 {strides = array<i32>} : memref<2x2x32xf32, #tpu.memory_space<vmem>>, vector<1x2x32xf32>,
    %c0_125 = arith.constant 0 : index
    %c0_126 = arith.constant 0 : index
    %433 = vector.load %arg6[%c0_125, %c0_126] : memref<16x128xf32, #tpu.memory_space<vmem>>, vector<16x128xf32>
    %c128 = arith.constant 128 : index
    %c0_127 = arith.constant 0 : index
    %434 = vector.load %arg3[%c128, %c0_127] : memref<544x128xf32, #tpu.memory_space<vmem>>, vector<128x16xf32>
    %cst_128 = arith.constant dense<0.000000e+00> : vector<16x16xf32>
    %435 = tpu.matmul %433, %434, %cst_128 {dimension_numbers = #tpu.dot_dimension_numbers<[1], [0], [0], [1], [0, 0, 1, 1], [], []>} : vector<16x128xf32>, vector<128x16xf32>, vector<16x16xf32> -> vector<16x16xf32>
    %c536 = arith.constant 536 : index
    %c0_129 = arith.constant 0 : index
    %436 = vector.load %arg3[%c536, %c0_129] : memref<544x128xf32, #tpu.memory_space<vmem>>, vector<1x16xf32>
    %437 = vector.broadcast %436 : vector<1x16xf32> to vector<16x16xf32>
    %438 = arith.addf %435, %437 : vector<16x16xf32>
    %cst_130 = arith.constant 0.000000e+00 : f32
    %439 = vector.broadcast %cst_130 : f32 to vector<16x16xf32>
    %440 = arith.maximumf %438, %439 : vector<16x16xf32>
    %c256 = arith.constant 256 : index
    %c0_131 = arith.constant 0 : index
    %441 = vector.load %arg3[%c256, %c0_131] : memref<544x128xf32, #tpu.memory_space<vmem>>, vector<16x1xf32>
    %cst_132 = arith.constant dense<0.000000e+00> : vector<16x1xf32>
    %442 = tpu.matmul %440, %441, %cst_132 {dimension_numbers = #tpu.dot_dimension_numbers<[1], [0], [0], [1], [0, 0, 1, 1], [], []>} : vector<16x16xf32>, vector<16x1xf32>, vector<16x1xf32> -> vector<16x1xf32>
    %c537 = arith.constant 537 : index
    %c0_133 = arith.constant 0 : index
    %443 = vector.load %arg3[%c537, %c0_133] : memref<544x128xf32, #tpu.memory_space<vmem>>, vector<1x1xf32>
    %444 = vector.broadcast %443 : vector<1x1xf32> to vector<16x1xf32>
    %445 = arith.addf %442, %444 : vector<16x1xf32>
    %446 = vector.extract_strided_slice %445 {offsets = [0, 0], sizes = [2, 1], strides = [1, 1]} : vector<16x1xf32> to vector<2x1xf32>
    %447 = vector.extract_strided_slice %445 {offsets = [2, 0], sizes = [2, 1], strides = [1, 1]} : vector<16x1xf32> to vector<2x1xf32>
    %448 = arith.maximumf %446, %447 : vector<2x1xf32>
    %449 = vector.extract_strided_slice %445 {offsets = [4, 0], sizes = [2, 1], strides = [1, 1]} : vector<16x1xf32> to vector<2x1xf32>
    %450 = arith.maximumf %448, %449 : vector<2x1xf32>
    %451 = vector.extract_strided_slice %445 {offsets = [6, 0], sizes = [2, 1], strides = [1, 1]} : vector<16x1xf32> to vector<2x1xf32>
    %452 = arith.maximumf %450, %451 : vector<2x1xf32>
    %453 = vector.extract_strided_slice %445 {offsets = [8, 0], sizes = [2, 1], strides = [1, 1]} : vector<16x1xf32> to vector<2x1xf32>
    %454 = arith.maximumf %452, %453 : vector<2x1xf32>
    %455 = vector.extract_strided_slice %445 {offsets = [10, 0], sizes = [2, 1], strides = [1, 1]} : vector<16x1xf32> to vector<2x1xf32>
    %456 = arith.maximumf %454, %455 : vector<2x1xf32>
    %457 = vector.extract_strided_slice %445 {offsets = [12, 0], sizes = [2, 1], strides = [1, 1]} : vector<16x1xf32> to vector<2x1xf32>
    %458 = arith.maximumf %456, %457 : vector<2x1xf32>
    %459 = vector.extract_strided_slice %445 {offsets = [14, 0], sizes = [2, 1], strides = [1, 1]} : vector<16x1xf32> to vector<2x1xf32>
    %460 = arith.maximumf %458, %459 : vector<2x1xf32>
    %cst_134 = arith.constant 0.000000e+00 : f32
    %461 = vector.broadcast %cst_134 : f32 to vector<2x1xf32>
    %cst_135 = arith.constant 0.000000e+00 : f32
    %462 = vector.broadcast %cst_135 : f32 to vector<2x128xf32>
    %463 = vector.extract_strided_slice %445 {offsets = [0, 0], sizes = [2, 1], strides = [1, 1]} : vector<16x1xf32> to vector<2x1xf32>
    %464 = arith.subf %463, %460 : vector<2x1xf32>
    %465 = math.exp %464 : vector<2x1xf32>
    %466 = arith.addf %461, %465 : vector<2x1xf32>
    %c0_136 = arith.constant 0 : index
    %c0_137 = arith.constant 0 : index
    %467 = vector.load %arg6[%c0_136, %c0_137] : memref<16x128xf32, #tpu.memory_space<vmem>>, vector<2x128xf32>
    %468 = vector.broadcast %465 : vector<2x1xf32> to vector<2x128xf32>
    %469 = arith.mulf %468, %467 : vector<2x128xf32>
    %470 = arith.addf %462, %469 : vector<2x128xf32>
    %471 = vector.extract_strided_slice %445 {offsets = [2, 0], sizes = [2, 1], strides = [1, 1]} : vector<16x1xf32> to vector<2x1xf32>
    %472 = arith.subf %471, %460 : vector<2x1xf32>
    %473 = math.exp %472 : vector<2x1xf32>
    %474 = arith.addf %466, %473 : vector<2x1xf32>
    %c2_138 = arith.constant 2 : index
    %c0_139 = arith.constant 0 : index
    %475 = vector.load %arg6[%c2_138, %c0_139] : memref<16x128xf32, #tpu.memory_space<vmem>>, vector<2x128xf32>
    %476 = vector.broadcast %473 : vector<2x1xf32> to vector<2x128xf32>
    %477 = arith.mulf %476, %475 : vector<2x128xf32>
    %478 = arith.addf %470, %477 : vector<2x128xf32>
    %479 = vector.extract_strided_slice %445 {offsets = [4, 0], sizes = [2, 1], strides = [1, 1]} : vector<16x1xf32> to vector<2x1xf32>
    %480 = arith.subf %479, %460 : vector<2x1xf32>
    %481 = math.exp %480 : vector<2x1xf32>
    %482 = arith.addf %474, %481 : vector<2x1xf32>
    %c4_140 = arith.constant 4 : index
    %c0_141 = arith.constant 0 : index
    %483 = vector.load %arg6[%c4_140, %c0_141] : memref<16x128xf32, #tpu.memory_space<vmem>>, vector<2x128xf32>
    %484 = vector.broadcast %481 : vector<2x1xf32> to vector<2x128xf32>
    %485 = arith.mulf %484, %483 : vector<2x128xf32>
    %486 = arith.addf %478, %485 : vector<2x128xf32>
    %487 = vector.extract_strided_slice %445 {offsets = [6, 0], sizes = [2, 1], strides = [1, 1]} : vector<16x1xf32> to vector<2x1xf32>
    %488 = arith.subf %487, %460 : vector<2x1xf32>
    %489 = math.exp %488 : vector<2x1xf32>
    %490 = arith.addf %482, %489 : vector<2x1xf32>
    %c6_142 = arith.constant 6 : index
    %c0_143 = arith.constant 0 : index
    %491 = vector.load %arg6[%c6_142, %c0_143] : memref<16x128xf32, #tpu.memory_space<vmem>>, vector<2x128xf32>
    %492 = vector.broadcast %489 : vector<2x1xf32> to vector<2x128xf32>
    %493 = arith.mulf %492, %491 : vector<2x128xf32>
    %494 = arith.addf %486, %493 : vector<2x128xf32>
    %495 = vector.extract_strided_slice %445 {offsets = [8, 0], sizes = [2, 1], strides = [1, 1]} : vector<16x1xf32> to vector<2x1xf32>
    %496 = arith.subf %495, %460 : vector<2x1xf32>
    %497 = math.exp %496 : vector<2x1xf32>
    %498 = arith.addf %490, %497 : vector<2x1xf32>
    %c8_144 = arith.constant 8 : index
    %c0_145 = arith.constant 0 : index
    %499 = vector.load %arg6[%c8_144, %c0_145] : memref<16x128xf32, #tpu.memory_space<vmem>>, vector<2x128xf32>
    %500 = vector.broadcast %497 : vector<2x1xf32> to vector<2x128xf32>
    %501 = arith.mulf %500, %499 : vector<2x128xf32>
    %502 = arith.addf %494, %501 : vector<2x128xf32>
    %503 = vector.extract_strided_slice %445 {offsets = [10, 0], sizes = [2, 1], strides = [1, 1]} : vector<16x1xf32> to vector<2x1xf32>
    %504 = arith.subf %503, %460 : vector<2x1xf32>
    %505 = math.exp %504 : vector<2x1xf32>
    %506 = arith.addf %498, %505 : vector<2x1xf32>
    %c10_146 = arith.constant 10 : index
    %c0_147 = arith.constant 0 : index
    %507 = vector.load %arg6[%c10_146, %c0_147] : memref<16x128xf32, #tpu.memory_space<vmem>>, vector<2x128xf32>
    %508 = vector.broadcast %505 : vector<2x1xf32> to vector<2x128xf32>
    %509 = arith.mulf %508, %507 : vector<2x128xf32>
    %510 = arith.addf %502, %509 : vector<2x128xf32>
    %511 = vector.extract_strided_slice %445 {offsets = [12, 0], sizes = [2, 1], strides = [1, 1]} : vector<16x1xf32> to vector<2x1xf32>
    %512 = arith.subf %511, %460 : vector<2x1xf32>
    %513 = math.exp %512 : vector<2x1xf32>
    %514 = arith.addf %506, %513 : vector<2x1xf32>
    %c12_148 = arith.constant 12 : index
    %c0_149 = arith.constant 0 : index
    %515 = vector.load %arg6[%c12_148, %c0_149] : memref<16x128xf32, #tpu.memory_space<vmem>>, vector<2x128xf32>
    %516 = vector.broadcast %513 : vector<2x1xf32> to vector<2x128xf32>
    %517 = arith.mulf %516, %515 : vector<2x128xf32>
    %518 = arith.addf %510, %517 : vector<2x128xf32>
    %519 = vector.extract_strided_slice %445 {offsets = [14, 0], sizes = [2, 1], strides = [1, 1]} : vector<16x1xf32> to vector<2x1xf32>
    %520 = arith.subf %519, %460 : vector<2x1xf32>
    %521 = math.exp %520 : vector<2x1xf32>
    %522 = arith.addf %514, %521 : vector<2x1xf32>
    %c14_150 = arith.constant 14 : index
    %c0_151 = arith.constant 0 : index
    %523 = vector.load %arg6[%c14_150, %c0_151] : memref<16x128xf32, #tpu.memory_space<vmem>>, vector<2x128xf32>
    %524 = vector.broadcast %521 : vector<2x1xf32> to vector<2x128xf32>
    %525 = arith.mulf %524, %523 : vector<2x128xf32>
    %526 = arith.addf %518, %525 : vector<2x128xf32>
    %527 = vector.broadcast %522 : vector<2x1xf32> to vector<2x128xf32>
    %528 = arith.divf %526, %527 : vector<2x128xf32>
    %c0_152 = arith.constant 0 : index
    %c0_153 = arith.constant 0 : index
    %529 = vector.load %arg1[%c0_152, %c0_153] : memref<2x8xf32, #tpu.memory_space<vmem>>, vector<2x8xf32>
    %c272 = arith.constant 272 : index
    %c0_154 = arith.constant 0 : index
    %530 = vector.load %arg3[%c272, %c0_154] : memref<544x128xf32, #tpu.memory_space<vmem>>, vector<128x64xf32>
    %cst_155 = arith.constant dense<0.000000e+00> : vector<2x64xf32>
    %531 = tpu.matmul %528, %530, %cst_155 {dimension_numbers = #tpu.dot_dimension_numbers<[1], [0], [0], [1], [0, 0, 1, 1], [], []>} : vector<2x128xf32>, vector<128x64xf32>, vector<2x64xf32> -> vector<2x64xf32>
    %c400_156 = arith.constant 400 : index
    %c0_157 = arith.constant 0 : index
    %532 = vector.load %arg3[%c400_156, %c0_157] : memref<544x128xf32, #tpu.memory_space<vmem>>, vector<8x64xf32>
    %cst_158 = arith.constant dense<0.000000e+00> : vector<2x64xf32>
    %533 = tpu.matmul %529, %532, %cst_158 {dimension_numbers = #tpu.dot_dimension_numbers<[1], [0], [0], [1], [0, 0, 1, 1], [], []>} : vector<2x8xf32>, vector<8x64xf32>, vector<2x64xf32> -> vector<2x64xf32>
    %534 = arith.addf %531, %533 : vector<2x64xf32>
    %c538 = arith.constant 538 : index
    %c0_159 = arith.constant 0 : index
    %535 = vector.load %arg3[%c538, %c0_159] : memref<544x128xf32, #tpu.memory_space<vmem>>, vector<1x64xf32>
    %536 = vector.broadcast %535 : vector<1x64xf32> to vector<2x64xf32>
    %537 = arith.addf %534, %536 : vector<2x64xf32>
    %cst_160 = arith.constant 0.000000e+00 : f32
    %538 = vector.broadcast %cst_160 : f32 to vector<2x64xf32>
    %539 = arith.maximumf %537, %538 : vector<2x64xf32>
    %c408 = arith.constant 408 : index
    %c0_161 = arith.constant 0 : index
    %540 = vector.load %arg3[%c408, %c0_161] : memref<544x128xf32, #tpu.memory_space<vmem>>, vector<64x64xf32>
    %cst_162 = arith.constant dense<0.000000e+00> : vector<2x64xf32>
    %541 = tpu.matmul %539, %540, %cst_162 {dimension_numbers = #tpu.dot_dimension_numbers<[1], [0], [0], [1], [0, 0, 1, 1], [], []>} : vector<2x64xf32>, vector<64x64xf32>, vector<2x64xf32> -> vector<2x64xf32>
    %c539 = arith.constant 539 : index
    %c0_163 = arith.constant 0 : index
    %542 = vector.load %arg3[%c539, %c0_163] : memref<544x128xf32, #tpu.memory_space<vmem>>, vector<1x64xf32>
    %543 = vector.broadcast %542 : vector<1x64xf32> to vector<2x64xf32>
    %544 = arith.addf %541, %543 : vector<2x64xf32>
    %cst_164 = arith.constant 0.000000e+00 : f32
    %545 = vector.broadcast %cst_164 : f32 to vector<2x64xf32>
    %546 = arith.maximumf %544, %545 : vector<2x64xf32>
    %c472 = arith.constant 472 : index
    %c0_165 = arith.constant 0 : index
    %547 = vector.load %arg3[%c472, %c0_165] : memref<544x128xf32, #tpu.memory_space<vmem>>, vector<64x2xf32>
    %cst_166 = arith.constant dense<0.000000e+00> : vector<2x2xf32>
    %548 = tpu.matmul %546, %547, %cst_166 {dimension_numbers = #tpu.dot_dimension_numbers<[1], [0], [0], [1], [0, 0, 1, 1], [], []>} : vector<2x64xf32>, vector<64x2xf32>, vector<2x2xf32> -> vector<2x2xf32>
    %c540 = arith.constant 540 : index
    %c0_167 = arith.constant 0 : index
    %549 = vector.load %arg3[%c540, %c0_167] : memref<544x128xf32, #tpu.memory_space<vmem>>, vector<1x2xf32>
    %550 = vector.broadcast %549 : vector<1x2xf32> to vector<2x2xf32>
    %551 = arith.addf %548, %550 : vector<2x2xf32>
    %c0_168 = arith.constant 0 : index
    %c0_169 = arith.constant 0 : index
    %552 = vector.load %arg4[%c0_168, %c0_169] : memref<2x2xf32, #tpu.memory_space<vmem>>, vector<2x2xf32>
    tpu.vector_store %arg4[%c0_168, %c0_169], %551 {strides = array<i32>} : memref<2x2xf32, #tpu.memory_space<vmem>>, vector<2x2xf32>,
    return
  }
}

</mosaic_0001>

<llo_original>
// kernel: flood_gru_critic.1
$region0: #{flood_gru_critic.1}
  #allocation0 [shape = 'u32[]', space=smem, size = 0x4, offset = 0x4, fixed_abs, tag = 'smem constant byte address 0x4 - core index']
  #allocation1 [shape = 'u32[72,128]{1,0:T(1,128)}', space=vmem, size = 0x9000, scoped, tag = 'internal scratch']
  #allocation2 [shape = 'f32[16,128]{1,0:T(8,128)}', space=vmem, size = 0x2000, scoped, tag = 'scratch operand']
  %s0 = inlined_call_operand.vmem [shape: f32[16,16], index: 0, kind: input, shape index: {}]
  %s1 = inlined_call_operand.vmem [shape: f32[2,8], index: 1, kind: input, shape index: {}]
  %s2 = inlined_call_operand.hbm [shape: f32[408,384], index: 2, kind: input, shape index: {}]
  %s3 = inlined_call_operand.hbm [shape: f32[544,128], index: 3, kind: input, shape index: {}]
  %s4 = inlined_call_operand.vmem [shape: f32[2,2], index: 4, kind: output, shape index: {0}]
  %s5 = inlined_call_operand.hbm [shape: f32[2,2,32], index: 5, kind: output, shape index: {1}]
  %6 = xla_tuple %s4, %s5
  %s7 = sld [smem:[#allocation0]]
  $region42: #{flood_gru_critic.1} parent=0
    _
  %s9 = ssub.s32 1, %s7
  %s10 = scalar_select 0, %s9, %s7
  $region1: #{flood_gru_critic.1} parent=0
    #allocation3 [shape = 'u8[626688]{0}', space=vmem, size = 0x99000, scoped, tag = 'input window, operand 2, single buffered']
    #allocation4 [shape = 's32[1]{0}', space=sflag, size = 0x4, scoped, tag = 'scoped memory for flood_gru_critic.1']
    #allocation5 [shape = 's32[1]{0}', space=sflag, size = 0x4, scoped, tag = 'scoped memory for flood_gru_critic.1']
    #allocation6 [shape = 'u8[278528]{0}', space=vmem, size = 0x44000, scoped, tag = 'input window, operand 3, single buffered']
    #allocation7 [shape = 's32[1]{0}', space=sflag, size = 0x4, scoped, tag = 'scoped memory for flood_gru_critic.1']
    #allocation8 [shape = 'u8[2048]{0}', space=vmem, size = 0x800, scoped, tag = 'output window, operand 1, single buffered']
    %11 = vsyncpa [#allocation4], 0
    %12 = vsyncpa [#allocation7], 0
    %13 = vsyncpa [#allocation5], 0
    // Predicated region
    $region2: #{flood_gru_critic.1} parent=1 // pred_check
      _
    $region3: #{flood_gru_critic.1} parent=1 // pred_check_branch
      %15 = sbr.rel (0) target = $region5
    $region4: #{flood_gru_critic.1} parent=1 // pred_region
      _
    $region5: #{flood_gru_critic.1} parent=1 // pred_fallthru
      _
    // Predicated region
    $region6: #{flood_gru_critic.1} parent=1 // pred_check
      _
    $region7: #{flood_gru_critic.1} parent=1 // pred_check_branch
      %17 = sbr.rel (0) target = $region9
    $region8: #{flood_gru_critic.1} parent=1 // pred_region
      _
    $region9: #{flood_gru_critic.1} parent=1 // pred_fallthru
      _
    // Predicated region
    $region10: #{flood_gru_critic.1} parent=1 // pred_check
      _
    $region11: #{flood_gru_critic.1} parent=1 // pred_check_branch
      %19 = sbr.rel (0) target = $region13
    $region12: #{flood_gru_critic.1} parent=1 // pred_region
      %21 = vsyncadd [#allocation4], 0
      %s22 = sshll.u32 %s2, 4
      %s23 = int_to_ptr.hbm [resolvable:$true] %s22
      %s24 = sshll.u32 [#allocation3], 4
      %s25 = int_to_ptr.vmem [resolvable:$true] %s24
      %30 = dma.hbm_to_vmem [thread:$0]  %s23, 19584, %s25, [#allocation4], 384, 384, 24
    $region13: #{flood_gru_critic.1} parent=1 // pred_fallthru
      _
    // Predicated region
    $region14: #{flood_gru_critic.1} parent=1 // pred_check
      _
    $region15: #{flood_gru_critic.1} parent=1 // pred_check_branch
      %32 = sbr.rel (0) target = $region17
    $region16: #{flood_gru_critic.1} parent=1 // pred_region
      %34 = vsyncadd [#allocation7], 0
      %s35 = sshll.u32 %s3, 4
      %s36 = int_to_ptr.hbm [resolvable:$true] %s35
      %s37 = sshll.u32 [#allocation6], 4
      %s38 = int_to_ptr.vmem [resolvable:$true] %s37
      %43 = dma.hbm_to_vmem [thread:$0]  %s36, 8704, %s38, [#allocation7], 128, 128, 8
    $region17: #{flood_gru_critic.1} parent=1 // pred_fallthru
      _
    // Predicated region
    $region18: #{flood_gru_critic.1} parent=1 // pred_check
      _
    $region19: #{flood_gru_critic.1} parent=1 // pred_check_branch
      %45 = sbr.rel (0) target = $region21
    $region20: #{flood_gru_critic.1} parent=1 // pred_region
      %47 = dma.done [#allocation4], 19584
    $region21: #{flood_gru_critic.1} parent=1 // pred_fallthru
      _
    // Predicated region
    $region22: #{flood_gru_critic.1} parent=1 // pred_check
      _
    $region23: #{flood_gru_critic.1} parent=1 // pred_check_branch
      %49 = sbr.rel (0) target = $region25
    $region24: #{flood_gru_critic.1} parent=1 // pred_region
      %51 = dma.done [#allocation7], 8704
    $region25: #{flood_gru_critic.1} parent=1 // pred_fallthru
      _
    %v52 = vld [vmem:[%s0] sm:$0xff]
    %v53 = vld [vmem:[%s0 + $0x8] sm:$0xff]
    %v54 = vld [vmem:[#allocation3] sm:$0xff]
    %v55 = vld [vmem:[#allocation3 + $0x8] sm:$0xff]
    %v56 = vld [vmem:[#allocation3 + $0x10] sm:$0xff]
    %v57 = vld [vmem:[#allocation3 + $0x18] sm:$0xff]
    %v58 = vld [vmem:[#allocation3 + $0x20] sm:$0xff]
    %v59 = vld [vmem:[#allocation3 + $0x28] sm:$0xff]
    %s60 = scalar_lea.vmem [#allocation3], 1200
    %v61 = vld [vmem:[%s60] ss:$8 sm:$0x7]
    %v63 = vperm.slane %v61, 0
    %v64 = vperm.slane %v61, 1
    %v65 = vperm.slane %v61, 2
    %vm69 = vcmask 130048
    %v71 = vsel %vm69, %v52, 0
    %v74 = vsel %vm69, %v53, 0
    %76 = vmatpush.msra.mxu0 0.0
    %77 = vmatpush.msra.mxu0 0.0
    %78 = vmatpush.msra.mxu0 0.0
    %79 = vmatpush.msra.mxu0 0.0
    %80 = vmatpush.msra.mxu0 0.0
    %81 = vmatpush.msra.mxu0 0.0
    %82 = vmatpush.msra.mxu0 0.0
    %83 = vmatpush.msra.mxu0 0.0
    %84 = vmatpush.msra.mxu0 0.0
    %85 = vmatpush.msra.mxu0 0.0
    %86 = vmatpush.msra.mxu0 0.0
    %87 = vmatpush.msra.mxu0 0.0
    %88 = vmatpush.msra.mxu0 0.0
    %89 = vmatpush.msra.mxu0 0.0
    %90 = vmatpush.msra.mxu0 %v57
    %91 = vmatpush.msra.mxu0 %v54
    %92 = vmatmul.f32.gmra.mxu0 %v71
    %v93 = vpop.f32.mrf.mxu0
    %v94 = vadd.f32 %v63, %v93
    %95 = vmatmul.f32.gmra.mxu0 %v74
    %v96 = vpop.f32.mrf.mxu0
    %v97 = vadd.f32 %v63, %v96
    %98 = vdwg.mxu0
    %99 = vmatpush.msra.mxu0 0.0
    %100 = vmatpush.msra.mxu0 0.0
    %101 = vmatpush.msra.mxu0 0.0
    %102 = vmatpush.msra.mxu0 0.0
    %103 = vmatpush.msra.mxu0 0.0
    %104 = vmatpush.msra.mxu0 0.0
    %105 = vmatpush.msra.mxu0 0.0
    %106 = vmatpush.msra.mxu0 0.0
    %107 = vmatpush.msra.mxu0 0.0
    %108 = vmatpush.msra.mxu0 0.0
    %109 = vmatpush.msra.mxu0 0.0
    %110 = vmatpush.msra.mxu0 0.0
    %111 = vmatpush.msra.mxu0 0.0
    %112 = vmatpush.msra.mxu0 0.0
    %113 = vmatpush.msra.mxu0 %v58
    %114 = vmatpush.msra.mxu0 %v55
    %115 = vmatmul.f32.gmra.mxu0 %v71
    %v116 = vpop.f32.mrf.mxu0
    %v117 = vadd.f32 %v64, %v116
    %118 = vmatmul.f32.gmra.mxu0 %v74
    %v119 = vpop.f32.mrf.mxu0
    %v120 = vadd.f32 %v64, %v119
    %121 = vdwg.mxu0
    %122 = vmatpush.msra.mxu0 0.0
    %123 = vmatpush.msra.mxu0 0.0
    %124 = vmatpush.msra.mxu0 0.0
    %125 = vmatpush.msra.mxu0 0.0
    %126 = vmatpush.msra.mxu0 0.0
    %127 = vmatpush.msra.mxu0 0.0
    %128 = vmatpush.msra.mxu0 0.0
    %129 = vmatpush.msra.mxu0 0.0
    %130 = vmatpush.msra.mxu0 0.0
    %131 = vmatpush.msra.mxu0 0.0
    %132 = vmatpush.msra.mxu0 0.0
    %133 = vmatpush.msra.mxu0 0.0
    %134 = vmatpush.msra.mxu0 0.0
    %135 = vmatpush.msra.mxu0 0.0
    %136 = vmatpush.msra.mxu0 %v59
    %137 = vmatpush.msra.mxu0 %v56
    %138 = vmatmul.f32.gmra.mxu0 %v71
    %v139 = vpop.f32.mrf.mxu0
    %v140 = vadd.f32 %v65, %v139
    %141 = vmatmul.f32.gmra.mxu0 %v74
    %v142 = vpop.f32.mrf.mxu0
    %v143 = vadd.f32 %v65, %v142
    %144 = vdwg.mxu0
    %s145 = scalar_lea.vmem [#allocation3], 1201
    %v146 = vld [vmem:[%s145] ss:$8 sm:$0x7]
    %v148 = vperm.slane %v146, 0
    %v149 = vperm.slane %v146, 1
    %v150 = vperm.slane %v146, 2
    %s154 = scalar_lea.vmem [#allocation3], 1202
    %v155 = vld [vmem:[%s154] ss:$8 sm:$0x7]
    %v157 = vperm.slane %v155, 0
    %v158 = vperm.slane %v155, 1
    %v159 = vperm.slane %v155, 2
    %v163 = vld [vmem:[#allocation3 + $0x4b3] ss:$0 sm:$0xff]
    %v164 = vld [vmem:[#allocation3 + $0x30] sm:$0xff]
    %v165 = vld [vmem:[#allocation3 + $0x38] sm:$0xff]
    %v166 = vld [vmem:[#allocation3 + $0x40] sm:$0xff]
    %v167 = vld [vmem:[#allocation3 + $0x48] sm:$0xff]
    %v168 = vld [vmem:[#allocation3 + $0x50] sm:$0xff]
    %v169 = vld [vmem:[#allocation3 + $0x58] sm:$0xff]
    %v170 = vld [vmem:[#allocation3 + $0x60] sm:$0xff]
    %v171 = vld [vmem:[#allocation3 + $0x68] sm:$0xff]
    %v172 = vld [vmem:[#allocation3 + $0x70] sm:$0xff]
    %v173 = vld [vmem:[#allocation3 + $0x78] sm:$0xff]
    %v174 = vld [vmem:[#allocation3 + $0x80] sm:$0xff]
    %v175 = vld [vmem:[#allocation3 + $0x88] sm:$0xff]
    %v176 = vld [vmem:[#allocation3 + $0x90] sm:$0xff]
    %v177 = vld [vmem:[#allocation3 + $0x98] sm:$0xff]
    %v178 = vld [vmem:[#allocation3 + $0xa0] sm:$0xff]
    %v179 = vld [vmem:[#allocation3 + $0xa8] sm:$0xff]
    %v180 = vld [vmem:[#allocation3 + $0xb0] sm:$0xff]
    %v181 = vld [vmem:[#allocation3 + $0xb8] sm:$0xff]
    %v182 = vld [vmem:[#allocation3 + $0xc0] sm:$0xff]
    %v183 = vld [vmem:[#allocation3 + $0xc8] sm:$0xff]
    %v184 = vld [vmem:[#allocation3 + $0xd0] sm:$0xff]
    %v185 = vld [vmem:[#allocation3 + $0xd8] sm:$0xff]
    %v186 = vld [vmem:[#allocation3 + $0xe0] sm:$0xff]
    %v187 = vld [vmem:[#allocation3 + $0xe8] sm:$0xff]
    %v188 = vld [vmem:[#allocation3 + $0xf0] sm:$0xff]
    %v189 = vld [vmem:[#allocation3 + $0xf8] sm:$0xff]
    %v190 = vld [vmem:[#allocation3 + $0x100] sm:$0xff]
    %v191 = vld [vmem:[#allocation3 + $0x108] sm:$0xff]
    %v192 = vld [vmem:[#allocation3 + $0x110] sm:$0xff]
    %v193 = vld [vmem:[#allocation3 + $0x118] sm:$0xff]
    %v194 = vld [vmem:[#allocation3 + $0x120] sm:$0xff]
    %v195 = vld [vmem:[#allocation3 + $0x128] sm:$0xff]
    %v196 = vld [vmem:[#allocation3 + $0x130] sm:$0xff]
    %v197 = vld [vmem:[#allocation3 + $0x138] sm:$0xff]
    %v198 = vld [vmem:[#allocation3 + $0x140] sm:$0xff]
    %v199 = vld [vmem:[#allocation3 + $0x148] sm:$0xff]
    %v200 = vld [vmem:[#allocation3 + $0x150] sm:$0xff]
    %v201 = vld [vmem:[#allocation3 + $0x158] sm:$0xff]
    %v202 = vld [vmem:[#allocation3 + $0x160] sm:$0xff]
    %v203 = vld [vmem:[#allocation3 + $0x168] sm:$0xff]
    %v204 = vld [vmem:[#allocation3 + $0x170] sm:$0xff]
    %v205 = vld [vmem:[#allocation3 + $0x178] sm:$0xff]
    %v206 = vld [vmem:[#allocation3 + $0x180] sm:$0xff]
    %v207 = vld [vmem:[#allocation3 + $0x188] sm:$0xff]
    %v208 = vld [vmem:[#allocation3 + $0x190] sm:$0xff]
    %v209 = vld [vmem:[#allocation3 + $0x198] sm:$0xff]
    %v210 = vld [vmem:[#allocation3 + $0x1a0] sm:$0xff]
    %v211 = vld [vmem:[#allocation3 + $0x1a8] sm:$0xff]
    %212 = vmatpush.msra.mxu0 %v209
    %213 = vmatpush.msra.mxu0 %v206
    %214 = vmatpush.msra.mxu0 %v203
    %215 = vmatpush.msra.mxu0 %v200
    %216 = vmatpush.msra.mxu0 %v197
    %217 = vmatpush.msra.mxu0 %v194
    %218 = vmatpush.msra.mxu0 %v191
    %219 = vmatpush.msra.mxu0 %v188
    %220 = vmatpush.msra.mxu0 %v185
    %221 = vmatpush.msra.mxu0 %v182
    %222 = vmatpush.msra.mxu0 %v179
    %223 = vmatpush.msra.mxu0 %v176
    %224 = vmatpush.msra.mxu0 %v173
    %225 = vmatpush.msra.mxu0 %v170
    %226 = vmatpush.msra.mxu0 %v167
    %227 = vmatpush.msra.mxu0 %v164
    %228 = vmatmul.f32.gmra.mxu0 0.0
    %v229 = vpop.f32.mrf.mxu0
    %v230 = vadd.f32 %v148, %v229
    %231 = vdwg.mxu0
    %232 = vmatpush.msra.mxu0 %v210
    %233 = vmatpush.msra.mxu0 %v207
    %234 = vmatpush.msra.mxu0 %v204
    %235 = vmatpush.msra.mxu0 %v201
    %236 = vmatpush.msra.mxu0 %v198
    %237 = vmatpush.msra.mxu0 %v195
    %238 = vmatpush.msra.mxu0 %v192
    %239 = vmatpush.msra.mxu0 %v189
    %240 = vmatpush.msra.mxu0 %v186
    %241 = vmatpush.msra.mxu0 %v183
    %242 = vmatpush.msra.mxu0 %v180
    %243 = vmatpush.msra.mxu0 %v177
    %244 = vmatpush.msra.mxu0 %v174
    %245 = vmatpush.msra.mxu0 %v171
    %246 = vmatpush.msra.mxu0 %v168
    %247 = vmatpush.msra.mxu0 %v165
    %248 = vmatmul.f32.gmra.mxu0 0.0
    %v249 = vpop.f32.mrf.mxu0
    %v250 = vadd.f32 %v149, %v249
    %251 = vdwg.mxu0
    %252 = vmatpush.msra.mxu0 %v211
    %253 = vmatpush.msra.mxu0 %v208
    %254 = vmatpush.msra.mxu0 %v205
    %255 = vmatpush.msra.mxu0 %v202
    %256 = vmatpush.msra.mxu0 %v199
    %257 = vmatpush.msra.mxu0 %v196
    %258 = vmatpush.msra.mxu0 %v193
    %259 = vmatpush.msra.mxu0 %v190
    %260 = vmatpush.msra.mxu0 %v187
    %261 = vmatpush.msra.mxu0 %v184
    %262 = vmatpush.msra.mxu0 %v181
    %263 = vmatpush.msra.mxu0 %v178
    %264 = vmatpush.msra.mxu0 %v175
    %265 = vmatpush.msra.mxu0 %v172
    %266 = vmatpush.msra.mxu0 %v169
    %267 = vmatpush.msra.mxu0 %v166
    %268 = vmatmul.f32.gmra.mxu0 0.0
    %v269 = vpop.f32.mrf.mxu0
    %v270 = vadd.f32 %v150, %v269
    %271 = vdwg.mxu0
    %v272 = vadd.f32 %v94, %v230
    %v273 = vadd.f32 %v117, %v250
    %v274 = vxor.u32 %v272, 2147483648
    %v275 = vxor.u32 %v273, 2147483648
    %v276 = vmul.f32 %v274, 1.442695
    %v277 = vpow.pop %v276
    %v278 = vmul.f32 %v275, 1.442695
    %v279 = vpow.pop %v278
    %v280 = vadd.f32 %v277, 1.0
    %v281 = vadd.f32 %v279, 1.0
    %v282 = vrcp.pop %v280
    %v283 = vmul.f32 %v280, %v282
    %v284 = vsub.f32 1.0, %v283
    %v285 = vmul.f32 %v282, %v284
    %v286 = vadd.f32 %v282, %v285
    %vm287 = vweird.f32 %v280
    %vm288 = vweird.f32 %v282
    %vm289 = vmor %vm287, %vm288
    %v290 = vsel %vm289, %v282, %v286
    %v291 = vand.u32 2147483647, %v280
    %vm292 = vcmp.eq.f32.partialorder %v291, 8.507059e+37
    %v293 = vand.u32 %v280, 2147483648
    %v294 = vor.u32 1.1754944e-38, %v293
    %v295 = vsel %vm292, %v294, %v290
    %v296 = vmul.f32 1.0, %v295
    %v297 = vrcp.pop %v281
    %v298 = vmul.f32 %v281, %v297
    %v299 = vsub.f32 1.0, %v298
    %v300 = vmul.f32 %v297, %v299
    %v301 = vadd.f32 %v297, %v300
    %vm302 = vweird.f32 %v281
    %vm303 = vweird.f32 %v297
    %vm304 = vmor %vm302, %vm303
    %v305 = vsel %vm304, %v297, %v301
    %v306 = vand.u32 2147483647, %v281
    %vm307 = vcmp.eq.f32.partialorder %v306, 8.507059e+37
    %v308 = vand.u32 %v281, 2147483648
    %v309 = vor.u32 1.1754944e-38, %v308
    %v310 = vsel %vm307, %v309, %v305
    %v311 = vmul.f32 1.0, %v310
    %v312 = vmul.f32 %v296, %v270
    %v313 = vadd.f32 %v140, %v312
    %v314 = vtanh.pop %v313
    %v315 = vsub.f32 1.0, %v311
    %v316 = vmul.f32 %v315, %v314
    %v317 = vmul.f32 %v311, 0.0
    %v318 = vadd.f32 %v316, %v317
    %v319 = vld [vmem:[#allocation6] sm:$0xff]
    %v320 = vld [vmem:[#allocation6 + $0x8] sm:$0xff]
    %v321 = vld [vmem:[#allocation6 + $0x10] sm:$0xff]
    %v322 = vld [vmem:[#allocation6 + $0x18] sm:$0xff]
    %v323 = vld [vmem:[#allocation6 + $0x20] sm:$0xff]
    %v324 = vld [vmem:[#allocation6 + $0x28] sm:$0xff]
    %v325 = vld [vmem:[#allocation6 + $0x30] sm:$0xff]
    %v326 = vld [vmem:[#allocation6 + $0x38] sm:$0xff]
    %v327 = vld [vmem:[#allocation6 + $0x40] sm:$0xff]
    %v328 = vld [vmem:[#allocation6 + $0x48] sm:$0xff]
    %v329 = vld [vmem:[#allocation6 + $0x50] sm:$0xff]
    %v330 = vld [vmem:[#allocation6 + $0x58] sm:$0xff]
    %v331 = vld [vmem:[#allocation6 + $0x60] sm:$0xff]
    %v332 = vld [vmem:[#allocation6 + $0x68] sm:$0xff]
    %v333 = vld [vmem:[#allocation6 + $0x70] sm:$0xff]
    %v334 = vld [vmem:[#allocation6 + $0x78] sm:$0xff]
    %335 = vmatpush.msra.mxu0 %v334
    %336 = vmatpush.msra.mxu0 %v333
    %337 = vmatpush.msra.mxu0 %v332
    %338 = vmatpush.msra.mxu0 %v331
    %339 = vmatpush.msra.mxu0 %v330
    %340 = vmatpush.msra.mxu0 %v329
    %341 = vmatpush.msra.mxu0 %v328
    %342 = vmatpush.msra.mxu0 %v327
    %343 = vmatpush.msra.mxu0 %v326
    %344 = vmatpush.msra.mxu0 %v325
    %345 = vmatpush.msra.mxu0 %v324
    %346 = vmatpush.msra.mxu0 %v323
    %347 = vmatpush.msra.mxu0 %v322
    %348 = vmatpush.msra.mxu0 %v321
    %349 = vmatpush.msra.mxu0 %v320
    %350 = vmatpush.msra.mxu0 %v319
    %351 = vmatmul.f32.gmra.mxu0 %v318
    %v352 = vpop.f32.mrf.mxu0
    %v353 = vadd.f32 %v163, %v352
    %354 = vdwg.mxu0
    %v355 = vld [vmem:[#allocation3 + $0x1b0] sm:$0xff]
    %v356 = vld [vmem:[#allocation3 + $0x1b8] sm:$0xff]
    %v357 = vld [vmem:[#allocation3 + $0x1c0] sm:$0xff]
    %v358 = vld [vmem:[#allocation3 + $0x1c8] sm:$0xff]
    %v359 = vld [vmem:[#allocation3 + $0x1d0] sm:$0xff]
    %v360 = vld [vmem:[#allocation3 + $0x1d8] sm:$0xff]
    %v361 = vld [vmem:[#allocation3 + $0x1e0] sm:$0xff]
    %v362 = vld [vmem:[#allocation3 + $0x1e8] sm:$0xff]
    %v363 = vld [vmem:[#allocation3 + $0x1f0] sm:$0xff]
    %v364 = vld [vmem:[#allocation3 + $0x1f8] sm:$0xff]
    %v365 = vld [vmem:[#allocation3 + $0x200] sm:$0xff]
    %v366 = vld [vmem:[#allocation3 + $0x208] sm:$0xff]
    %v367 = vld [vmem:[#allocation3 + $0x210] sm:$0xff]
    %v368 = vld [vmem:[#allocation3 + $0x218] sm:$0xff]
    %v369 = vld [vmem:[#allocation3 + $0x220] sm:$0xff]
    %v370 = vld [vmem:[#allocation3 + $0x228] sm:$0xff]
    %v371 = vld [vmem:[#allocation3 + $0x230] sm:$0xff]
    %v372 = vld [vmem:[#allocation3 + $0x238] sm:$0xff]
    %v373 = vld [vmem:[#allocation3 + $0x240] sm:$0xff]
    %v374 = vld [vmem:[#allocation3 + $0x248] sm:$0xff]
    %v375 = vld [vmem:[#allocation3 + $0x250] sm:$0xff]
    %v376 = vld [vmem:[#allocation3 + $0x258] sm:$0xff]
    %v377 = vld [vmem:[#allocation3 + $0x260] sm:$0xff]
    %v378 = vld [vmem:[#allocation3 + $0x268] sm:$0xff]
    %v379 = vld [vmem:[#allocation3 + $0x270] sm:$0xff]
    %v380 = vld [vmem:[#allocation3 + $0x278] sm:$0xff]
    %v381 = vld [vmem:[#allocation3 + $0x280] sm:$0xff]
    %v382 = vld [vmem:[#allocation3 + $0x288] sm:$0xff]
    %v383 = vld [vmem:[#allocation3 + $0x290] sm:$0xff]
    %v384 = vld [vmem:[#allocation3 + $0x298] sm:$0xff]
    %v385 = vld [vmem:[#allocation3 + $0x2a0] sm:$0xff]
    %v386 = vld [vmem:[#allocation3 + $0x2a8] sm:$0xff]
    %v387 = vld [vmem:[#allocation3 + $0x2b0] sm:$0xff]
    %v388 = vld [vmem:[#allocation3 + $0x2b8] sm:$0xff]
    %v389 = vld [vmem:[#allocation3 + $0x2c0] sm:$0xff]
    %v390 = vld [vmem:[#allocation3 + $0x2c8] sm:$0xff]
    %v391 = vld [vmem:[#allocation3 + $0x2d0] sm:$0xff]
    %v392 = vld [vmem:[#allocation3 + $0x2d8] sm:$0xff]
    %v393 = vld [vmem:[#allocation3 + $0x2e0] sm:$0xff]
    %v394 = vld [vmem:[#allocation3 + $0x2e8] sm:$0xff]
    %v395 = vld [vmem:[#allocation3 + $0x2f0] sm:$0xff]
    %v396 = vld [vmem:[#allocation3 + $0x2f8] sm:$0xff]
    %v397 = vld [vmem:[#allocation3 + $0x300] sm:$0xff]
    %v398 = vld [vmem:[#allocation3 + $0x308] sm:$0xff]
    %v399 = vld [vmem:[#allocation3 + $0x310] sm:$0xff]
    %v400 = vld [vmem:[#allocation3 + $0x318] sm:$0xff]
    %v401 = vld [vmem:[#allocation3 + $0x320] sm:$0xff]
    %v402 = vld [vmem:[#allocation3 + $0x328] sm:$0xff]
    %v403 = vld [vmem:[#allocation3 + $0x330] sm:$0xff]
    %v404 = vld [vmem:[#allocation3 + $0x338] sm:$0xff]
    %v405 = vld [vmem:[#allocation3 + $0x340] sm:$0xff]
    %v406 = vld [vmem:[#allocation3 + $0x348] sm:$0xff]
    %v407 = vld [vmem:[#allocation3 + $0x350] sm:$0xff]
    %v408 = vld [vmem:[#allocation3 + $0x358] sm:$0xff]
    %v409 = vld [vmem:[#allocation3 + $0x360] sm:$0xff]
    %v410 = vld [vmem:[#allocation3 + $0x368] sm:$0xff]
    %v411 = vld [vmem:[#allocation3 + $0x370] sm:$0xff]
    %v412 = vld [vmem:[#allocation3 + $0x378] sm:$0xff]
    %v413 = vld [vmem:[#allocation3 + $0x380] sm:$0xff]
    %v414 = vld [vmem:[#allocation3 + $0x388] sm:$0xff]
    %v415 = vld [vmem:[#allocation3 + $0x390] sm:$0xff]
    %v416 = vld [vmem:[#allocation3 + $0x398] sm:$0xff]
    %v417 = vld [vmem:[#allocation3 + $0x3a0] sm:$0xff]
    %v418 = vld [vmem:[#allocation3 + $0x3a8] sm:$0xff]
    %v419 = vld [vmem:[#allocation3 + $0x3b0] sm:$0xff]
    %v420 = vld [vmem:[#allocation3 + $0x3b8] sm:$0xff]
    %v421 = vld [vmem:[#allocation3 + $0x3c0] sm:$0xff]
    %v422 = vld [vmem:[#allocation3 + $0x3c8] sm:$0xff]
    %v423 = vld [vmem:[#allocation3 + $0x3d0] sm:$0xff]
    %v424 = vld [vmem:[#allocation3 + $0x3d8] sm:$0xff]
    %v425 = vld [vmem:[#allocation3 + $0x3e0] sm:$0xff]
    %v426 = vld [vmem:[#allocation3 + $0x3e8] sm:$0xff]
    %v427 = vld [vmem:[#allocation3 + $0x3f0] sm:$0xff]
    %v428 = vld [vmem:[#allocation3 + $0x3f8] sm:$0xff]
    %v429 = vld [vmem:[#allocation3 + $0x400] sm:$0xff]
    %v430 = vld [vmem:[#allocation3 + $0x408] sm:$0xff]
    %v431 = vld [vmem:[#allocation3 + $0x410] sm:$0xff]
    %v432 = vld [vmem:[#allocation3 + $0x418] sm:$0xff]
    %v433 = vld [vmem:[#allocation3 + $0x420] sm:$0xff]
    %v434 = vld [vmem:[#allocation3 + $0x428] sm:$0xff]
    %v435 = vld [vmem:[#allocation3 + $0x430] sm:$0xff]
    %v436 = vld [vmem:[#allocation3 + $0x438] sm:$0xff]
    %v437 = vld [vmem:[#allocation3 + $0x440] sm:$0xff]
    %v438 = vld [vmem:[#allocation3 + $0x448] sm:$0xff]
    %v439 = vld [vmem:[#allocation3 + $0x450] sm:$0xff]
    %v440 = vld [vmem:[#allocation3 + $0x458] sm:$0xff]
    %v441 = vld [vmem:[#allocation3 + $0x460] sm:$0xff]
    %v442 = vld [vmem:[#allocation3 + $0x468] sm:$0xff]
    %v443 = vld [vmem:[#allocation3 + $0x470] sm:$0xff]
    %v444 = vld [vmem:[#allocation3 + $0x478] sm:$0xff]
    %v445 = vld [vmem:[#allocation3 + $0x480] sm:$0xff]
    %v446 = vld [vmem:[#allocation3 + $0x488] sm:$0xff]
    %v447 = vld [vmem:[#allocation3 + $0x490] sm:$0xff]
    %v448 = vld [vmem:[#allocation3 + $0x498] sm:$0xff]
    %v449 = vld [vmem:[#allocation3 + $0x4a0] sm:$0xff]
    %v450 = vld [vmem:[#allocation3 + $0x4a8] sm:$0xff]
    %451 = vmatpush.msra.mxu0 %v400
    %452 = vmatpush.msra.mxu0 %v397
    %453 = vmatpush.msra.mxu0 %v394
    %454 = vmatpush.msra.mxu0 %v391
    %455 = vmatpush.msra.mxu0 %v388
    %456 = vmatpush.msra.mxu0 %v385
    %457 = vmatpush.msra.mxu0 %v382
    %458 = vmatpush.msra.mxu0 %v379
    %459 = vmatpush.msra.mxu0 %v376
    %460 = vmatpush.msra.mxu0 %v373
    %461 = vmatpush.msra.mxu0 %v370
    %462 = vmatpush.msra.mxu0 %v367
    %463 = vmatpush.msra.mxu0 %v364
    %464 = vmatpush.msra.mxu0 %v361
    %465 = vmatpush.msra.mxu0 %v358
    %466 = vmatpush.msra.mxu0 %v355
    %467 = vmatmul.f32.gmra.mxu0 %v318
    %v468 = vpop.f32.mrf.mxu0
    %v469 = vadd.f32 %v157, %v468
    %470 = vdwg.mxu0
    %471 = vmatpush.msra.mxu0 %v448
    %472 = vmatpush.msra.mxu0 %v445
    %473 = vmatpush.msra.mxu0 %v442
    %474 = vmatpush.msra.mxu0 %v439
    %475 = vmatpush.msra.mxu0 %v436
    %476 = vmatpush.msra.mxu0 %v433
    %477 = vmatpush.msra.mxu0 %v430
    %478 = vmatpush.msra.mxu0 %v427
    %479 = vmatpush.msra.mxu0 %v424
    %480 = vmatpush.msra.mxu0 %v421
    %481 = vmatpush.msra.mxu0 %v418
    %482 = vmatpush.msra.mxu0 %v415
    %483 = vmatpush.msra.mxu0 %v412
    %484 = vmatpush.msra.mxu0 %v409
    %485 = vmatpush.msra.mxu0 %v406
    %486 = vmatpush.msra.mxu0 %v403
    %487 = vmatmul.f32.gmra.mxu0 0.0
    %v488 = vpop.f32.mrf.mxu0
    %v489 = vadd.f32 %v469, %v488
    %490 = vdwg.mxu0
    %491 = vmatpush.msra.mxu0 %v401
    %492 = vmatpush.msra.mxu0 %v398
    %493 = vmatpush.msra.mxu0 %v395
    %494 = vmatpush.msra.mxu0 %v392
    %495 = vmatpush.msra.mxu0 %v389
    %496 = vmatpush.msra.mxu0 %v386
    %497 = vmatpush.msra.mxu0 %v383
    %498 = vmatpush.msra.mxu0 %v380
    %499 = vmatpush.msra.mxu0 %v377
    %500 = vmatpush.msra.mxu0 %v374
    %501 = vmatpush.msra.mxu0 %v371
    %502 = vmatpush.msra.mxu0 %v368
    %503 = vmatpush.msra.mxu0 %v365
    %504 = vmatpush.msra.mxu0 %v362
    %505 = vmatpush.msra.mxu0 %v359
    %506 = vmatpush.msra.mxu0 %v356
    %507 = vmatmul.f32.gmra.mxu0 %v318
    %v508 = vpop.f32.mrf.mxu0
    %v509 = vadd.f32 %v158, %v508
    %510 = vdwg.mxu0
    %511 = vmatpush.msra.mxu0 %v449
    %512 = vmatpush.msra.mxu0 %v446
    %513 = vmatpush.msra.mxu0 %v443
    %514 = vmatpush.msra.mxu0 %v440
    %515 = vmatpush.msra.mxu0 %v437
    %516 = vmatpush.msra.mxu0 %v434
    %517 = vmatpush.msra.mxu0 %v431
    %518 = vmatpush.msra.mxu0 %v428
    %519 = vmatpush.msra.mxu0 %v425
    %520 = vmatpush.msra.mxu0 %v422
    %521 = vmatpush.msra.mxu0 %v419
    %522 = vmatpush.msra.mxu0 %v416
    %523 = vmatpush.msra.mxu0 %v413
    %524 = vmatpush.msra.mxu0 %v410
    %525 = vmatpush.msra.mxu0 %v407
    %526 = vmatpush.msra.mxu0 %v404
    %527 = vmatmul.f32.gmra.mxu0 0.0
    %v528 = vpop.f32.mrf.mxu0
    %v529 = vadd.f32 %v509, %v528
    %530 = vdwg.mxu0
    %531 = vmatpush.msra.mxu0 %v402
    %532 = vmatpush.msra.mxu0 %v399
    %533 = vmatpush.msra.mxu0 %v396
    %534 = vmatpush.msra.mxu0 %v393
    %535 = vmatpush.msra.mxu0 %v390
    %536 = vmatpush.msra.mxu0 %v387
    %537 = vmatpush.msra.mxu0 %v384
    %538 = vmatpush.msra.mxu0 %v381
    %539 = vmatpush.msra.mxu0 %v378
    %540 = vmatpush.msra.mxu0 %v375
    %541 = vmatpush.msra.mxu0 %v372
    %542 = vmatpush.msra.mxu0 %v369
    %543 = vmatpush.msra.mxu0 %v366
    %544 = vmatpush.msra.mxu0 %v363
    %545 = vmatpush.msra.mxu0 %v360
    %546 = vmatpush.msra.mxu0 %v357
    %547 = vmatmul.f32.gmra.mxu0 %v318
    %v548 = vpop.f32.mrf.mxu0
    %v549 = vadd.f32 %v159, %v548
    %550 = vdwg.mxu0
    %551 = vmatpush.msra.mxu0 %v450
    %552 = vmatpush.msra.mxu0 %v447
    %553 = vmatpush.msra.mxu0 %v444
    %554 = vmatpush.msra.mxu0 %v441
    %555 = vmatpush.msra.mxu0 %v438
    %556 = vmatpush.msra.mxu0 %v435
    %557 = vmatpush.msra.mxu0 %v432
    %558 = vmatpush.msra.mxu0 %v429
    %559 = vmatpush.msra.mxu0 %v426
    %560 = vmatpush.msra.mxu0 %v423
    %561 = vmatpush.msra.mxu0 %v420
    %562 = vmatpush.msra.mxu0 %v417
    %563 = vmatpush.msra.mxu0 %v414
    %564 = vmatpush.msra.mxu0 %v411
    %565 = vmatpush.msra.mxu0 %v408
    %566 = vmatpush.msra.mxu0 %v405
    %567 = vmatmul.f32.gmra.mxu0 0.0
    %v568 = vpop.f32.mrf.mxu0
    %v569 = vadd.f32 %v549, %v568
    %570 = vdwg.mxu0
    %v571 = vxor.u32 %v489, 2147483648
    %v572 = vxor.u32 %v529, 2147483648
    %v573 = vmul.f32 %v571, 1.442695
    %v574 = vpow.pop %v573
    %v575 = vmul.f32 %v572, 1.442695
    %v576 = vpow.pop %v575
    %v577 = vadd.f32 %v574, 1.0
    %v578 = vadd.f32 %v576, 1.0
    %v579 = vrcp.pop %v577
    %v580 = vmul.f32 %v577, %v579
    %v581 = vsub.f32 1.0, %v580
    %v582 = vmul.f32 %v579, %v581
    %v583 = vadd.f32 %v579, %v582
    %vm584 = vweird.f32 %v577
    %vm585 = vweird.f32 %v579
    %vm586 = vmor %vm584, %vm585
    %v587 = vsel %vm586, %v579, %v583
    %v588 = vand.u32 2147483647, %v577
    %vm589 = vcmp.eq.f32.partialorder %v588, 8.507059e+37
    %v590 = vand.u32 %v577, 2147483648
    %v591 = vor.u32 1.1754944e-38, %v590
    %v592 = vsel %vm589, %v591, %v587
    %v593 = vmul.f32 1.0, %v592
    %v594 = vrcp.pop %v578
    %v595 = vmul.f32 %v578, %v594
    %v596 = vsub.f32 1.0, %v595
    %v597 = vmul.f32 %v594, %v596
    %v598 = vadd.f32 %v594, %v597
    %vm599 = vweird.f32 %v578
    %vm600 = vweird.f32 %v594
    %vm601 = vmor %vm599, %vm600
    %v602 = vsel %vm601, %v594, %v598
    %v603 = vand.u32 2147483647, %v578
    %vm604 = vcmp.eq.f32.partialorder %v603, 8.507059e+37
    %v605 = vand.u32 %v578, 2147483648
    %v606 = vor.u32 1.1754944e-38, %v605
    %v607 = vsel %vm604, %v606, %v602
    %v608 = vmul.f32 1.0, %v607
    %v609 = vmul.f32 %v593, %v569
    %v610 = vadd.f32 %v353, %v609
    %v611 = vtanh.pop %v610
    %v612 = vsub.f32 1.0, %v608
    %v613 = vmul.f32 %v612, %v611
    %v614 = vmul.f32 %v608, 0.0
    %v615 = vadd.f32 %v613, %v614
    %616 = vst [vmem:[#allocation2] sm:$0x3] %v615
    %v617 = vld [vmem:[#allocation3 + $0x30] sm:$0xff]
    %v618 = vld [vmem:[#allocation3 + $0x38] sm:$0xff]
    %v619 = vld [vmem:[#allocation3 + $0x40] sm:$0xff]
    %v620 = vld [vmem:[#allocation3 + $0x48] sm:$0xff]
    %v621 = vld [vmem:[#allocation3 + $0x50] sm:$0xff]
    %v622 = vld [vmem:[#allocation3 + $0x58] sm:$0xff]
    %v623 = vld [vmem:[#allocation3 + $0x60] sm:$0xff]
    %v624 = vld [vmem:[#allocation3 + $0x68] sm:$0xff]
    %v625 = vld [vmem:[#allocation3 + $0x70] sm:$0xff]
    %v626 = vld [vmem:[#allocation3 + $0x78] sm:$0xff]
    %v627 = vld [vmem:[#allocation3 + $0x80] sm:$0xff]
    %v628 = vld [vmem:[#allocation3 + $0x88] sm:$0xff]
    %v629 = vld [vmem:[#allocation3 + $0x90] sm:$0xff]
    %v630 = vld [vmem:[#allocation3 + $0x98] sm:$0xff]
    %v631 = vld [vmem:[#allocation3 + $0xa0] sm:$0xff]
    %v632 = vld [vmem:[#allocation3 + $0xa8] sm:$0xff]
    %v633 = vld [vmem:[#allocation3 + $0xb0] sm:$0xff]
    %v634 = vld [vmem:[#allocation3 + $0xb8] sm:$0xff]
    %v635 = vld [vmem:[#allocation3 + $0xc0] sm:$0xff]
    %v636 = vld [vmem:[#allocation3 + $0xc8] sm:$0xff]
    %v637 = vld [vmem:[#allocation3 + $0xd0] sm:$0xff]
    %v638 = vld [vmem:[#allocation3 + $0xd8] sm:$0xff]
    %v639 = vld [vmem:[#allocation3 + $0xe0] sm:$0xff]
    %v640 = vld [vmem:[#allocation3 + $0xe8] sm:$0xff]
    %v641 = vld [vmem:[#allocation3 + $0xf0] sm:$0xff]
    %v642 = vld [vmem:[#allocation3 + $0xf8] sm:$0xff]
    %v643 = vld [vmem:[#allocation3 + $0x100] sm:$0xff]
    %v644 = vld [vmem:[#allocation3 + $0x108] sm:$0xff]
    %v645 = vld [vmem:[#allocation3 + $0x110] sm:$0xff]
    %v646 = vld [vmem:[#allocation3 + $0x118] sm:$0xff]
    %v647 = vld [vmem:[#allocation3 + $0x120] sm:$0xff]
    %v648 = vld [vmem:[#allocation3 + $0x128] sm:$0xff]
    %v649 = vld [vmem:[#allocation3 + $0x130] sm:$0xff]
    %v650 = vld [vmem:[#allocation3 + $0x138] sm:$0xff]
    %v651 = vld [vmem:[#allocation3 + $0x140] sm:$0xff]
    %v652 = vld [vmem:[#allocation3 + $0x148] sm:$0xff]
    %v653 = vld [vmem:[#allocation3 + $0x150] sm:$0xff]
    %v654 = vld [vmem:[#allocation3 + $0x158] sm:$0xff]
    %v655 = vld [vmem:[#allocation3 + $0x160] sm:$0xff]
    %v656 = vld [vmem:[#allocation3 + $0x168] sm:$0xff]
    %v657 = vld [vmem:[#allocation3 + $0x170] sm:$0xff]
    %v658 = vld [vmem:[#allocation3 + $0x178] sm:$0xff]
    %v659 = vld [vmem:[#allocation3 + $0x180] sm:$0xff]
    %v660 = vld [vmem:[#allocation3 + $0x188] sm:$0xff]
    %v661 = vld [vmem:[#allocation3 + $0x190] sm:$0xff]
    %v662 = vld [vmem:[#allocation3 + $0x198] sm:$0xff]
    %v663 = vld [vmem:[#allocation3 + $0x1a0] sm:$0xff]
    %v664 = vld [vmem:[#allocation3 + $0x1a8] sm:$0xff]
    %665 = vmatpush.msra.mxu0 %v662
    %666 = vmatpush.msra.mxu0 %v659
    %667 = vmatpush.msra.mxu0 %v656
    %668 = vmatpush.msra.mxu0 %v653
    %669 = vmatpush.msra.mxu0 %v650
    %670 = vmatpush.msra.mxu0 %v647
    %671 = vmatpush.msra.mxu0 %v644
    %672 = vmatpush.msra.mxu0 %v641
    %673 = vmatpush.msra.mxu0 %v638
    %674 = vmatpush.msra.mxu0 %v635
    %675 = vmatpush.msra.mxu0 %v632
    %676 = vmatpush.msra.mxu0 %v629
    %677 = vmatpush.msra.mxu0 %v626
    %678 = vmatpush.msra.mxu0 %v623
    %679 = vmatpush.msra.mxu0 %v620
    %680 = vmatpush.msra.mxu0 %v617
    %681 = vmatmul.f32.gmra.mxu0 %v318
    %v682 = vpop.f32.mrf.mxu0
    %v683 = vadd.f32 %v148, %v682
    %684 = vdwg.mxu0
    %685 = vmatpush.msra.mxu0 %v663
    %686 = vmatpush.msra.mxu0 %v660
    %687 = vmatpush.msra.mxu0 %v657
    %688 = vmatpush.msra.mxu0 %v654
    %689 = vmatpush.msra.mxu0 %v651
    %690 = vmatpush.msra.mxu0 %v648
    %691 = vmatpush.msra.mxu0 %v645
    %692 = vmatpush.msra.mxu0 %v642
    %693 = vmatpush.msra.mxu0 %v639
    %694 = vmatpush.msra.mxu0 %v636
    %695 = vmatpush.msra.mxu0 %v633
    %696 = vmatpush.msra.mxu0 %v630
    %697 = vmatpush.msra.mxu0 %v627
    %698 = vmatpush.msra.mxu0 %v624
    %699 = vmatpush.msra.mxu0 %v621
    %700 = vmatpush.msra.mxu0 %v618
    %701 = vmatmul.f32.gmra.mxu0 %v318
    %v702 = vpop.f32.mrf.mxu0
    %v703 = vadd.f32 %v149, %v702
    %704 = vdwg.mxu0
    %705 = vmatpush.msra.mxu0 %v664
    %706 = vmatpush.msra.mxu0 %v661
    %707 = vmatpush.msra.mxu0 %v658
    %708 = vmatpush.msra.mxu0 %v655
    %709 = vmatpush.msra.mxu0 %v652
    %710 = vmatpush.msra.mxu0 %v649
    %711 = vmatpush.msra.mxu0 %v646
    %712 = vmatpush.msra.mxu0 %v643
    %713 = vmatpush.msra.mxu0 %v640
    %714 = vmatpush.msra.mxu0 %v637
    %715 = vmatpush.msra.mxu0 %v634
    %716 = vmatpush.msra.mxu0 %v631
    %717 = vmatpush.msra.mxu0 %v628
    %718 = vmatpush.msra.mxu0 %v625
    %719 = vmatpush.msra.mxu0 %v622
    %720 = vmatpush.msra.mxu0 %v619
    %721 = vmatmul.f32.gmra.mxu0 %v318
    %v722 = vpop.f32.mrf.mxu0
    %v723 = vadd.f32 %v150, %v722
    %724 = vdwg.mxu0
    %v727 = vrot.slane %v683, 6
    %v728 = vrot.slane %v703, 6
    %v731 = vadd.f32 %v94, %v727
    %v732 = vadd.f32 %v117, %v728
    %v733 = vxor.u32 %v731, 2147483648
    %v734 = vxor.u32 %v732, 2147483648
    %v735 = vmul.f32 %v733, 1.442695
    %v736 = vpow.pop %v735
    %v737 = vmul.f32 %v734, 1.442695
    %v738 = vpow.pop %v737
    %v739 = vadd.f32 %v736, 1.0
    %v740 = vadd.f32 %v738, 1.0
    %v741 = vrcp.pop %v739
    %v742 = vmul.f32 %v739, %v741
    %v743 = vsub.f32 1.0, %v742
    %v744 = vmul.f32 %v741, %v743
    %v745 = vadd.f32 %v741, %v744
    %vm746 = vweird.f32 %v739
    %vm747 = vweird.f32 %v741
    %vm748 = vmor %vm746, %vm747
    %v749 = vsel %vm748, %v741, %v745
    %v750 = vand.u32 2147483647, %v739
    %vm751 = vcmp.eq.f32.partialorder %v750, 8.507059e+37
    %v752 = vand.u32 %v739, 2147483648
    %v753 = vor.u32 1.1754944e-38, %v752
    %v754 = vsel %vm751, %v753, %v749
    %v755 = vmul.f32 1.0, %v754
    %v756 = vrcp.pop %v740
    %v757 = vmul.f32 %v740, %v756
    %v758 = vsub.f32 1.0, %v757
    %v759 = vmul.f32 %v756, %v758
    %v760 = vadd.f32 %v756, %v759
    %vm761 = vweird.f32 %v740
    %vm762 = vweird.f32 %v756
    %vm763 = vmor %vm761, %vm762
    %v764 = vsel %vm763, %v756, %v760
    %v765 = vand.u32 2147483647, %v740
    %vm766 = vcmp.eq.f32.partialorder %v765, 8.507059e+37
    %v767 = vand.u32 %v740, 2147483648
    %v768 = vor.u32 1.1754944e-38, %v767
    %v769 = vsel %vm766, %v768, %v764
    %v770 = vmul.f32 1.0, %v769
    %v772 = vrot.slane %v723, 6
    %v774 = vmul.f32 %v755, %v772
    %v775 = vadd.f32 %v140, %v774
    %v776 = vtanh.pop %v775
    %v777 = vsub.f32 1.0, %v770
    %v778 = vmul.f32 %v777, %v776
    %v780 = vrot.slane %v318, 6
    %v782 = vmul.f32 %v770, %v780
    %v783 = vadd.f32 %v778, %v782
    %v784 = vld [vmem:[#allocation6] sm:$0xff]
    %v785 = vld [vmem:[#allocation6 + $0x8] sm:$0xff]
    %v786 = vld [vmem:[#allocation6 + $0x10] sm:$0xff]
    %v787 = vld [vmem:[#allocation6 + $0x18] sm:$0xff]
    %v788 = vld [vmem:[#allocation6 + $0x20] sm:$0xff]
    %v789 = vld [vmem:[#allocation6 + $0x28] sm:$0xff]
    %v790 = vld [vmem:[#allocation6 + $0x30] sm:$0xff]
    %v791 = vld [vmem:[#allocation6 + $0x38] sm:$0xff]
    %v792 = vld [vmem:[#allocation6 + $0x40] sm:$0xff]
    %v793 = vld [vmem:[#allocation6 + $0x48] sm:$0xff]
    %v794 = vld [vmem:[#allocation6 + $0x50] sm:$0xff]
    %v795 = vld [vmem:[#allocation6 + $0x58] sm:$0xff]
    %v796 = vld [vmem:[#allocation6 + $0x60] sm:$0xff]
    %v797 = vld [vmem:[#allocation6 + $0x68] sm:$0xff]
    %v798 = vld [vmem:[#allocation6 + $0x70] sm:$0xff]
    %v799 = vld [vmem:[#allocation6 + $0x78] sm:$0xff]
    %v801 = vrot.slane %v783, 2
    %803 = vmatpush.msra.mxu0 %v799
    %804 = vmatpush.msra.mxu0 %v798
    %805 = vmatpush.msra.mxu0 %v797
    %806 = vmatpush.msra.mxu0 %v796
    %807 = vmatpush.msra.mxu0 %v795
    %808 = vmatpush.msra.mxu0 %v794
    %809 = vmatpush.msra.mxu0 %v793
    %810 = vmatpush.msra.mxu0 %v792
    %811 = vmatpush.msra.mxu0 %v791
    %812 = vmatpush.msra.mxu0 %v790
    %813 = vmatpush.msra.mxu0 %v789
    %814 = vmatpush.msra.mxu0 %v788
    %815 = vmatpush.msra.mxu0 %v787
    %816 = vmatpush.msra.mxu0 %v786
    %817 = vmatpush.msra.mxu0 %v785
    %818 = vmatpush.msra.mxu0 %v784
    %819 = vmatmul.f32.gmra.mxu0 %v801
    %v820 = vpop.f32.mrf.mxu0
    %v821 = vadd.f32 %v163, %v820
    %822 = vdwg.mxu0
    %v824 = vrot.slane %v615, 6
    %v825 = vld [vmem:[#allocation3 + $0x1b0] sm:$0xff]
    %v826 = vld [vmem:[#allocation3 + $0x1b8] sm:$0xff]
    %v827 = vld [vmem:[#allocation3 + $0x1c0] sm:$0xff]
    %v828 = vld [vmem:[#allocation3 + $0x1c8] sm:$0xff]
    %v829 = vld [vmem:[#allocation3 + $0x1d0] sm:$0xff]
    %v830 = vld [vmem:[#allocation3 + $0x1d8] sm:$0xff]
    %v831 = vld [vmem:[#allocation3 + $0x1e0] sm:$0xff]
    %v832 = vld [vmem:[#allocation3 + $0x1e8] sm:$0xff]
    %v833 = vld [vmem:[#allocation3 + $0x1f0] sm:$0xff]
    %v834 = vld [vmem:[#allocation3 + $0x1f8] sm:$0xff]
    %v835 = vld [vmem:[#allocation3 + $0x200] sm:$0xff]
    %v836 = vld [vmem:[#allocation3 + $0x208] sm:$0xff]
    %v837 = vld [vmem:[#allocation3 + $0x210] sm:$0xff]
    %v838 = vld [vmem:[#allocation3 + $0x218] sm:$0xff]
    %v839 = vld [vmem:[#allocation3 + $0x220] sm:$0xff]
    %v840 = vld [vmem:[#allocation3 + $0x228] sm:$0xff]
    %v841 = vld [vmem:[#allocation3 + $0x230] sm:$0xff]
    %v842 = vld [vmem:[#allocation3 + $0x238] sm:$0xff]
    %v843 = vld [vmem:[#allocation3 + $0x240] sm:$0xff]
    %v844 = vld [vmem:[#allocation3 + $0x248] sm:$0xff]
    %v845 = vld [vmem:[#allocation3 + $0x250] sm:$0xff]
    %v846 = vld [vmem:[#allocation3 + $0x258] sm:$0xff]
    %v847 = vld [vmem:[#allocation3 + $0x260] sm:$0xff]
    %v848 = vld [vmem:[#allocation3 + $0x268] sm:$0xff]
    %v849 = vld [vmem:[#allocation3 + $0x270] sm:$0xff]
    %v850 = vld [vmem:[#allocation3 + $0x278] sm:$0xff]
    %v851 = vld [vmem:[#allocation3 + $0x280] sm:$0xff]
    %v852 = vld [vmem:[#allocation3 + $0x288] sm:$0xff]
    %v853 = vld [vmem:[#allocation3 + $0x290] sm:$0xff]
    %v854 = vld [vmem:[#allocation3 + $0x298] sm:$0xff]
    %v855 = vld [vmem:[#allocation3 + $0x2a0] sm:$0xff]
    %v856 = vld [vmem:[#allocation3 + $0x2a8] sm:$0xff]
    %v857 = vld [vmem:[#allocation3 + $0x2b0] sm:$0xff]
    %v858 = vld [vmem:[#allocation3 + $0x2b8] sm:$0xff]
    %v859 = vld [vmem:[#allocation3 + $0x2c0] sm:$0xff]
    %v860 = vld [vmem:[#allocation3 + $0x2c8] sm:$0xff]
    %v861 = vld [vmem:[#allocation3 + $0x2d0] sm:$0xff]
    %v862 = vld [vmem:[#allocation3 + $0x2d8] sm:$0xff]
    %v863 = vld [vmem:[#allocation3 + $0x2e0] sm:$0xff]
    %v864 = vld [vmem:[#allocation3 + $0x2e8] sm:$0xff]
    %v865 = vld [vmem:[#allocation3 + $0x2f0] sm:$0xff]
    %v866 = vld [vmem:[#allocation3 + $0x2f8] sm:$0xff]
    %v867 = vld [vmem:[#allocation3 + $0x300] sm:$0xff]
    %v868 = vld [vmem:[#allocation3 + $0x308] sm:$0xff]
    %v869 = vld [vmem:[#allocation3 + $0x310] sm:$0xff]
    %v870 = vld [vmem:[#allocation3 + $0x318] sm:$0xff]
    %v871 = vld [vmem:[#allocation3 + $0x320] sm:$0xff]
    %v872 = vld [vmem:[#allocation3 + $0x328] sm:$0xff]
    %v873 = vld [vmem:[#allocation3 + $0x330] sm:$0xff]
    %v874 = vld [vmem:[#allocation3 + $0x338] sm:$0xff]
    %v875 = vld [vmem:[#allocation3 + $0x340] sm:$0xff]
    %v876 = vld [vmem:[#allocation3 + $0x348] sm:$0xff]
    %v877 = vld [vmem:[#allocation3 + $0x350] sm:$0xff]
    %v878 = vld [vmem:[#allocation3 + $0x358] sm:$0xff]
    %v879 = vld [vmem:[#allocation3 + $0x360] sm:$0xff]
    %v880 = vld [vmem:[#allocation3 + $0x368] sm:$0xff]
    %v881 = vld [vmem:[#allocation3 + $0x370] sm:$0xff]
    %v882 = vld [vmem:[#allocation3 + $0x378] sm:$0xff]
    %v883 = vld [vmem:[#allocation3 + $0x380] sm:$0xff]
    %v884 = vld [vmem:[#allocation3 + $0x388] sm:$0xff]
    %v885 = vld [vmem:[#allocation3 + $0x390] sm:$0xff]
    %v886 = vld [vmem:[#allocation3 + $0x398] sm:$0xff]
    %v887 = vld [vmem:[#allocation3 + $0x3a0] sm:$0xff]
    %v888 = vld [vmem:[#allocation3 + $0x3a8] sm:$0xff]
    %v889 = vld [vmem:[#allocation3 + $0x3b0] sm:$0xff]
    %v890 = vld [vmem:[#allocation3 + $0x3b8] sm:$0xff]
    %v891 = vld [vmem:[#allocation3 + $0x3c0] sm:$0xff]
    %v892 = vld [vmem:[#allocation3 + $0x3c8] sm:$0xff]
    %v893 = vld [vmem:[#allocation3 + $0x3d0] sm:$0xff]
    %v894 = vld [vmem:[#allocation3 + $0x3d8] sm:$0xff]
    %v895 = vld [vmem:[#allocation3 + $0x3e0] sm:$0xff]
    %v896 = vld [vmem:[#allocation3 + $0x3e8] sm:$0xff]
    %v897 = vld [vmem:[#allocation3 + $0x3f0] sm:$0xff]
    %v898 = vld [vmem:[#allocation3 + $0x3f8] sm:$0xff]
    %v899 = vld [vmem:[#allocation3 + $0x400] sm:$0xff]
    %v900 = vld [vmem:[#allocation3 + $0x408] sm:$0xff]
    %v901 = vld [vmem:[#allocation3 + $0x410] sm:$0xff]
    %v902 = vld [vmem:[#allocation3 + $0x418] sm:$0xff]
    %v903 = vld [vmem:[#allocation3 + $0x420] sm:$0xff]
    %v904 = vld [vmem:[#allocation3 + $0x428] sm:$0xff]
    %v905 = vld [vmem:[#allocation3 + $0x430] sm:$0xff]
    %v906 = vld [vmem:[#allocation3 + $0x438] sm:$0xff]
    %v907 = vld [vmem:[#allocation3 + $0x440] sm:$0xff]
    %v908 = vld [vmem:[#allocation3 + $0x448] sm:$0xff]
    %v909 = vld [vmem:[#allocation3 + $0x450] sm:$0xff]
    %v910 = vld [vmem:[#allocation3 + $0x458] sm:$0xff]
    %v911 = vld [vmem:[#allocation3 + $0x460] sm:$0xff]
    %v912 = vld [vmem:[#allocation3 + $0x468] sm:$0xff]
    %v913 = vld [vmem:[#allocation3 + $0x470] sm:$0xff]
    %v914 = vld [vmem:[#allocation3 + $0x478] sm:$0xff]
    %v915 = vld [vmem:[#allocation3 + $0x480] sm:$0xff]
    %v916 = vld [vmem:[#allocation3 + $0x488] sm:$0xff]
    %v917 = vld [vmem:[#allocation3 + $0x490] sm:$0xff]
    %v918 = vld [vmem:[#allocation3 + $0x498] sm:$0xff]
    %v919 = vld [vmem:[#allocation3 + $0x4a0] sm:$0xff]
    %v920 = vld [vmem:[#allocation3 + $0x4a8] sm:$0xff]
    %v921 = vrot.slane %v824, 2
    %923 = vmatpush.msra.mxu0 %v870
    %924 = vmatpush.msra.mxu0 %v867
    %925 = vmatpush.msra.mxu0 %v864
    %926 = vmatpush.msra.mxu0 %v861
    %927 = vmatpush.msra.mxu0 %v858
    %928 = vmatpush.msra.mxu0 %v855
    %929 = vmatpush.msra.mxu0 %v852
    %930 = vmatpush.msra.mxu0 %v849
    %931 = vmatpush.msra.mxu0 %v846
    %932 = vmatpush.msra.mxu0 %v843
    %933 = vmatpush.msra.mxu0 %v840
    %934 = vmatpush.msra.mxu0 %v837
    %935 = vmatpush.msra.mxu0 %v834
    %936 = vmatpush.msra.mxu0 %v831
    %937 = vmatpush.msra.mxu0 %v828
    %938 = vmatpush.msra.mxu0 %v825
    %939 = vmatmul.f32.gmra.mxu0 %v801
    %v940 = vpop.f32.mrf.mxu0
    %v941 = vadd.f32 %v157, %v940
    %942 = vdwg.mxu0
    %943 = vmatpush.msra.mxu0 %v918
    %944 = vmatpush.msra.mxu0 %v915
    %945 = vmatpush.msra.mxu0 %v912
    %946 = vmatpush.msra.mxu0 %v909
    %947 = vmatpush.msra.mxu0 %v906
    %948 = vmatpush.msra.mxu0 %v903
    %949 = vmatpush.msra.mxu0 %v900
    %950 = vmatpush.msra.mxu0 %v897
    %951 = vmatpush.msra.mxu0 %v894
    %952 = vmatpush.msra.mxu0 %v891
    %953 = vmatpush.msra.mxu0 %v888
    %954 = vmatpush.msra.mxu0 %v885
    %955 = vmatpush.msra.mxu0 %v882
    %956 = vmatpush.msra.mxu0 %v879
    %957 = vmatpush.msra.mxu0 %v876
    %958 = vmatpush.msra.mxu0 %v873
    %959 = vmatmul.f32.gmra.mxu0 %v921
    %v960 = vpop.f32.mrf.mxu0
    %v961 = vadd.f32 %v941, %v960
    %962 = vdwg.mxu0
    %963 = vmatpush.msra.mxu0 %v871
    %964 = vmatpush.msra.mxu0 %v868
    %965 = vmatpush.msra.mxu0 %v865
    %966 = vmatpush.msra.mxu0 %v862
    %967 = vmatpush.msra.mxu0 %v859
    %968 = vmatpush.msra.mxu0 %v856
    %969 = vmatpush.msra.mxu0 %v853
    %970 = vmatpush.msra.mxu0 %v850
    %971 = vmatpush.msra.mxu0 %v847
    %972 = vmatpush.msra.mxu0 %v844
    %973 = vmatpush.msra.mxu0 %v841
    %974 = vmatpush.msra.mxu0 %v838
    %975 = vmatpush.msra.mxu0 %v835
    %976 = vmatpush.msra.mxu0 %v832
    %977 = vmatpush.msra.mxu0 %v829
    %978 = vmatpush.msra.mxu0 %v826
    %979 = vmatmul.f32.gmra.mxu0 %v801
    %v980 = vpop.f32.mrf.mxu0
    %v981 = vadd.f32 %v158, %v980
    %982 = vdwg.mxu0
    %983 = vmatpush.msra.mxu0 %v919
    %984 = vmatpush.msra.mxu0 %v916
    %985 = vmatpush.msra.mxu0 %v913
    %986 = vmatpush.msra.mxu0 %v910
    %987 = vmatpush.msra.mxu0 %v907
    %988 = vmatpush.msra.mxu0 %v904
    %989 = vmatpush.msra.mxu0 %v901
    %990 = vmatpush.msra.mxu0 %v898
    %991 = vmatpush.msra.mxu0 %v895
    %992 = vmatpush.msra.mxu0 %v892
    %993 = vmatpush.msra.mxu0 %v889
    %994 = vmatpush.msra.mxu0 %v886
    %995 = vmatpush.msra.mxu0 %v883
    %996 = vmatpush.msra.mxu0 %v880
    %997 = vmatpush.msra.mxu0 %v877
    %998 = vmatpush.msra.mxu0 %v874
    %999 = vmatmul.f32.gmra.mxu0 %v921
    %v1000 = vpop.f32.mrf.mxu0
    %v1001 = vadd.f32 %v981, %v1000
    %1002 = vdwg.mxu0
    %1003 = vmatpush.msra.mxu0 %v872
    %1004 = vmatpush.msra.mxu0 %v869
    %1005 = vmatpush.msra.mxu0 %v866
    %1006 = vmatpush.msra.mxu0 %v863
    %1007 = vmatpush.msra.mxu0 %v860
    %1008 = vmatpush.msra.mxu0 %v857
    %1009 = vmatpush.msra.mxu0 %v854
    %1010 = vmatpush.msra.mxu0 %v851
    %1011 = vmatpush.msra.mxu0 %v848
    %1012 = vmatpush.msra.mxu0 %v845
    %1013 = vmatpush.msra.mxu0 %v842
    %1014 = vmatpush.msra.mxu0 %v839
    %1015 = vmatpush.msra.mxu0 %v836
    %1016 = vmatpush.msra.mxu0 %v833
    %1017 = vmatpush.msra.mxu0 %v830
    %1018 = vmatpush.msra.mxu0 %v827
    %1019 = vmatmul.f32.gmra.mxu0 %v801
    %v1020 = vpop.f32.mrf.mxu0
    %v1021 = vadd.f32 %v159, %v1020
    %1022 = vdwg.mxu0
    %1023 = vmatpush.msra.mxu0 %v920
    %1024 = vmatpush.msra.mxu0 %v917
    %1025 = vmatpush.msra.mxu0 %v914
    %1026 = vmatpush.msra.mxu0 %v911
    %1027 = vmatpush.msra.mxu0 %v908
    %1028 = vmatpush.msra.mxu0 %v905
    %1029 = vmatpush.msra.mxu0 %v902
    %1030 = vmatpush.msra.mxu0 %v899
    %1031 = vmatpush.msra.mxu0 %v896
    %1032 = vmatpush.msra.mxu0 %v893
    %1033 = vmatpush.msra.mxu0 %v890
    %1034 = vmatpush.msra.mxu0 %v887
    %1035 = vmatpush.msra.mxu0 %v884
    %1036 = vmatpush.msra.mxu0 %v881
    %1037 = vmatpush.msra.mxu0 %v878
    %1038 = vmatpush.msra.mxu0 %v875
    %1039 = vmatmul.f32.gmra.mxu0 %v921
    %v1040 = vpop.f32.mrf.mxu0
    %v1041 = vadd.f32 %v1021, %v1040
    %1042 = vdwg.mxu0
    %v1043 = vxor.u32 %v961, 2147483648
    %v1044 = vxor.u32 %v1001, 2147483648
    %v1045 = vmul.f32 %v1043, 1.442695
    %v1046 = vpow.pop %v1045
    %v1047 = vmul.f32 %v1044, 1.442695
    %v1048 = vpow.pop %v1047
    %v1049 = vadd.f32 %v1046, 1.0
    %v1050 = vadd.f32 %v1048, 1.0
    %v1051 = vrcp.pop %v1049
    %v1052 = vmul.f32 %v1049, %v1051
    %v1053 = vsub.f32 1.0, %v1052
    %v1054 = vmul.f32 %v1051, %v1053
    %v1055 = vadd.f32 %v1051, %v1054
    %vm1056 = vweird.f32 %v1049
    %vm1057 = vweird.f32 %v1051
    %vm1058 = vmor %vm1056, %vm1057
    %v1059 = vsel %vm1058, %v1051, %v1055
    %v1060 = vand.u32 2147483647, %v1049
    %vm1061 = vcmp.eq.f32.partialorder %v1060, 8.507059e+37
    %v1062 = vand.u32 %v1049, 2147483648
    %v1063 = vor.u32 1.1754944e-38, %v1062
    %v1064 = vsel %vm1061, %v1063, %v1059
    %v1065 = vmul.f32 1.0, %v1064
    %v1066 = vrcp.pop %v1050
    %v1067 = vmul.f32 %v1050, %v1066
    %v1068 = vsub.f32 1.0, %v1067
    %v1069 = vmul.f32 %v1066, %v1068
    %v1070 = vadd.f32 %v1066, %v1069
    %vm1071 = vweird.f32 %v1050
    %vm1072 = vweird.f32 %v1066
    %vm1073 = vmor %vm1071, %vm1072
    %v1074 = vsel %vm1073, %v1066, %v1070
    %v1075 = vand.u32 2147483647, %v1050
    %vm1076 = vcmp.eq.f32.partialorder %v1075, 8.507059e+37
    %v1077 = vand.u32 %v1050, 2147483648
    %v1078 = vor.u32 1.1754944e-38, %v1077
    %v1079 = vsel %vm1076, %v1078, %v1074
    %v1080 = vmul.f32 1.0, %v1079
    %v1081 = vmul.f32 %v1065, %v1041
    %v1082 = vadd.f32 %v821, %v1081
    %v1083 = vtanh.pop %v1082
    %v1084 = vsub.f32 1.0, %v1080
    %v1085 = vmul.f32 %v1084, %v1083
    %v1086 = vmul.f32 %v1080, %v615
    %v1087 = vadd.f32 %v1085, %v1086
    %1088 = vst [vmem:[#allocation2 + $0x2] sm:$0x3] %v1087
    %v1089 = vld [vmem:[#allocation3 + $0x30] sm:$0xff]
    %v1090 = vld [vmem:[#allocation3 + $0x38] sm:$0xff]
    %v1091 = vld [vmem:[#allocation3 + $0x40] sm:$0xff]
    %v1092 = vld [vmem:[#allocation3 + $0x48] sm:$0xff]
    %v1093 = vld [vmem:[#allocation3 + $0x50] sm:$0xff]
    %v1094 = vld [vmem:[#allocation3 + $0x58] sm:$0xff]
    %v1095 = vld [vmem:[#allocation3 + $0x60] sm:$0xff]
    %v1096 = vld [vmem:[#allocation3 + $0x68] sm:$0xff]
    %v1097 = vld [vmem:[#allocation3 + $0x70] sm:$0xff]
    %v1098 = vld [vmem:[#allocation3 + $0x78] sm:$0xff]
    %v1099 = vld [vmem:[#allocation3 + $0x80] sm:$0xff]
    %v1100 = vld [vmem:[#allocation3 + $0x88] sm:$0xff]
    %v1101 = vld [vmem:[#allocation3 + $0x90] sm:$0xff]
    %v1102 = vld [vmem:[#allocation3 + $0x98] sm:$0xff]
    %v1103 = vld [vmem:[#allocation3 + $0xa0] sm:$0xff]
    %v1104 = vld [vmem:[#allocation3 + $0xa8] sm:$0xff]
    %v1105 = vld [vmem:[#allocation3 + $0xb0] sm:$0xff]
    %v1106 = vld [vmem:[#allocation3 + $0xb8] sm:$0xff]
    %v1107 = vld [vmem:[#allocation3 + $0xc0] sm:$0xff]
    %v1108 = vld [vmem:[#allocation3 + $0xc8] sm:$0xff]
    %v1109 = vld [vmem:[#allocation3 + $0xd0] sm:$0xff]
    %v1110 = vld [vmem:[#allocation3 + $0xd8] sm:$0xff]
    %v1111 = vld [vmem:[#allocation3 + $0xe0] sm:$0xff]
    %v1112 = vld [vmem:[#allocation3 + $0xe8] sm:$0xff]
    %v1113 = vld [vmem:[#allocation3 + $0xf0] sm:$0xff]
    %v1114 = vld [vmem:[#allocation3 + $0xf8] sm:$0xff]
    %v1115 = vld [vmem:[#allocation3 + $0x100] sm:$0xff]
    %v1116 = vld [vmem:[#allocation3 + $0x108] sm:$0xff]
    %v1117 = vld [vmem:[#allocation3 + $0x110] sm:$0xff]
    %v1118 = vld [vmem:[#allocation3 + $0x118] sm:$0xff]
    %v1119 = vld [vmem:[#allocation3 + $0x120] sm:$0xff]
    %v1120 = vld [vmem:[#allocation3 + $0x128] sm:$0xff]
    %v1121 = vld [vmem:[#allocation3 + $0x130] sm:$0xff]
    %v1122 = vld [vmem:[#allocation3 + $0x138] sm:$0xff]
    %v1123 = vld [vmem:[#allocation3 + $0x140] sm:$0xff]
    %v1124 = vld [vmem:[#allocation3 + $0x148] sm:$0xff]
    %v1125 = vld [vmem:[#allocation3 + $0x150] sm:$0xff]
    %v1126 = vld [vmem:[#allocation3 + $0x158] sm:$0xff]
    %v1127 = vld [vmem:[#allocation3 + $0x160] sm:$0xff]
    %v1128 = vld [vmem:[#allocation3 + $0x168] sm:$0xff]
    %v1129 = vld [vmem:[#allocation3 + $0x170] sm:$0xff]
    %v1130 = vld [vmem:[#allocation3 + $0x178] sm:$0xff]
    %v1131 = vld [vmem:[#allocation3 + $0x180] sm:$0xff]
    %v1132 = vld [vmem:[#allocation3 + $0x188] sm:$0xff]
    %v1133 = vld [vmem:[#allocation3 + $0x190] sm:$0xff]
    %v1134 = vld [vmem:[#allocation3 + $0x198] sm:$0xff]
    %v1135 = vld [vmem:[#allocation3 + $0x1a0] sm:$0xff]
    %v1136 = vld [vmem:[#allocation3 + $0x1a8] sm:$0xff]
    %1137 = vmatpush.msra.mxu0 %v1134
    %1138 = vmatpush.msra.mxu0 %v1131
    %1139 = vmatpush.msra.mxu0 %v1128
    %1140 = vmatpush.msra.mxu0 %v1125
    %1141 = vmatpush.msra.mxu0 %v1122
    %1142 = vmatpush.msra.mxu0 %v1119
    %1143 = vmatpush.msra.mxu0 %v1116
    %1144 = vmatpush.msra.mxu0 %v1113
    %1145 = vmatpush.msra.mxu0 %v1110
    %1146 = vmatpush.msra.mxu0 %v1107
    %1147 = vmatpush.msra.mxu0 %v1104
    %1148 = vmatpush.msra.mxu0 %v1101
    %1149 = vmatpush.msra.mxu0 %v1098
    %1150 = vmatpush.msra.mxu0 %v1095
    %1151 = vmatpush.msra.mxu0 %v1092
    %1152 = vmatpush.msra.mxu0 %v1089
    %1153 = vmatmul.f32.gmra.mxu0 %v801
    %v1154 = vpop.f32.mrf.mxu0
    %v1155 = vadd.f32 %v148, %v1154
    %1156 = vdwg.mxu0
    %1157 = vmatpush.msra.mxu0 %v1135
    %1158 = vmatpush.msra.mxu0 %v1132
    %1159 = vmatpush.msra.mxu0 %v1129
    %1160 = vmatpush.msra.mxu0 %v1126
    %1161 = vmatpush.msra.mxu0 %v1123
    %1162 = vmatpush.msra.mxu0 %v1120
    %1163 = vmatpush.msra.mxu0 %v1117
    %1164 = vmatpush.msra.mxu0 %v1114
    %1165 = vmatpush.msra.mxu0 %v1111
    %1166 = vmatpush.msra.mxu0 %v1108
    %1167 = vmatpush.msra.mxu0 %v1105
    %1168 = vmatpush.msra.mxu0 %v1102
    %1169 = vmatpush.msra.mxu0 %v1099
    %1170 = vmatpush.msra.mxu0 %v1096
    %1171 = vmatpush.msra.mxu0 %v1093
    %1172 = vmatpush.msra.mxu0 %v1090
    %1173 = vmatmul.f32.gmra.mxu0 %v801
    %v1174 = vpop.f32.mrf.mxu0
    %v1175 = vadd.f32 %v149, %v1174
    %1176 = vdwg.mxu0
    %1177 = vmatpush.msra.mxu0 %v1136
    %1178 = vmatpush.msra.mxu0 %v1133
    %1179 = vmatpush.msra.mxu0 %v1130
    %1180 = vmatpush.msra.mxu0 %v1127
    %1181 = vmatpush.msra.mxu0 %v1124
    %1182 = vmatpush.msra.mxu0 %v1121
    %1183 = vmatpush.msra.mxu0 %v1118
    %1184 = vmatpush.msra.mxu0 %v1115
    %1185 = vmatpush.msra.mxu0 %v1112
    %1186 = vmatpush.msra.mxu0 %v1109
    %1187 = vmatpush.msra.mxu0 %v1106
    %1188 = vmatpush.msra.mxu0 %v1103
    %1189 = vmatpush.msra.mxu0 %v1100
    %1190 = vmatpush.msra.mxu0 %v1097
    %1191 = vmatpush.msra.mxu0 %v1094
    %1192 = vmatpush.msra.mxu0 %v1091
    %1193 = vmatmul.f32.gmra.mxu0 %v801
    %v1194 = vpop.f32.mrf.mxu0
    %v1195 = vadd.f32 %v150, %v1194
    %1196 = vdwg.mxu0
    %v1199 = vrot.slane %v1155, 4
    %v1200 = vrot.slane %v1175, 4
    %v1203 = vadd.f32 %v94, %v1199
    %v1204 = vadd.f32 %v117, %v1200
    %v1205 = vxor.u32 %v1203, 2147483648
    %v1206 = vxor.u32 %v1204, 2147483648
    %v1207 = vmul.f32 %v1205, 1.442695
    %v1208 = vpow.pop %v1207
    %v1209 = vmul.f32 %v1206, 1.442695
    %v1210 = vpow.pop %v1209
    %v1211 = vadd.f32 %v1208, 1.0
    %v1212 = vadd.f32 %v1210, 1.0
    %v1213 = vrcp.pop %v1211
    %v1214 = vmul.f32 %v1211, %v1213
    %v1215 = vsub.f32 1.0, %v1214
    %v1216 = vmul.f32 %v1213, %v1215
    %v1217 = vadd.f32 %v1213, %v1216
    %vm1218 = vweird.f32 %v1211
    %vm1219 = vweird.f32 %v1213
    %vm1220 = vmor %vm1218, %vm1219
    %v1221 = vsel %vm1220, %v1213, %v1217
    %v1222 = vand.u32 2147483647, %v1211
    %vm1223 = vcmp.eq.f32.partialorder %v1222, 8.507059e+37
    %v1224 = vand.u32 %v1211, 2147483648
    %v1225 = vor.u32 1.1754944e-38, %v1224
    %v1226 = vsel %vm1223, %v1225, %v1221
    %v1227 = vmul.f32 1.0, %v1226
    %v1228 = vrcp.pop %v1212
    %v1229 = vmul.f32 %v1212, %v1228
    %v1230 = vsub.f32 1.0, %v1229
    %v1231 = vmul.f32 %v1228, %v1230
    %v1232 = vadd.f32 %v1228, %v1231
    %vm1233 = vweird.f32 %v1212
    %vm1234 = vweird.f32 %v1228
    %vm1235 = vmor %vm1233, %vm1234
    %v1236 = vsel %vm1235, %v1228, %v1232
    %v1237 = vand.u32 2147483647, %v1212
    %vm1238 = vcmp.eq.f32.partialorder %v1237, 8.507059e+37
    %v1239 = vand.u32 %v1212, 2147483648
    %v1240 = vor.u32 1.1754944e-38, %v1239
    %v1241 = vsel %vm1238, %v1240, %v1236
    %v1242 = vmul.f32 1.0, %v1241
    %v1244 = vrot.slane %v1195, 4
    %v1246 = vmul.f32 %v1227, %v1244
    %v1247 = vadd.f32 %v140, %v1246
    %v1248 = vtanh.pop %v1247
    %v1249 = vsub.f32 1.0, %v1242
    %v1250 = vmul.f32 %v1249, %v1248
    %v1251 = vrot.slane %v783, 6
    %v1253 = vmul.f32 %v1242, %v1251
    %v1254 = vadd.f32 %v1250, %v1253
    %v1255 = vld [vmem:[#allocation6] sm:$0xff]
    %v1256 = vld [vmem:[#allocation6 + $0x8] sm:$0xff]
    %v1257 = vld [vmem:[#allocation6 + $0x10] sm:$0xff]
    %v1258 = vld [vmem:[#allocation6 + $0x18] sm:$0xff]
    %v1259 = vld [vmem:[#allocation6 + $0x20] sm:$0xff]
    %v1260 = vld [vmem:[#allocation6 + $0x28] sm:$0xff]
    %v1261 = vld [vmem:[#allocation6 + $0x30] sm:$0xff]
    %v1262 = vld [vmem:[#allocation6 + $0x38] sm:$0xff]
    %v1263 = vld [vmem:[#allocation6 + $0x40] sm:$0xff]
    %v1264 = vld [vmem:[#allocation6 + $0x48] sm:$0xff]
    %v1265 = vld [vmem:[#allocation6 + $0x50] sm:$0xff]
    %v1266 = vld [vmem:[#allocation6 + $0x58] sm:$0xff]
    %v1267 = vld [vmem:[#allocation6 + $0x60] sm:$0xff]
    %v1268 = vld [vmem:[#allocation6 + $0x68] sm:$0xff]
    %v1269 = vld [vmem:[#allocation6 + $0x70] sm:$0xff]
    %v1270 = vld [vmem:[#allocation6 + $0x78] sm:$0xff]
    %v1272 = vrot.slane %v1254, 4
    %1274 = vmatpush.msra.mxu0 %v1270
    %1275 = vmatpush.msra.mxu0 %v1269
    %1276 = vmatpush.msra.mxu0 %v1268
    %1277 = vmatpush.msra.mxu0 %v1267
    %1278 = vmatpush.msra.mxu0 %v1266
    %1279 = vmatpush.msra.mxu0 %v1265
    %1280 = vmatpush.msra.mxu0 %v1264
    %1281 = vmatpush.msra.mxu0 %v1263
    %1282 = vmatpush.msra.mxu0 %v1262
    %1283 = vmatpush.msra.mxu0 %v1261
    %1284 = vmatpush.msra.mxu0 %v1260
    %1285 = vmatpush.msra.mxu0 %v1259
    %1286 = vmatpush.msra.mxu0 %v1258
    %1287 = vmatpush.msra.mxu0 %v1257
    %1288 = vmatpush.msra.mxu0 %v1256
    %1289 = vmatpush.msra.mxu0 %v1255
    %1290 = vmatmul.f32.gmra.mxu0 %v1272
    %v1291 = vpop.f32.mrf.mxu0
    %v1292 = vadd.f32 %v163, %v1291
    %1293 = vdwg.mxu0
    %v1295 = vrot.slane %v1087, 4
    %v1296 = vld [vmem:[#allocation3 + $0x1b0] sm:$0xff]
    %v1297 = vld [vmem:[#allocation3 + $0x1b8] sm:$0xff]
    %v1298 = vld [vmem:[#allocation3 + $0x1c0] sm:$0xff]
    %v1299 = vld [vmem:[#allocation3 + $0x1c8] sm:$0xff]
    %v1300 = vld [vmem:[#allocation3 + $0x1d0] sm:$0xff]
    %v1301 = vld [vmem:[#allocation3 + $0x1d8] sm:$0xff]
    %v1302 = vld [vmem:[#allocation3 + $0x1e0] sm:$0xff]
    %v1303 = vld [vmem:[#allocation3 + $0x1e8] sm:$0xff]
    %v1304 = vld [vmem:[#allocation3 + $0x1f0] sm:$0xff]
    %v1305 = vld [vmem:[#allocation3 + $0x1f8] sm:$0xff]
    %v1306 = vld [vmem:[#allocation3 + $0x200] sm:$0xff]
    %v1307 = vld [vmem:[#allocation3 + $0x208] sm:$0xff]
    %v1308 = vld [vmem:[#allocation3 + $0x210] sm:$0xff]
    %v1309 = vld [vmem:[#allocation3 + $0x218] sm:$0xff]
    %v1310 = vld [vmem:[#allocation3 + $0x220] sm:$0xff]
    %v1311 = vld [vmem:[#allocation3 + $0x228] sm:$0xff]
    %v1312 = vld [vmem:[#allocation3 + $0x230] sm:$0xff]
    %v1313 = vld [vmem:[#allocation3 + $0x238] sm:$0xff]
    %v1314 = vld [vmem:[#allocation3 + $0x240] sm:$0xff]
    %v1315 = vld [vmem:[#allocation3 + $0x248] sm:$0xff]
    %v1316 = vld [vmem:[#allocation3 + $0x250] sm:$0xff]
    %v1317 = vld [vmem:[#allocation3 + $0x258] sm:$0xff]
    %v1318 = vld [vmem:[#allocation3 + $0x260] sm:$0xff]
    %v1319 = vld [vmem:[#allocation3 + $0x268] sm:$0xff]
    %v1320 = vld [vmem:[#allocation3 + $0x270] sm:$0xff]
    %v1321 = vld [vmem:[#allocation3 + $0x278] sm:$0xff]
    %v1322 = vld [vmem:[#allocation3 + $0x280] sm:$0xff]
    %v1323 = vld [vmem:[#allocation3 + $0x288] sm:$0xff]
    %v1324 = vld [vmem:[#allocation3 + $0x290] sm:$0xff]
    %v1325 = vld [vmem:[#allocation3 + $0x298] sm:$0xff]
    %v1326 = vld [vmem:[#allocation3 + $0x2a0] sm:$0xff]
    %v1327 = vld [vmem:[#allocation3 + $0x2a8] sm:$0xff]
    %v1328 = vld [vmem:[#allocation3 + $0x2b0] sm:$0xff]
    %v1329 = vld [vmem:[#allocation3 + $0x2b8] sm:$0xff]
    %v1330 = vld [vmem:[#allocation3 + $0x2c0] sm:$0xff]
    %v1331 = vld [vmem:[#allocation3 + $0x2c8] sm:$0xff]
    %v1332 = vld [vmem:[#allocation3 + $0x2d0] sm:$0xff]
    %v1333 = vld [vmem:[#allocation3 + $0x2d8] sm:$0xff]
    %v1334 = vld [vmem:[#allocation3 + $0x2e0] sm:$0xff]
    %v1335 = vld [vmem:[#allocation3 + $0x2e8] sm:$0xff]
    %v1336 = vld [vmem:[#allocation3 + $0x2f0] sm:$0xff]
    %v1337 = vld [vmem:[#allocation3 + $0x2f8] sm:$0xff]
    %v1338 = vld [vmem:[#allocation3 + $0x300] sm:$0xff]
    %v1339 = vld [vmem:[#allocation3 + $0x308] sm:$0xff]
    %v1340 = vld [vmem:[#allocation3 + $0x310] sm:$0xff]
    %v1341 = vld [vmem:[#allocation3 + $0x318] sm:$0xff]
    %v1342 = vld [vmem:[#allocation3 + $0x320] sm:$0xff]
    %v1343 = vld [vmem:[#allocation3 + $0x328] sm:$0xff]
    %v1344 = vld [vmem:[#allocation3 + $0x330] sm:$0xff]
    %v1345 = vld [vmem:[#allocation3 + $0x338] sm:$0xff]
    %v1346 = vld [vmem:[#allocation3 + $0x340] sm:$0xff]
    %v1347 = vld [vmem:[#allocation3 + $0x348] sm:$0xff]
    %v1348 = vld [vmem:[#allocation3 + $0x350] sm:$0xff]
    %v1349 = vld [vmem:[#allocation3 + $0x358] sm:$0xff]
    %v1350 = vld [vmem:[#allocation3 + $0x360] sm:$0xff]
    %v1351 = vld [vmem:[#allocation3 + $0x368] sm:$0xff]
    %v1352 = vld [vmem:[#allocation3 + $0x370] sm:$0xff]
    %v1353 = vld [vmem:[#allocation3 + $0x378] sm:$0xff]
    %v1354 = vld [vmem:[#allocation3 + $0x380] sm:$0xff]
    %v1355 = vld [vmem:[#allocation3 + $0x388] sm:$0xff]
    %v1356 = vld [vmem:[#allocation3 + $0x390] sm:$0xff]
    %v1357 = vld [vmem:[#allocation3 + $0x398] sm:$0xff]
    %v1358 = vld [vmem:[#allocation3 + $0x3a0] sm:$0xff]
    %v1359 = vld [vmem:[#allocation3 + $0x3a8] sm:$0xff]
    %v1360 = vld [vmem:[#allocation3 + $0x3b0] sm:$0xff]
    %v1361 = vld [vmem:[#allocation3 + $0x3b8] sm:$0xff]
    %v1362 = vld [vmem:[#allocation3 + $0x3c0] sm:$0xff]
    %v1363 = vld [vmem:[#allocation3 + $0x3c8] sm:$0xff]
    %v1364 = vld [vmem:[#allocation3 + $0x3d0] sm:$0xff]
    %v1365 = vld [vmem:[#allocation3 + $0x3d8] sm:$0xff]
    %v1366 = vld [vmem:[#allocation3 + $0x3e0] sm:$0xff]
    %v1367 = vld [vmem:[#allocation3 + $0x3e8] sm:$0xff]
    %v1368 = vld [vmem:[#allocation3 + $0x3f0] sm:$0xff]
    %v1369 = vld [vmem:[#allocation3 + $0x3f8] sm:$0xff]
    %v1370 = vld [vmem:[#allocation3 + $0x400] sm:$0xff]
    %v1371 = vld [vmem:[#allocation3 + $0x408] sm:$0xff]
    %v1372 = vld [vmem:[#allocation3 + $0x410] sm:$0xff]
    %v1373 = vld [vmem:[#allocation3 + $0x418] sm:$0xff]
    %v1374 = vld [vmem:[#allocation3 + $0x420] sm:$0xff]
    %v1375 = vld [vmem:[#allocation3 + $0x428] sm:$0xff]
    %v1376 = vld [vmem:[#allocation3 + $0x430] sm:$0xff]
    %v1377 = vld [vmem:[#allocation3 + $0x438] sm:$0xff]
    %v1378 = vld [vmem:[#allocation3 + $0x440] sm:$0xff]
    %v1379 = vld [vmem:[#allocation3 + $0x448] sm:$0xff]
    %v1380 = vld [vmem:[#allocation3 + $0x450] sm:$0xff]
    %v1381 = vld [vmem:[#allocation3 + $0x458] sm:$0xff]
    %v1382 = vld [vmem:[#allocation3 + $0x460] sm:$0xff]
    %v1383 = vld [vmem:[#allocation3 + $0x468] sm:$0xff]
    %v1384 = vld [vmem:[#allocation3 + $0x470] sm:$0xff]
    %v1385 = vld [vmem:[#allocation3 + $0x478] sm:$0xff]
    %v1386 = vld [vmem:[#allocation3 + $0x480] sm:$0xff]
    %v1387 = vld [vmem:[#allocation3 + $0x488] sm:$0xff]
    %v1388 = vld [vmem:[#allocation3 + $0x490] sm:$0xff]
    %v1389 = vld [vmem:[#allocation3 + $0x498] sm:$0xff]
    %v1390 = vld [vmem:[#allocation3 + $0x4a0] sm:$0xff]
    %v1391 = vld [vmem:[#allocation3 + $0x4a8] sm:$0xff]
    %v1392 = vrot.slane %v1295, 4
    %1394 = vmatpush.msra.mxu0 %v1341
    %1395 = vmatpush.msra.mxu0 %v1338
    %1396 = vmatpush.msra.mxu0 %v1335
    %1397 = vmatpush.msra.mxu0 %v1332
    %1398 = vmatpush.msra.mxu0 %v1329
    %1399 = vmatpush.msra.mxu0 %v1326
    %1400 = vmatpush.msra.mxu0 %v1323
    %1401 = vmatpush.msra.mxu0 %v1320
    %1402 = vmatpush.msra.mxu0 %v1317
    %1403 = vmatpush.msra.mxu0 %v1314
    %1404 = vmatpush.msra.mxu0 %v1311
    %1405 = vmatpush.msra.mxu0 %v1308
    %1406 = vmatpush.msra.mxu0 %v1305
    %1407 = vmatpush.msra.mxu0 %v1302
    %1408 = vmatpush.msra.mxu0 %v1299
    %1409 = vmatpush.msra.mxu0 %v1296
    %1410 = vmatmul.f32.gmra.mxu0 %v1272
    %v1411 = vpop.f32.mrf.mxu0
    %v1412 = vadd.f32 %v157, %v1411
    %1413 = vdwg.mxu0
    %1414 = vmatpush.msra.mxu0 %v1389
    %1415 = vmatpush.msra.mxu0 %v1386
    %1416 = vmatpush.msra.mxu0 %v1383
    %1417 = vmatpush.msra.mxu0 %v1380
    %1418 = vmatpush.msra.mxu0 %v1377
    %1419 = vmatpush.msra.mxu0 %v1374
    %1420 = vmatpush.msra.mxu0 %v1371
    %1421 = vmatpush.msra.mxu0 %v1368
    %1422 = vmatpush.msra.mxu0 %v1365
    %1423 = vmatpush.msra.mxu0 %v1362
    %1424 = vmatpush.msra.mxu0 %v1359
    %1425 = vmatpush.msra.mxu0 %v1356
    %1426 = vmatpush.msra.mxu0 %v1353
    %1427 = vmatpush.msra.mxu0 %v1350
    %1428 = vmatpush.msra.mxu0 %v1347
    %1429 = vmatpush.msra.mxu0 %v1344
    %1430 = vmatmul.f32.gmra.mxu0 %v1392
    %v1431 = vpop.f32.mrf.mxu0
    %v1432 = vadd.f32 %v1412, %v1431
    %1433 = vdwg.mxu0
    %1434 = vmatpush.msra.mxu0 %v1342
    %1435 = vmatpush.msra.mxu0 %v1339
    %1436 = vmatpush.msra.mxu0 %v1336
    %1437 = vmatpush.msra.mxu0 %v1333
    %1438 = vmatpush.msra.mxu0 %v1330
    %1439 = vmatpush.msra.mxu0 %v1327
    %1440 = vmatpush.msra.mxu0 %v1324
    %1441 = vmatpush.msra.mxu0 %v1321
    %1442 = vmatpush.msra.mxu0 %v1318
    %1443 = vmatpush.msra.mxu0 %v1315
    %1444 = vmatpush.msra.mxu0 %v1312
    %1445 = vmatpush.msra.mxu0 %v1309
    %1446 = vmatpush.msra.mxu0 %v1306
    %1447 = vmatpush.msra.mxu0 %v1303
    %1448 = vmatpush.msra.mxu0 %v1300
    %1449 = vmatpush.msra.mxu0 %v1297
    %1450 = vmatmul.f32.gmra.mxu0 %v1272
    %v1451 = vpop.f32.mrf.mxu0
    %v1452 = vadd.f32 %v158, %v1451
    %1453 = vdwg.mxu0
    %1454 = vmatpush.msra.mxu0 %v1390
    %1455 = vmatpush.msra.mxu0 %v1387
    %1456 = vmatpush.msra.mxu0 %v1384
    %1457 = vmatpush.msra.mxu0 %v1381
    %1458 = vmatpush.msra.mxu0 %v1378
    %1459 = vmatpush.msra.mxu0 %v1375
    %1460 = vmatpush.msra.mxu0 %v1372
    %1461 = vmatpush.msra.mxu0 %v1369
    %1462 = vmatpush.msra.mxu0 %v1366
    %1463 = vmatpush.msra.mxu0 %v1363
    %1464 = vmatpush.msra.mxu0 %v1360
    %1465 = vmatpush.msra.mxu0 %v1357
    %1466 = vmatpush.msra.mxu0 %v1354
    %1467 = vmatpush.msra.mxu0 %v1351
    %1468 = vmatpush.msra.mxu0 %v1348
    %1469 = vmatpush.msra.mxu0 %v1345
    %1470 = vmatmul.f32.gmra.mxu0 %v1392
    %v1471 = vpop.f32.mrf.mxu0
    %v1472 = vadd.f32 %v1452, %v1471
    %1473 = vdwg.mxu0
    %1474 = vmatpush.msra.mxu0 %v1343
    %1475 = vmatpush.msra.mxu0 %v1340
    %1476 = vmatpush.msra.mxu0 %v1337
    %1477 = vmatpush.msra.mxu0 %v1334
    %1478 = vmatpush.msra.mxu0 %v1331
    %1479 = vmatpush.msra.mxu0 %v1328
    %1480 = vmatpush.msra.mxu0 %v1325
    %1481 = vmatpush.msra.mxu0 %v1322
    %1482 = vmatpush.msra.mxu0 %v1319
    %1483 = vmatpush.msra.mxu0 %v1316
    %1484 = vmatpush.msra.mxu0 %v1313
    %1485 = vmatpush.msra.mxu0 %v1310
    %1486 = vmatpush.msra.mxu0 %v1307
    %1487 = vmatpush.msra.mxu0 %v1304
    %1488 = vmatpush.msra.mxu0 %v1301
    %1489 = vmatpush.msra.mxu0 %v1298
    %1490 = vmatmul.f32.gmra.mxu0 %v1272
    %v1491 = vpop.f32.mrf.mxu0
    %v1492 = vadd.f32 %v159, %v1491
    %1493 = vdwg.mxu0
    %1494 = vmatpush.msra.mxu0 %v1391
    %1495 = vmatpush.msra.mxu0 %v1388
    %1496 = vmatpush.msra.mxu0 %v1385
    %1497 = vmatpush.msra.mxu0 %v1382
    %1498 = vmatpush.msra.mxu0 %v1379
    %1499 = vmatpush.msra.mxu0 %v1376
    %1500 = vmatpush.msra.mxu0 %v1373
    %1501 = vmatpush.msra.mxu0 %v1370
    %1502 = vmatpush.msra.mxu0 %v1367
    %1503 = vmatpush.msra.mxu0 %v1364
    %1504 = vmatpush.msra.mxu0 %v1361
    %1505 = vmatpush.msra.mxu0 %v1358
    %1506 = vmatpush.msra.mxu0 %v1355
    %1507 = vmatpush.msra.mxu0 %v1352
    %1508 = vmatpush.msra.mxu0 %v1349
    %1509 = vmatpush.msra.mxu0 %v1346
    %1510 = vmatmul.f32.gmra.mxu0 %v1392
    %v1511 = vpop.f32.mrf.mxu0
    %v1512 = vadd.f32 %v1492, %v1511
    %1513 = vdwg.mxu0
    %v1514 = vxor.u32 %v1432, 2147483648
    %v1515 = vxor.u32 %v1472, 2147483648
    %v1516 = vmul.f32 %v1514, 1.442695
    %v1517 = vpow.pop %v1516
    %v1518 = vmul.f32 %v1515, 1.442695
    %v1519 = vpow.pop %v1518
    %v1520 = vadd.f32 %v1517, 1.0
    %v1521 = vadd.f32 %v1519, 1.0
    %v1522 = vrcp.pop %v1520
    %v1523 = vmul.f32 %v1520, %v1522
    %v1524 = vsub.f32 1.0, %v1523
    %v1525 = vmul.f32 %v1522, %v1524
    %v1526 = vadd.f32 %v1522, %v1525
    %vm1527 = vweird.f32 %v1520
    %vm1528 = vweird.f32 %v1522
    %vm1529 = vmor %vm1527, %vm1528
    %v1530 = vsel %vm1529, %v1522, %v1526
    %v1531 = vand.u32 2147483647, %v1520
    %vm1532 = vcmp.eq.f32.partialorder %v1531, 8.507059e+37
    %v1533 = vand.u32 %v1520, 2147483648
    %v1534 = vor.u32 1.1754944e-38, %v1533
    %v1535 = vsel %vm1532, %v1534, %v1530
    %v1536 = vmul.f32 1.0, %v1535
    %v1537 = vrcp.pop %v1521
    %v1538 = vmul.f32 %v1521, %v1537
    %v1539 = vsub.f32 1.0, %v1538
    %v1540 = vmul.f32 %v1537, %v1539
    %v1541 = vadd.f32 %v1537, %v1540
    %vm1542 = vweird.f32 %v1521
    %vm1543 = vweird.f32 %v1537
    %vm1544 = vmor %vm1542, %vm1543
    %v1545 = vsel %vm1544, %v1537, %v1541
    %v1546 = vand.u32 2147483647, %v1521
    %vm1547 = vcmp.eq.f32.partialorder %v1546, 8.507059e+37
    %v1548 = vand.u32 %v1521, 2147483648
    %v1549 = vor.u32 1.1754944e-38, %v1548
    %v1550 = vsel %vm1547, %v1549, %v1545
    %v1551 = vmul.f32 1.0, %v1550
    %v1552 = vmul.f32 %v1536, %v1512
    %v1553 = vadd.f32 %v1292, %v1552
    %v1554 = vtanh.pop %v1553
    %v1555 = vsub.f32 1.0, %v1551
    %v1556 = vmul.f32 %v1555, %v1554
    %v1557 = vmul.f32 %v1551, %v1087
    %v1558 = vadd.f32 %v1556, %v1557
    %1559 = vst [vmem:[#allocation2 + $0x4] sm:$0x3] %v1558
    %v1560 = vld [vmem:[#allocation3 + $0x30] sm:$0xff]
    %v1561 = vld [vmem:[#allocation3 + $0x38] sm:$0xff]
    %v1562 = vld [vmem:[#allocation3 + $0x40] sm:$0xff]
    %v1563 = vld [vmem:[#allocation3 + $0x48] sm:$0xff]
    %v1564 = vld [vmem:[#allocation3 + $0x50] sm:$0xff]
    %v1565 = vld [vmem:[#allocation3 + $0x58] sm:$0xff]
    %v1566 = vld [vmem:[#allocation3 + $0x60] sm:$0xff]
    %v1567 = vld [vmem:[#allocation3 + $0x68] sm:$0xff]
    %v1568 = vld [vmem:[#allocation3 + $0x70] sm:$0xff]
    %v1569 = vld [vmem:[#allocation3 + $0x78] sm:$0xff]
    %v1570 = vld [vmem:[#allocation3 + $0x80] sm:$0xff]
    %v1571 = vld [vmem:[#allocation3 + $0x88] sm:$0xff]
    %v1572 = vld [vmem:[#allocation3 + $0x90] sm:$0xff]
    %v1573 = vld [vmem:[#allocation3 + $0x98] sm:$0xff]
    %v1574 = vld [vmem:[#allocation3 + $0xa0] sm:$0xff]
    %v1575 = vld [vmem:[#allocation3 + $0xa8] sm:$0xff]
    %v1576 = vld [vmem:[#allocation3 + $0xb0] sm:$0xff]
    %v1577 = vld [vmem:[#allocation3 + $0xb8] sm:$0xff]
    %v1578 = vld [vmem:[#allocation3 + $0xc0] sm:$0xff]
    %v1579 = vld [vmem:[#allocation3 + $0xc8] sm:$0xff]
    %v1580 = vld [vmem:[#allocation3 + $0xd0] sm:$0xff]
    %v1581 = vld [vmem:[#allocation3 + $0xd8] sm:$0xff]
    %v1582 = vld [vmem:[#allocation3 + $0xe0] sm:$0xff]
    %v1583 = vld [vmem:[#allocation3 + $0xe8] sm:$0xff]
    %v1584 = vld [vmem:[#allocation3 + $0xf0] sm:$0xff]
    %v1585 = vld [vmem:[#allocation3 + $0xf8] sm:$0xff]
    %v1586 = vld [vmem:[#allocation3 + $0x100] sm:$0xff]
    %v1587 = vld [vmem:[#allocation3 + $0x108] sm:$0xff]
    %v1588 = vld [vmem:[#allocation3 + $0x110] sm:$0xff]
    %v1589 = vld [vmem:[#allocation3 + $0x118] sm:$0xff]
    %v1590 = vld [vmem:[#allocation3 + $0x120] sm:$0xff]
    %v1591 = vld [vmem:[#allocation3 + $0x128] sm:$0xff]
    %v1592 = vld [vmem:[#allocation3 + $0x130] sm:$0xff]
    %v1593 = vld [vmem:[#allocation3 + $0x138] sm:$0xff]
    %v1594 = vld [vmem:[#allocation3 + $0x140] sm:$0xff]
    %v1595 = vld [vmem:[#allocation3 + $0x148] sm:$0xff]
    %v1596 = vld [vmem:[#allocation3 + $0x150] sm:$0xff]
    %v1597 = vld [vmem:[#allocation3 + $0x158] sm:$0xff]
    %v1598 = vld [vmem:[#allocation3 + $0x160] sm:$0xff]
    %v1599 = vld [vmem:[#allocation3 + $0x168] sm:$0xff]
    %v1600 = vld [vmem:[#allocation3 + $0x170] sm:$0xff]
    %v1601 = vld [vmem:[#allocation3 + $0x178] sm:$0xff]
    %v1602 = vld [vmem:[#allocation3 + $0x180] sm:$0xff]
    %v1603 = vld [vmem:[#allocation3 + $0x188] sm:$0xff]
    %v1604 = vld [vmem:[#allocation3 + $0x190] sm:$0xff]
    %v1605 = vld [vmem:[#allocation3 + $0x198] sm:$0xff]
    %v1606 = vld [vmem:[#allocation3 + $0x1a0] sm:$0xff]
    %v1607 = vld [vmem:[#allocation3 + $0x1a8] sm:$0xff]
    %1608 = vmatpush.msra.mxu0 %v1605
    %1609 = vmatpush.msra.mxu0 %v1602
    %1610 = vmatpush.msra.mxu0 %v1599
    %1611 = vmatpush.msra.mxu0 %v1596
    %1612 = vmatpush.msra.mxu0 %v1593
    %1613 = vmatpush.msra.mxu0 %v1590
    %1614 = vmatpush.msra.mxu0 %v1587
    %1615 = vmatpush.msra.mxu0 %v1584
    %1616 = vmatpush.msra.mxu0 %v1581
    %1617 = vmatpush.msra.mxu0 %v1578
    %1618 = vmatpush.msra.mxu0 %v1575
    %1619 = vmatpush.msra.mxu0 %v1572
    %1620 = vmatpush.msra.mxu0 %v1569
    %1621 = vmatpush.msra.mxu0 %v1566
    %1622 = vmatpush.msra.mxu0 %v1563
    %1623 = vmatpush.msra.mxu0 %v1560
    %1624 = vmatmul.f32.gmra.mxu0 %v1272
    %v1625 = vpop.f32.mrf.mxu0
    %v1626 = vadd.f32 %v148, %v1625
    %1627 = vdwg.mxu0
    %1628 = vmatpush.msra.mxu0 %v1606
    %1629 = vmatpush.msra.mxu0 %v1603
    %1630 = vmatpush.msra.mxu0 %v1600
    %1631 = vmatpush.msra.mxu0 %v1597
    %1632 = vmatpush.msra.mxu0 %v1594
    %1633 = vmatpush.msra.mxu0 %v1591
    %1634 = vmatpush.msra.mxu0 %v1588
    %1635 = vmatpush.msra.mxu0 %v1585
    %1636 = vmatpush.msra.mxu0 %v1582
    %1637 = vmatpush.msra.mxu0 %v1579
    %1638 = vmatpush.msra.mxu0 %v1576
    %1639 = vmatpush.msra.mxu0 %v1573
    %1640 = vmatpush.msra.mxu0 %v1570
    %1641 = vmatpush.msra.mxu0 %v1567
    %1642 = vmatpush.msra.mxu0 %v1564
    %1643 = vmatpush.msra.mxu0 %v1561
    %1644 = vmatmul.f32.gmra.mxu0 %v1272
    %v1645 = vpop.f32.mrf.mxu0
    %v1646 = vadd.f32 %v149, %v1645
    %1647 = vdwg.mxu0
    %1648 = vmatpush.msra.mxu0 %v1607
    %1649 = vmatpush.msra.mxu0 %v1604
    %1650 = vmatpush.msra.mxu0 %v1601
    %1651 = vmatpush.msra.mxu0 %v1598
    %1652 = vmatpush.msra.mxu0 %v1595
    %1653 = vmatpush.msra.mxu0 %v1592
    %1654 = vmatpush.msra.mxu0 %v1589
    %1655 = vmatpush.msra.mxu0 %v1586
    %1656 = vmatpush.msra.mxu0 %v1583
    %1657 = vmatpush.msra.mxu0 %v1580
    %1658 = vmatpush.msra.mxu0 %v1577
    %1659 = vmatpush.msra.mxu0 %v1574
    %1660 = vmatpush.msra.mxu0 %v1571
    %1661 = vmatpush.msra.mxu0 %v1568
    %1662 = vmatpush.msra.mxu0 %v1565
    %1663 = vmatpush.msra.mxu0 %v1562
    %1664 = vmatmul.f32.gmra.mxu0 %v1272
    %v1665 = vpop.f32.mrf.mxu0
    %v1666 = vadd.f32 %v150, %v1665
    %1667 = vdwg.mxu0
    %v1670 = vrot.slane %v1626, 2
    %v1671 = vrot.slane %v1646, 2
    %v1674 = vadd.f32 %v94, %v1670
    %v1675 = vadd.f32 %v117, %v1671
    %v1676 = vxor.u32 %v1674, 2147483648
    %v1677 = vxor.u32 %v1675, 2147483648
    %v1678 = vmul.f32 %v1676, 1.442695
    %v1679 = vpow.pop %v1678
    %v1680 = vmul.f32 %v1677, 1.442695
    %v1681 = vpow.pop %v1680
    %v1682 = vadd.f32 %v1679, 1.0
    %v1683 = vadd.f32 %v1681, 1.0
    %v1684 = vrcp.pop %v1682
    %v1685 = vmul.f32 %v1682, %v1684
    %v1686 = vsub.f32 1.0, %v1685
    %v1687 = vmul.f32 %v1684, %v1686
    %v1688 = vadd.f32 %v1684, %v1687
    %vm1689 = vweird.f32 %v1682
    %vm1690 = vweird.f32 %v1684
    %vm1691 = vmor %vm1689, %vm1690
    %v1692 = vsel %vm1691, %v1684, %v1688
    %v1693 = vand.u32 2147483647, %v1682
    %vm1694 = vcmp.eq.f32.partialorder %v1693, 8.507059e+37
    %v1695 = vand.u32 %v1682, 2147483648
    %v1696 = vor.u32 1.1754944e-38, %v1695
    %v1697 = vsel %vm1694, %v1696, %v1692
    %v1698 = vmul.f32 1.0, %v1697
    %v1699 = vrcp.pop %v1683
    %v1700 = vmul.f32 %v1683, %v1699
    %v1701 = vsub.f32 1.0, %v1700
    %v1702 = vmul.f32 %v1699, %v1701
    %v1703 = vadd.f32 %v1699, %v1702
    %vm1704 = vweird.f32 %v1683
    %vm1705 = vweird.f32 %v1699
    %vm1706 = vmor %vm1704, %vm1705
    %v1707 = vsel %vm1706, %v1699, %v1703
    %v1708 = vand.u32 2147483647, %v1683
    %vm1709 = vcmp.eq.f32.partialorder %v1708, 8.507059e+37
    %v1710 = vand.u32 %v1683, 2147483648
    %v1711 = vor.u32 1.1754944e-38, %v1710
    %v1712 = vsel %vm1709, %v1711, %v1707
    %v1713 = vmul.f32 1.0, %v1712
    %v1715 = vrot.slane %v1666, 2
    %v1717 = vmul.f32 %v1698, %v1715
    %v1718 = vadd.f32 %v140, %v1717
    %v1719 = vtanh.pop %v1718
    %v1720 = vsub.f32 1.0, %v1713
    %v1721 = vmul.f32 %v1720, %v1719
    %v1722 = vrot.slane %v1254, 6
    %v1724 = vmul.f32 %v1713, %v1722
    %v1725 = vadd.f32 %v1721, %v1724
    %v1726 = vld [vmem:[#allocation6] sm:$0xff]
    %v1727 = vld [vmem:[#allocation6 + $0x8] sm:$0xff]
    %v1728 = vld [vmem:[#allocation6 + $0x10] sm:$0xff]
    %v1729 = vld [vmem:[#allocation6 + $0x18] sm:$0xff]
    %v1730 = vld [vmem:[#allocation6 + $0x20] sm:$0xff]
    %v1731 = vld [vmem:[#allocation6 + $0x28] sm:$0xff]
    %v1732 = vld [vmem:[#allocation6 + $0x30] sm:$0xff]
    %v1733 = vld [vmem:[#allocation6 + $0x38] sm:$0xff]
    %v1734 = vld [vmem:[#allocation6 + $0x40] sm:$0xff]
    %v1735 = vld [vmem:[#allocation6 + $0x48] sm:$0xff]
    %v1736 = vld [vmem:[#allocation6 + $0x50] sm:$0xff]
    %v1737 = vld [vmem:[#allocation6 + $0x58] sm:$0xff]
    %v1738 = vld [vmem:[#allocation6 + $0x60] sm:$0xff]
    %v1739 = vld [vmem:[#allocation6 + $0x68] sm:$0xff]
    %v1740 = vld [vmem:[#allocation6 + $0x70] sm:$0xff]
    %v1741 = vld [vmem:[#allocation6 + $0x78] sm:$0xff]
    %v1743 = vrot.slane %v1725, 6
    %1745 = vmatpush.msra.mxu0 %v1741
    %1746 = vmatpush.msra.mxu0 %v1740
    %1747 = vmatpush.msra.mxu0 %v1739
    %1748 = vmatpush.msra.mxu0 %v1738
    %1749 = vmatpush.msra.mxu0 %v1737
    %1750 = vmatpush.msra.mxu0 %v1736
    %1751 = vmatpush.msra.mxu0 %v1735
    %1752 = vmatpush.msra.mxu0 %v1734
    %1753 = vmatpush.msra.mxu0 %v1733
    %1754 = vmatpush.msra.mxu0 %v1732
    %1755 = vmatpush.msra.mxu0 %v1731
    %1756 = vmatpush.msra.mxu0 %v1730
    %1757 = vmatpush.msra.mxu0 %v1729
    %1758 = vmatpush.msra.mxu0 %v1728
    %1759 = vmatpush.msra.mxu0 %v1727
    %1760 = vmatpush.msra.mxu0 %v1726
    %1761 = vmatmul.f32.gmra.mxu0 %v1743
    %v1762 = vpop.f32.mrf.mxu0
    %v1763 = vadd.f32 %v163, %v1762
    %1764 = vdwg.mxu0
    %v1766 = vrot.slane %v1558, 2
    %v1767 = vld [vmem:[#allocation3 + $0x1b0] sm:$0xff]
    %v1768 = vld [vmem:[#allocation3 + $0x1b8] sm:$0xff]
    %v1769 = vld [vmem:[#allocation3 + $0x1c0] sm:$0xff]
    %v1770 = vld [vmem:[#allocation3 + $0x1c8] sm:$0xff]
    %v1771 = vld [vmem:[#allocation3 + $0x1d0] sm:$0xff]
    %v1772 = vld [vmem:[#allocation3 + $0x1d8] sm:$0xff]
    %v1773 = vld [vmem:[#allocation3 + $0x1e0] sm:$0xff]
    %v1774 = vld [vmem:[#allocation3 + $0x1e8] sm:$0xff]
    %v1775 = vld [vmem:[#allocation3 + $0x1f0] sm:$0xff]
    %v1776 = vld [vmem:[#allocation3 + $0x1f8] sm:$0xff]
    %v1777 = vld [vmem:[#allocation3 + $0x200] sm:$0xff]
    %v1778 = vld [vmem:[#allocation3 + $0x208] sm:$0xff]
    %v1779 = vld [vmem:[#allocation3 + $0x210] sm:$0xff]
    %v1780 = vld [vmem:[#allocation3 + $0x218] sm:$0xff]
    %v1781 = vld [vmem:[#allocation3 + $0x220] sm:$0xff]
    %v1782 = vld [vmem:[#allocation3 + $0x228] sm:$0xff]
    %v1783 = vld [vmem:[#allocation3 + $0x230] sm:$0xff]
    %v1784 = vld [vmem:[#allocation3 + $0x238] sm:$0xff]
    %v1785 = vld [vmem:[#allocation3 + $0x240] sm:$0xff]
    %v1786 = vld [vmem:[#allocation3 + $0x248] sm:$0xff]
    %v1787 = vld [vmem:[#allocation3 + $0x250] sm:$0xff]
    %v1788 = vld [vmem:[#allocation3 + $0x258] sm:$0xff]
    %v1789 = vld [vmem:[#allocation3 + $0x260] sm:$0xff]
    %v1790 = vld [vmem:[#allocation3 + $0x268] sm:$0xff]
    %v1791 = vld [vmem:[#allocation3 + $0x270] sm:$0xff]
    %v1792 = vld [vmem:[#allocation3 + $0x278] sm:$0xff]
    %v1793 = vld [vmem:[#allocation3 + $0x280] sm:$0xff]
    %v1794 = vld [vmem:[#allocation3 + $0x288] sm:$0xff]
    %v1795 = vld [vmem:[#allocation3 + $0x290] sm:$0xff]
    %v1796 = vld [vmem:[#allocation3 + $0x298] sm:$0xff]
    %v1797 = vld [vmem:[#allocation3 + $0x2a0] sm:$0xff]
    %v1798 = vld [vmem:[#allocation3 + $0x2a8] sm:$0xff]
    %v1799 = vld [vmem:[#allocation3 + $0x2b0] sm:$0xff]
    %v1800 = vld [vmem:[#allocation3 + $0x2b8] sm:$0xff]
    %v1801 = vld [vmem:[#allocation3 + $0x2c0] sm:$0xff]
    %v1802 = vld [vmem:[#allocation3 + $0x2c8] sm:$0xff]
    %v1803 = vld [vmem:[#allocation3 + $0x2d0] sm:$0xff]
    %v1804 = vld [vmem:[#allocation3 + $0x2d8] sm:$0xff]
    %v1805 = vld [vmem:[#allocation3 + $0x2e0] sm:$0xff]
    %v1806 = vld [vmem:[#allocation3 + $0x2e8] sm:$0xff]
    %v1807 = vld [vmem:[#allocation3 + $0x2f0] sm:$0xff]
    %v1808 = vld [vmem:[#allocation3 + $0x2f8] sm:$0xff]
    %v1809 = vld [vmem:[#allocation3 + $0x300] sm:$0xff]
    %v1810 = vld [vmem:[#allocation3 + $0x308] sm:$0xff]
    %v1811 = vld [vmem:[#allocation3 + $0x310] sm:$0xff]
    %v1812 = vld [vmem:[#allocation3 + $0x318] sm:$0xff]
    %v1813 = vld [vmem:[#allocation3 + $0x320] sm:$0xff]
    %v1814 = vld [vmem:[#allocation3 + $0x328] sm:$0xff]
    %v1815 = vld [vmem:[#allocation3 + $0x330] sm:$0xff]
    %v1816 = vld [vmem:[#allocation3 + $0x338] sm:$0xff]
    %v1817 = vld [vmem:[#allocation3 + $0x340] sm:$0xff]
    %v1818 = vld [vmem:[#allocation3 + $0x348] sm:$0xff]
    %v1819 = vld [vmem:[#allocation3 + $0x350] sm:$0xff]
    %v1820 = vld [vmem:[#allocation3 + $0x358] sm:$0xff]
    %v1821 = vld [vmem:[#allocation3 + $0x360] sm:$0xff]
    %v1822 = vld [vmem:[#allocation3 + $0x368] sm:$0xff]
    %v1823 = vld [vmem:[#allocation3 + $0x370] sm:$0xff]
    %v1824 = vld [vmem:[#allocation3 + $0x378] sm:$0xff]
    %v1825 = vld [vmem:[#allocation3 + $0x380] sm:$0xff]
    %v1826 = vld [vmem:[#allocation3 + $0x388] sm:$0xff]
    %v1827 = vld [vmem:[#allocation3 + $0x390] sm:$0xff]
    %v1828 = vld [vmem:[#allocation3 + $0x398] sm:$0xff]
    %v1829 = vld [vmem:[#allocation3 + $0x3a0] sm:$0xff]
    %v1830 = vld [vmem:[#allocation3 + $0x3a8] sm:$0xff]
    %v1831 = vld [vmem:[#allocation3 + $0x3b0] sm:$0xff]
    %v1832 = vld [vmem:[#allocation3 + $0x3b8] sm:$0xff]
    %v1833 = vld [vmem:[#allocation3 + $0x3c0] sm:$0xff]
    %v1834 = vld [vmem:[#allocation3 + $0x3c8] sm:$0xff]
    %v1835 = vld [vmem:[#allocation3 + $0x3d0] sm:$0xff]
    %v1836 = vld [vmem:[#allocation3 + $0x3d8] sm:$0xff]
    %v1837 = vld [vmem:[#allocation3 + $0x3e0] sm:$0xff]
    %v1838 = vld [vmem:[#allocation3 + $0x3e8] sm:$0xff]
    %v1839 = vld [vmem:[#allocation3 + $0x3f0] sm:$0xff]
    %v1840 = vld [vmem:[#allocation3 + $0x3f8] sm:$0xff]
    %v1841 = vld [vmem:[#allocation3 + $0x400] sm:$0xff]
    %v1842 = vld [vmem:[#allocation3 + $0x408] sm:$0xff]
    %v1843 = vld [vmem:[#allocation3 + $0x410] sm:$0xff]
    %v1844 = vld [vmem:[#allocation3 + $0x418] sm:$0xff]
    %v1845 = vld [vmem:[#allocation3 + $0x420] sm:$0xff]
    %v1846 = vld [vmem:[#allocation3 + $0x428] sm:$0xff]
    %v1847 = vld [vmem:[#allocation3 + $0x430] sm:$0xff]
    %v1848 = vld [vmem:[#allocation3 + $0x438] sm:$0xff]
    %v1849 = vld [vmem:[#allocation3 + $0x440] sm:$0xff]
    %v1850 = vld [vmem:[#allocation3 + $0x448] sm:$0xff]
    %v1851 = vld [vmem:[#allocation3 + $0x450] sm:$0xff]
    %v1852 = vld [vmem:[#allocation3 + $0x458] sm:$0xff]
    %v1853 = vld [vmem:[#allocation3 + $0x460] sm:$0xff]
    %v1854 = vld [vmem:[#allocation3 + $0x468] sm:$0xff]
    %v1855 = vld [vmem:[#allocation3 + $0x470] sm:$0xff]
    %v1856 = vld [vmem:[#allocation3 + $0x478] sm:$0xff]
    %v1857 = vld [vmem:[#allocation3 + $0x480] sm:$0xff]
    %v1858 = vld [vmem:[#allocation3 + $0x488] sm:$0xff]
    %v1859 = vld [vmem:[#allocation3 + $0x490] sm:$0xff]
    %v1860 = vld [vmem:[#allocation3 + $0x498] sm:$0xff]
    %v1861 = vld [vmem:[#allocation3 + $0x4a0] sm:$0xff]
    %v1862 = vld [vmem:[#allocation3 + $0x4a8] sm:$0xff]
    %v1863 = vrot.slane %v1766, 6
    %1865 = vmatpush.msra.mxu0 %v1812
    %1866 = vmatpush.msra.mxu0 %v1809
    %1867 = vmatpush.msra.mxu0 %v1806
    %1868 = vmatpush.msra.mxu0 %v1803
    %1869 = vmatpush.msra.mxu0 %v1800
    %1870 = vmatpush.msra.mxu0 %v1797
    %1871 = vmatpush.msra.mxu0 %v1794
    %1872 = vmatpush.msra.mxu0 %v1791
    %1873 = vmatpush.msra.mxu0 %v1788
    %1874 = vmatpush.msra.mxu0 %v1785
    %1875 = vmatpush.msra.mxu0 %v1782
    %1876 = vmatpush.msra.mxu0 %v1779
    %1877 = vmatpush.msra.mxu0 %v1776
    %1878 = vmatpush.msra.mxu0 %v1773
    %1879 = vmatpush.msra.mxu0 %v1770
    %1880 = vmatpush.msra.mxu0 %v1767
    %1881 = vmatmul.f32.gmra.mxu0 %v1743
    %v1882 = vpop.f32.mrf.mxu0
    %v1883 = vadd.f32 %v157, %v1882
    %1884 = vdwg.mxu0
    %1885 = vmatpush.msra.mxu0 %v1860
    %1886 = vmatpush.msra.mxu0 %v1857
    %1887 = vmatpush.msra.mxu0 %v1854
    %1888 = vmatpush.msra.mxu0 %v1851
    %1889 = vmatpush.msra.mxu0 %v1848
    %1890 = vmatpush.msra.mxu0 %v1845
    %1891 = vmatpush.msra.mxu0 %v1842
    %1892 = vmatpush.msra.mxu0 %v1839
    %1893 = vmatpush.msra.mxu0 %v1836
    %1894 = vmatpush.msra.mxu0 %v1833
    %1895 = vmatpush.msra.mxu0 %v1830
    %1896 = vmatpush.msra.mxu0 %v1827
    %1897 = vmatpush.msra.mxu0 %v1824
    %1898 = vmatpush.msra.mxu0 %v1821
    %1899 = vmatpush.msra.mxu0 %v1818
    %1900 = vmatpush.msra.mxu0 %v1815
    %1901 = vmatmul.f32.gmra.mxu0 %v1863
    %v1902 = vpop.f32.mrf.mxu0
    %v1903 = vadd.f32 %v1883, %v1902
    %1904 = vdwg.mxu0
    %1905 = vmatpush.msra.mxu0 %v1813
    %1906 = vmatpush.msra.mxu0 %v1810
    %1907 = vmatpush.msra.mxu0 %v1807
    %1908 = vmatpush.msra.mxu0 %v1804
    %1909 = vmatpush.msra.mxu0 %v1801
    %1910 = vmatpush.msra.mxu0 %v1798
    %1911 = vmatpush.msra.mxu0 %v1795
    %1912 = vmatpush.msra.mxu0 %v1792
    %1913 = vmatpush.msra.mxu0 %v1789
    %1914 = vmatpush.msra.mxu0 %v1786
    %1915 = vmatpush.msra.mxu0 %v1783
    %1916 = vmatpush.msra.mxu0 %v1780
    %1917 = vmatpush.msra.mxu0 %v1777
    %1918 = vmatpush.msra.mxu0 %v1774
    %1919 = vmatpush.msra.mxu0 %v1771
    %1920 = vmatpush.msra.mxu0 %v1768
    %1921 = vmatmul.f32.gmra.mxu0 %v1743
    %v1922 = vpop.f32.mrf.mxu0
    %v1923 = vadd.f32 %v158, %v1922
    %1924 = vdwg.mxu0
    %1925 = vmatpush.msra.mxu0 %v1861
    %1926 = vmatpush.msra.mxu0 %v1858
    %1927 = vmatpush.msra.mxu0 %v1855
    %1928 = vmatpush.msra.mxu0 %v1852
    %1929 = vmatpush.msra.mxu0 %v1849
    %1930 = vmatpush.msra.mxu0 %v1846
    %1931 = vmatpush.msra.mxu0 %v1843
    %1932 = vmatpush.msra.mxu0 %v1840
    %1933 = vmatpush.msra.mxu0 %v1837
    %1934 = vmatpush.msra.mxu0 %v1834
    %1935 = vmatpush.msra.mxu0 %v1831
    %1936 = vmatpush.msra.mxu0 %v1828
    %1937 = vmatpush.msra.mxu0 %v1825
    %1938 = vmatpush.msra.mxu0 %v1822
    %1939 = vmatpush.msra.mxu0 %v1819
    %1940 = vmatpush.msra.mxu0 %v1816
    %1941 = vmatmul.f32.gmra.mxu0 %v1863
    %v1942 = vpop.f32.mrf.mxu0
    %v1943 = vadd.f32 %v1923, %v1942
    %1944 = vdwg.mxu0
    %1945 = vmatpush.msra.mxu0 %v1814
    %1946 = vmatpush.msra.mxu0 %v1811
    %1947 = vmatpush.msra.mxu0 %v1808
    %1948 = vmatpush.msra.mxu0 %v1805
    %1949 = vmatpush.msra.mxu0 %v1802
    %1950 = vmatpush.msra.mxu0 %v1799
    %1951 = vmatpush.msra.mxu0 %v1796
    %1952 = vmatpush.msra.mxu0 %v1793
    %1953 = vmatpush.msra.mxu0 %v1790
    %1954 = vmatpush.msra.mxu0 %v1787
    %1955 = vmatpush.msra.mxu0 %v1784
    %1956 = vmatpush.msra.mxu0 %v1781
    %1957 = vmatpush.msra.mxu0 %v1778
    %1958 = vmatpush.msra.mxu0 %v1775
    %1959 = vmatpush.msra.mxu0 %v1772
    %1960 = vmatpush.msra.mxu0 %v1769
    %1961 = vmatmul.f32.gmra.mxu0 %v1743
    %v1962 = vpop.f32.mrf.mxu0
    %v1963 = vadd.f32 %v159, %v1962
    %1964 = vdwg.mxu0
    %1965 = vmatpush.msra.mxu0 %v1862
    %1966 = vmatpush.msra.mxu0 %v1859
    %1967 = vmatpush.msra.mxu0 %v1856
    %1968 = vmatpush.msra.mxu0 %v1853
    %1969 = vmatpush.msra.mxu0 %v1850
    %1970 = vmatpush.msra.mxu0 %v1847
    %1971 = vmatpush.msra.mxu0 %v1844
    %1972 = vmatpush.msra.mxu0 %v1841
    %1973 = vmatpush.msra.mxu0 %v1838
    %1974 = vmatpush.msra.mxu0 %v1835
    %1975 = vmatpush.msra.mxu0 %v1832
    %1976 = vmatpush.msra.mxu0 %v1829
    %1977 = vmatpush.msra.mxu0 %v1826
    %1978 = vmatpush.msra.mxu0 %v1823
    %1979 = vmatpush.msra.mxu0 %v1820
    %1980 = vmatpush.msra.mxu0 %v1817
    %1981 = vmatmul.f32.gmra.mxu0 %v1863
    %v1982 = vpop.f32.mrf.mxu0
    %v1983 = vadd.f32 %v1963, %v1982
    %1984 = vdwg.mxu0
    %v1985 = vxor.u32 %v1903, 2147483648
    %v1986 = vxor.u32 %v1943, 2147483648
    %v1987 = vmul.f32 %v1985, 1.442695
    %v1988 = vpow.pop %v1987
    %v1989 = vmul.f32 %v1986, 1.442695
    %v1990 = vpow.pop %v1989
    %v1991 = vadd.f32 %v1988, 1.0
    %v1992 = vadd.f32 %v1990, 1.0
    %v1993 = vrcp.pop %v1991
    %v1994 = vmul.f32 %v1991, %v1993
    %v1995 = vsub.f32 1.0, %v1994
    %v1996 = vmul.f32 %v1993, %v1995
    %v1997 = vadd.f32 %v1993, %v1996
    %vm1998 = vweird.f32 %v1991
    %vm1999 = vweird.f32 %v1993
    %vm2000 = vmor %vm1998, %vm1999
    %v2001 = vsel %vm2000, %v1993, %v1997
    %v2002 = vand.u32 2147483647, %v1991
    %vm2003 = vcmp.eq.f32.partialorder %v2002, 8.507059e+37
    %v2004 = vand.u32 %v1991, 2147483648
    %v2005 = vor.u32 1.1754944e-38, %v2004
    %v2006 = vsel %vm2003, %v2005, %v2001
    %v2007 = vmul.f32 1.0, %v2006
    %v2008 = vrcp.pop %v1992
    %v2009 = vmul.f32 %v1992, %v2008
    %v2010 = vsub.f32 1.0, %v2009
    %v2011 = vmul.f32 %v2008, %v2010
    %v2012 = vadd.f32 %v2008, %v2011
    %vm2013 = vweird.f32 %v1992
    %vm2014 = vweird.f32 %v2008
    %vm2015 = vmor %vm2013, %vm2014
    %v2016 = vsel %vm2015, %v2008, %v2012
    %v2017 = vand.u32 2147483647, %v1992
    %vm2018 = vcmp.eq.f32.partialorder %v2017, 8.507059e+37
    %v2019 = vand.u32 %v1992, 2147483648
    %v2020 = vor.u32 1.1754944e-38, %v2019
    %v2021 = vsel %vm2018, %v2020, %v2016
    %v2022 = vmul.f32 1.0, %v2021
    %v2023 = vmul.f32 %v2007, %v1983
    %v2024 = vadd.f32 %v1763, %v2023
    %v2025 = vtanh.pop %v2024
    %v2026 = vsub.f32 1.0, %v2022
    %v2027 = vmul.f32 %v2026, %v2025
    %v2028 = vmul.f32 %v2022, %v1558
    %v2029 = vadd.f32 %v2027, %v2028
    %2030 = vst [vmem:[#allocation2 + $0x6] sm:$0x3] %v2029
    %v2031 = vld [vmem:[#allocation3 + $0x30] sm:$0xff]
    %v2032 = vld [vmem:[#allocation3 + $0x38] sm:$0xff]
    %v2033 = vld [vmem:[#allocation3 + $0x40] sm:$0xff]
    %v2034 = vld [vmem:[#allocation3 + $0x48] sm:$0xff]
    %v2035 = vld [vmem:[#allocation3 + $0x50] sm:$0xff]
    %v2036 = vld [vmem:[#allocation3 + $0x58] sm:$0xff]
    %v2037 = vld [vmem:[#allocation3 + $0x60] sm:$0xff]
    %v2038 = vld [vmem:[#allocation3 + $0x68] sm:$0xff]
    %v2039 = vld [vmem:[#allocation3 + $0x70] sm:$0xff]
    %v2040 = vld [vmem:[#allocation3 + $0x78] sm:$0xff]
    %v2041 = vld [vmem:[#allocation3 + $0x80] sm:$0xff]
    %v2042 = vld [vmem:[#allocation3 + $0x88] sm:$0xff]
    %v2043 = vld [vmem:[#allocation3 + $0x90] sm:$0xff]
    %v2044 = vld [vmem:[#allocation3 + $0x98] sm:$0xff]
    %v2045 = vld [vmem:[#allocation3 + $0xa0] sm:$0xff]
    %v2046 = vld [vmem:[#allocation3 + $0xa8] sm:$0xff]
    %v2047 = vld [vmem:[#allocation3 + $0xb0] sm:$0xff]
    %v2048 = vld [vmem:[#allocation3 + $0xb8] sm:$0xff]
    %v2049 = vld [vmem:[#allocation3 + $0xc0] sm:$0xff]
    %v2050 = vld [vmem:[#allocation3 + $0xc8] sm:$0xff]
    %v2051 = vld [vmem:[#allocation3 + $0xd0] sm:$0xff]
    %v2052 = vld [vmem:[#allocation3 + $0xd8] sm:$0xff]
    %v2053 = vld [vmem:[#allocation3 + $0xe0] sm:$0xff]
    %v2054 = vld [vmem:[#allocation3 + $0xe8] sm:$0xff]
    %v2055 = vld [vmem:[#allocation3 + $0xf0] sm:$0xff]
    %v2056 = vld [vmem:[#allocation3 + $0xf8] sm:$0xff]
    %v2057 = vld [vmem:[#allocation3 + $0x100] sm:$0xff]
    %v2058 = vld [vmem:[#allocation3 + $0x108] sm:$0xff]
    %v2059 = vld [vmem:[#allocation3 + $0x110] sm:$0xff]
    %v2060 = vld [vmem:[#allocation3 + $0x118] sm:$0xff]
    %v2061 = vld [vmem:[#allocation3 + $0x120] sm:$0xff]
    %v2062 = vld [vmem:[#allocation3 + $0x128] sm:$0xff]
    %v2063 = vld [vmem:[#allocation3 + $0x130] sm:$0xff]
    %v2064 = vld [vmem:[#allocation3 + $0x138] sm:$0xff]
    %v2065 = vld [vmem:[#allocation3 + $0x140] sm:$0xff]
    %v2066 = vld [vmem:[#allocation3 + $0x148] sm:$0xff]
    %v2067 = vld [vmem:[#allocation3 + $0x150] sm:$0xff]
    %v2068 = vld [vmem:[#allocation3 + $0x158] sm:$0xff]
    %v2069 = vld [vmem:[#allocation3 + $0x160] sm:$0xff]
    %v2070 = vld [vmem:[#allocation3 + $0x168] sm:$0xff]
    %v2071 = vld [vmem:[#allocation3 + $0x170] sm:$0xff]
    %v2072 = vld [vmem:[#allocation3 + $0x178] sm:$0xff]
    %v2073 = vld [vmem:[#allocation3 + $0x180] sm:$0xff]
    %v2074 = vld [vmem:[#allocation3 + $0x188] sm:$0xff]
    %v2075 = vld [vmem:[#allocation3 + $0x190] sm:$0xff]
    %v2076 = vld [vmem:[#allocation3 + $0x198] sm:$0xff]
    %v2077 = vld [vmem:[#allocation3 + $0x1a0] sm:$0xff]
    %v2078 = vld [vmem:[#allocation3 + $0x1a8] sm:$0xff]
    %2079 = vmatpush.msra.mxu0 %v2076
    %2080 = vmatpush.msra.mxu0 %v2073
    %2081 = vmatpush.msra.mxu0 %v2070
    %2082 = vmatpush.msra.mxu0 %v2067
    %2083 = vmatpush.msra.mxu0 %v2064
    %2084 = vmatpush.msra.mxu0 %v2061
    %2085 = vmatpush.msra.mxu0 %v2058
    %2086 = vmatpush.msra.mxu0 %v2055
    %2087 = vmatpush.msra.mxu0 %v2052
    %2088 = vmatpush.msra.mxu0 %v2049
    %2089 = vmatpush.msra.mxu0 %v2046
    %2090 = vmatpush.msra.mxu0 %v2043
    %2091 = vmatpush.msra.mxu0 %v2040
    %2092 = vmatpush.msra.mxu0 %v2037
    %2093 = vmatpush.msra.mxu0 %v2034
    %2094 = vmatpush.msra.mxu0 %v2031
    %2095 = vmatmul.f32.gmra.mxu0 %v1743
    %v2096 = vpop.f32.mrf.mxu0
    %v2097 = vadd.f32 %v148, %v2096
    %2098 = vdwg.mxu0
    %2099 = vmatpush.msra.mxu0 %v2077
    %2100 = vmatpush.msra.mxu0 %v2074
    %2101 = vmatpush.msra.mxu0 %v2071
    %2102 = vmatpush.msra.mxu0 %v2068
    %2103 = vmatpush.msra.mxu0 %v2065
    %2104 = vmatpush.msra.mxu0 %v2062
    %2105 = vmatpush.msra.mxu0 %v2059
    %2106 = vmatpush.msra.mxu0 %v2056
    %2107 = vmatpush.msra.mxu0 %v2053
    %2108 = vmatpush.msra.mxu0 %v2050
    %2109 = vmatpush.msra.mxu0 %v2047
    %2110 = vmatpush.msra.mxu0 %v2044
    %2111 = vmatpush.msra.mxu0 %v2041
    %2112 = vmatpush.msra.mxu0 %v2038
    %2113 = vmatpush.msra.mxu0 %v2035
    %2114 = vmatpush.msra.mxu0 %v2032
    %2115 = vmatmul.f32.gmra.mxu0 %v1743
    %v2116 = vpop.f32.mrf.mxu0
    %v2117 = vadd.f32 %v149, %v2116
    %2118 = vdwg.mxu0
    %2119 = vmatpush.msra.mxu0 %v2078
    %2120 = vmatpush.msra.mxu0 %v2075
    %2121 = vmatpush.msra.mxu0 %v2072
    %2122 = vmatpush.msra.mxu0 %v2069
    %2123 = vmatpush.msra.mxu0 %v2066
    %2124 = vmatpush.msra.mxu0 %v2063
    %2125 = vmatpush.msra.mxu0 %v2060
    %2126 = vmatpush.msra.mxu0 %v2057
    %2127 = vmatpush.msra.mxu0 %v2054
    %2128 = vmatpush.msra.mxu0 %v2051
    %2129 = vmatpush.msra.mxu0 %v2048
    %2130 = vmatpush.msra.mxu0 %v2045
    %2131 = vmatpush.msra.mxu0 %v2042
    %2132 = vmatpush.msra.mxu0 %v2039
    %2133 = vmatpush.msra.mxu0 %v2036
    %2134 = vmatpush.msra.mxu0 %v2033
    %2135 = vmatmul.f32.gmra.mxu0 %v1743
    %v2136 = vpop.f32.mrf.mxu0
    %v2137 = vadd.f32 %v150, %v2136
    %2138 = vdwg.mxu0
    %v2139 = vadd.f32 %v97, %v2097
    %v2140 = vadd.f32 %v120, %v2117
    %v2141 = vxor.u32 %v2139, 2147483648
    %v2142 = vxor.u32 %v2140, 2147483648
    %v2143 = vmul.f32 %v2141, 1.442695
    %v2144 = vpow.pop %v2143
    %v2145 = vmul.f32 %v2142, 1.442695
    %v2146 = vpow.pop %v2145
    %v2147 = vadd.f32 %v2144, 1.0
    %v2148 = vadd.f32 %v2146, 1.0
    %v2149 = vrcp.pop %v2147
    %v2150 = vmul.f32 %v2147, %v2149
    %v2151 = vsub.f32 1.0, %v2150
    %v2152 = vmul.f32 %v2149, %v2151
    %v2153 = vadd.f32 %v2149, %v2152
    %vm2154 = vweird.f32 %v2147
    %vm2155 = vweird.f32 %v2149
    %vm2156 = vmor %vm2154, %vm2155
    %v2157 = vsel %vm2156, %v2149, %v2153
    %v2158 = vand.u32 2147483647, %v2147
    %vm2159 = vcmp.eq.f32.partialorder %v2158, 8.507059e+37
    %v2160 = vand.u32 %v2147, 2147483648
    %v2161 = vor.u32 1.1754944e-38, %v2160
    %v2162 = vsel %vm2159, %v2161, %v2157
    %v2163 = vmul.f32 1.0, %v2162
    %v2164 = vrcp.pop %v2148
    %v2165 = vmul.f32 %v2148, %v2164
    %v2166 = vsub.f32 1.0, %v2165
    %v2167 = vmul.f32 %v2164, %v2166
    %v2168 = vadd.f32 %v2164, %v2167
    %vm2169 = vweird.f32 %v2148
    %vm2170 = vweird.f32 %v2164
    %vm2171 = vmor %vm2169, %vm2170
    %v2172 = vsel %vm2171, %v2164, %v2168
    %v2173 = vand.u32 2147483647, %v2148
    %vm2174 = vcmp.eq.f32.partialorder %v2173, 8.507059e+37
    %v2175 = vand.u32 %v2148, 2147483648
    %v2176 = vor.u32 1.1754944e-38, %v2175
    %v2177 = vsel %vm2174, %v2176, %v2172
    %v2178 = vmul.f32 1.0, %v2177
    %v2179 = vmul.f32 %v2163, %v2137
    %v2180 = vadd.f32 %v143, %v2179
    %v2181 = vtanh.pop %v2180
    %v2182 = vsub.f32 1.0, %v2178
    %v2183 = vmul.f32 %v2182, %v2181
    %v2184 = vmul.f32 %v2178, %v1743
    %v2185 = vadd.f32 %v2183, %v2184
    %v2186 = vld [vmem:[#allocation6] sm:$0xff]
    %v2187 = vld [vmem:[#allocation6 + $0x8] sm:$0xff]
    %v2188 = vld [vmem:[#allocation6 + $0x10] sm:$0xff]
    %v2189 = vld [vmem:[#allocation6 + $0x18] sm:$0xff]
    %v2190 = vld [vmem:[#allocation6 + $0x20] sm:$0xff]
    %v2191 = vld [vmem:[#allocation6 + $0x28] sm:$0xff]
    %v2192 = vld [vmem:[#allocation6 + $0x30] sm:$0xff]
    %v2193 = vld [vmem:[#allocation6 + $0x38] sm:$0xff]
    %v2194 = vld [vmem:[#allocation6 + $0x40] sm:$0xff]
    %v2195 = vld [vmem:[#allocation6 + $0x48] sm:$0xff]
    %v2196 = vld [vmem:[#allocation6 + $0x50] sm:$0xff]
    %v2197 = vld [vmem:[#allocation6 + $0x58] sm:$0xff]
    %v2198 = vld [vmem:[#allocation6 + $0x60] sm:$0xff]
    %v2199 = vld [vmem:[#allocation6 + $0x68] sm:$0xff]
    %v2200 = vld [vmem:[#allocation6 + $0x70] sm:$0xff]
    %v2201 = vld [vmem:[#allocation6 + $0x78] sm:$0xff]
    %2202 = vmatpush.msra.mxu0 %v2201
    %2203 = vmatpush.msra.mxu0 %v2200
    %2204 = vmatpush.msra.mxu0 %v2199
    %2205 = vmatpush.msra.mxu0 %v2198
    %2206 = vmatpush.msra.mxu0 %v2197
    %2207 = vmatpush.msra.mxu0 %v2196
    %2208 = vmatpush.msra.mxu0 %v2195
    %2209 = vmatpush.msra.mxu0 %v2194
    %2210 = vmatpush.msra.mxu0 %v2193
    %2211 = vmatpush.msra.mxu0 %v2192
    %2212 = vmatpush.msra.mxu0 %v2191
    %2213 = vmatpush.msra.mxu0 %v2190
    %2214 = vmatpush.msra.mxu0 %v2189
    %2215 = vmatpush.msra.mxu0 %v2188
    %2216 = vmatpush.msra.mxu0 %v2187
    %2217 = vmatpush.msra.mxu0 %v2186
    %2218 = vmatmul.f32.gmra.mxu0 %v2185
    %v2219 = vpop.f32.mrf.mxu0
    %v2220 = vadd.f32 %v163, %v2219
    %2221 = vdwg.mxu0
    %v2222 = vld [vmem:[#allocation3 + $0x1b0] sm:$0xff]
    %v2223 = vld [vmem:[#allocation3 + $0x1b8] sm:$0xff]
    %v2224 = vld [vmem:[#allocation3 + $0x1c0] sm:$0xff]
    %v2225 = vld [vmem:[#allocation3 + $0x1c8] sm:$0xff]
    %v2226 = vld [vmem:[#allocation3 + $0x1d0] sm:$0xff]
    %v2227 = vld [vmem:[#allocation3 + $0x1d8] sm:$0xff]
    %v2228 = vld [vmem:[#allocation3 + $0x1e0] sm:$0xff]
    %v2229 = vld [vmem:[#allocation3 + $0x1e8] sm:$0xff]
    %v2230 = vld [vmem:[#allocation3 + $0x1f0] sm:$0xff]
    %v2231 = vld [vmem:[#allocation3 + $0x1f8] sm:$0xff]
    %v2232 = vld [vmem:[#allocation3 + $0x200] sm:$0xff]
    %v2233 = vld [vmem:[#allocation3 + $0x208] sm:$0xff]
    %v2234 = vld [vmem:[#allocation3 + $0x210] sm:$0xff]
    %v2235 = vld [vmem:[#allocation3 + $0x218] sm:$0xff]
    %v2236 = vld [vmem:[#allocation3 + $0x220] sm:$0xff]
    %v2237 = vld [vmem:[#allocation3 + $0x228] sm:$0xff]
    %v2238 = vld [vmem:[#allocation3 + $0x230] sm:$0xff]
    %v2239 = vld [vmem:[#allocation3 + $0x238] sm:$0xff]
    %v2240 = vld [vmem:[#allocation3 + $0x240] sm:$0xff]
    %v2241 = vld [vmem:[#allocation3 + $0x248] sm:$0xff]
    %v2242 = vld [vmem:[#allocation3 + $0x250] sm:$0xff]
    %v2243 = vld [vmem:[#allocation3 + $0x258] sm:$0xff]
    %v2244 = vld [vmem:[#allocation3 + $0x260] sm:$0xff]
    %v2245 = vld [vmem:[#allocation3 + $0x268] sm:$0xff]
    %v2246 = vld [vmem:[#allocation3 + $0x270] sm:$0xff]
    %v2247 = vld [vmem:[#allocation3 + $0x278] sm:$0xff]
    %v2248 = vld [vmem:[#allocation3 + $0x280] sm:$0xff]
    %v2249 = vld [vmem:[#allocation3 + $0x288] sm:$0xff]
    %v2250 = vld [vmem:[#allocation3 + $0x290] sm:$0xff]
    %v2251 = vld [vmem:[#allocation3 + $0x298] sm:$0xff]
    %v2252 = vld [vmem:[#allocation3 + $0x2a0] sm:$0xff]
    %v2253 = vld [vmem:[#allocation3 + $0x2a8] sm:$0xff]
    %v2254 = vld [vmem:[#allocation3 + $0x2b0] sm:$0xff]
    %v2255 = vld [vmem:[#allocation3 + $0x2b8] sm:$0xff]
    %v2256 = vld [vmem:[#allocation3 + $0x2c0] sm:$0xff]
    %v2257 = vld [vmem:[#allocation3 + $0x2c8] sm:$0xff]
    %v2258 = vld [vmem:[#allocation3 + $0x2d0] sm:$0xff]
    %v2259 = vld [vmem:[#allocation3 + $0x2d8] sm:$0xff]
    %v2260 = vld [vmem:[#allocation3 + $0x2e0] sm:$0xff]
    %v2261 = vld [vmem:[#allocation3 + $0x2e8] sm:$0xff]
    %v2262 = vld [vmem:[#allocation3 + $0x2f0] sm:$0xff]
    %v2263 = vld [vmem:[#allocation3 + $0x2f8] sm:$0xff]
    %v2264 = vld [vmem:[#allocation3 + $0x300] sm:$0xff]
    %v2265 = vld [vmem:[#allocation3 + $0x308] sm:$0xff]
    %v2266 = vld [vmem:[#allocation3 + $0x310] sm:$0xff]
    %v2267 = vld [vmem:[#allocation3 + $0x318] sm:$0xff]
    %v2268 = vld [vmem:[#allocation3 + $0x320] sm:$0xff]
    %v2269 = vld [vmem:[#allocation3 + $0x328] sm:$0xff]
    %v2270 = vld [vmem:[#allocation3 + $0x330] sm:$0xff]
    %v2271 = vld [vmem:[#allocation3 + $0x338] sm:$0xff]
    %v2272 = vld [vmem:[#allocation3 + $0x340] sm:$0xff]
    %v2273 = vld [vmem:[#allocation3 + $0x348] sm:$0xff]
    %v2274 = vld [vmem:[#allocation3 + $0x350] sm:$0xff]
    %v2275 = vld [vmem:[#allocation3 + $0x358] sm:$0xff]
    %v2276 = vld [vmem:[#allocation3 + $0x360] sm:$0xff]
    %v2277 = vld [vmem:[#allocation3 + $0x368] sm:$0xff]
    %v2278 = vld [vmem:[#allocation3 + $0x370] sm:$0xff]
    %v2279 = vld [vmem:[#allocation3 + $0x378] sm:$0xff]
    %v2280 = vld [vmem:[#allocation3 + $0x380] sm:$0xff]
    %v2281 = vld [vmem:[#allocation3 + $0x388] sm:$0xff]
    %v2282 = vld [vmem:[#allocation3 + $0x390] sm:$0xff]
    %v2283 = vld [vmem:[#allocation3 + $0x398] sm:$0xff]
    %v2284 = vld [vmem:[#allocation3 + $0x3a0] sm:$0xff]
    %v2285 = vld [vmem:[#allocation3 + $0x3a8] sm:$0xff]
    %v2286 = vld [vmem:[#allocation3 + $0x3b0] sm:$0xff]
    %v2287 = vld [vmem:[#allocation3 + $0x3b8] sm:$0xff]
    %v2288 = vld [vmem:[#allocation3 + $0x3c0] sm:$0xff]
    %v2289 = vld [vmem:[#allocation3 + $0x3c8] sm:$0xff]
    %v2290 = vld [vmem:[#allocation3 + $0x3d0] sm:$0xff]
    %v2291 = vld [vmem:[#allocation3 + $0x3d8] sm:$0xff]
    %v2292 = vld [vmem:[#allocation3 + $0x3e0] sm:$0xff]
    %v2293 = vld [vmem:[#allocation3 + $0x3e8] sm:$0xff]
    %v2294 = vld [vmem:[#allocation3 + $0x3f0] sm:$0xff]
    %v2295 = vld [vmem:[#allocation3 + $0x3f8] sm:$0xff]
    %v2296 = vld [vmem:[#allocation3 + $0x400] sm:$0xff]
    %v2297 = vld [vmem:[#allocation3 + $0x408] sm:$0xff]
    %v2298 = vld [vmem:[#allocation3 + $0x410] sm:$0xff]
    %v2299 = vld [vmem:[#allocation3 + $0x418] sm:$0xff]
    %v2300 = vld [vmem:[#allocation3 + $0x420] sm:$0xff]
    %v2301 = vld [vmem:[#allocation3 + $0x428] sm:$0xff]
    %v2302 = vld [vmem:[#allocation3 + $0x430] sm:$0xff]
    %v2303 = vld [vmem:[#allocation3 + $0x438] sm:$0xff]
    %v2304 = vld [vmem:[#allocation3 + $0x440] sm:$0xff]
    %v2305 = vld [vmem:[#allocation3 + $0x448] sm:$0xff]
    %v2306 = vld [vmem:[#allocation3 + $0x450] sm:$0xff]
    %v2307 = vld [vmem:[#allocation3 + $0x458] sm:$0xff]
    %v2308 = vld [vmem:[#allocation3 + $0x460] sm:$0xff]
    %v2309 = vld [vmem:[#allocation3 + $0x468] sm:$0xff]
    %v2310 = vld [vmem:[#allocation3 + $0x470] sm:$0xff]
    %v2311 = vld [vmem:[#allocation3 + $0x478] sm:$0xff]
    %v2312 = vld [vmem:[#allocation3 + $0x480] sm:$0xff]
    %v2313 = vld [vmem:[#allocation3 + $0x488] sm:$0xff]
    %v2314 = vld [vmem:[#allocation3 + $0x490] sm:$0xff]
    %v2315 = vld [vmem:[#allocation3 + $0x498] sm:$0xff]
    %v2316 = vld [vmem:[#allocation3 + $0x4a0] sm:$0xff]
    %v2317 = vld [vmem:[#allocation3 + $0x4a8] sm:$0xff]
    %2318 = vmatpush.msra.mxu0 %v2267
    %2319 = vmatpush.msra.mxu0 %v2264
    %2320 = vmatpush.msra.mxu0 %v2261
    %2321 = vmatpush.msra.mxu0 %v2258
    %2322 = vmatpush.msra.mxu0 %v2255
    %2323 = vmatpush.msra.mxu0 %v2252
    %2324 = vmatpush.msra.mxu0 %v2249
    %2325 = vmatpush.msra.mxu0 %v2246
    %2326 = vmatpush.msra.mxu0 %v2243
    %2327 = vmatpush.msra.mxu0 %v2240
    %2328 = vmatpush.msra.mxu0 %v2237
    %2329 = vmatpush.msra.mxu0 %v2234
    %2330 = vmatpush.msra.mxu0 %v2231
    %2331 = vmatpush.msra.mxu0 %v2228
    %2332 = vmatpush.msra.mxu0 %v2225
    %2333 = vmatpush.msra.mxu0 %v2222
    %2334 = vmatmul.f32.gmra.mxu0 %v2185
    %v2335 = vpop.f32.mrf.mxu0
    %v2336 = vadd.f32 %v157, %v2335
    %2337 = vdwg.mxu0
    %2338 = vmatpush.msra.mxu0 %v2315
    %2339 = vmatpush.msra.mxu0 %v2312
    %2340 = vmatpush.msra.mxu0 %v2309
    %2341 = vmatpush.msra.mxu0 %v2306
    %2342 = vmatpush.msra.mxu0 %v2303
    %2343 = vmatpush.msra.mxu0 %v2300
    %2344 = vmatpush.msra.mxu0 %v2297
    %2345 = vmatpush.msra.mxu0 %v2294
    %2346 = vmatpush.msra.mxu0 %v2291
    %2347 = vmatpush.msra.mxu0 %v2288
    %2348 = vmatpush.msra.mxu0 %v2285
    %2349 = vmatpush.msra.mxu0 %v2282
    %2350 = vmatpush.msra.mxu0 %v2279
    %2351 = vmatpush.msra.mxu0 %v2276
    %2352 = vmatpush.msra.mxu0 %v2273
    %2353 = vmatpush.msra.mxu0 %v2270
    %2354 = vmatmul.f32.gmra.mxu0 %v2029
    %v2355 = vpop.f32.mrf.mxu0
    %v2356 = vadd.f32 %v2336, %v2355
    %2357 = vdwg.mxu0
    %2358 = vmatpush.msra.mxu0 %v2268
    %2359 = vmatpush.msra.mxu0 %v2265
    %2360 = vmatpush.msra.mxu0 %v2262
    %2361 = vmatpush.msra.mxu0 %v2259
    %2362 = vmatpush.msra.mxu0 %v2256
    %2363 = vmatpush.msra.mxu0 %v2253
    %2364 = vmatpush.msra.mxu0 %v2250
    %2365 = vmatpush.msra.mxu0 %v2247
    %2366 = vmatpush.msra.mxu0 %v2244
    %2367 = vmatpush.msra.mxu0 %v2241
    %2368 = vmatpush.msra.mxu0 %v2238
    %2369 = vmatpush.msra.mxu0 %v2235
    %2370 = vmatpush.msra.mxu0 %v2232
    %2371 = vmatpush.msra.mxu0 %v2229
    %2372 = vmatpush.msra.mxu0 %v2226
    %2373 = vmatpush.msra.mxu0 %v2223
    %2374 = vmatmul.f32.gmra.mxu0 %v2185
    %v2375 = vpop.f32.mrf.mxu0
    %v2376 = vadd.f32 %v158, %v2375
    %2377 = vdwg.mxu0
    %2378 = vmatpush.msra.mxu0 %v2316
    %2379 = vmatpush.msra.mxu0 %v2313
    %2380 = vmatpush.msra.mxu0 %v2310
    %2381 = vmatpush.msra.mxu0 %v2307
    %2382 = vmatpush.msra.mxu0 %v2304
    %2383 = vmatpush.msra.mxu0 %v2301
    %2384 = vmatpush.msra.mxu0 %v2298
    %2385 = vmatpush.msra.mxu0 %v2295
    %2386 = vmatpush.msra.mxu0 %v2292
    %2387 = vmatpush.msra.mxu0 %v2289
    %2388 = vmatpush.msra.mxu0 %v2286
    %2389 = vmatpush.msra.mxu0 %v2283
    %2390 = vmatpush.msra.mxu0 %v2280
    %2391 = vmatpush.msra.mxu0 %v2277
    %2392 = vmatpush.msra.mxu0 %v2274
    %2393 = vmatpush.msra.mxu0 %v2271
    %2394 = vmatmul.f32.gmra.mxu0 %v2029
    %v2395 = vpop.f32.mrf.mxu0
    %v2396 = vadd.f32 %v2376, %v2395
    %2397 = vdwg.mxu0
    %2398 = vmatpush.msra.mxu0 %v2269
    %2399 = vmatpush.msra.mxu0 %v2266
    %2400 = vmatpush.msra.mxu0 %v2263
    %2401 = vmatpush.msra.mxu0 %v2260
    %2402 = vmatpush.msra.mxu0 %v2257
    %2403 = vmatpush.msra.mxu0 %v2254
    %2404 = vmatpush.msra.mxu0 %v2251
    %2405 = vmatpush.msra.mxu0 %v2248
    %2406 = vmatpush.msra.mxu0 %v2245
    %2407 = vmatpush.msra.mxu0 %v2242
    %2408 = vmatpush.msra.mxu0 %v2239
    %2409 = vmatpush.msra.mxu0 %v2236
    %2410 = vmatpush.msra.mxu0 %v2233
    %2411 = vmatpush.msra.mxu0 %v2230
    %2412 = vmatpush.msra.mxu0 %v2227
    %2413 = vmatpush.msra.mxu0 %v2224
    %2414 = vmatmul.f32.gmra.mxu0 %v2185
    %v2415 = vpop.f32.mrf.mxu0
    %v2416 = vadd.f32 %v159, %v2415
    %2417 = vdwg.mxu0
    %2418 = vmatpush.msra.mxu0 %v2317
    %2419 = vmatpush.msra.mxu0 %v2314
    %2420 = vmatpush.msra.mxu0 %v2311
    %2421 = vmatpush.msra.mxu0 %v2308
    %2422 = vmatpush.msra.mxu0 %v2305
    %2423 = vmatpush.msra.mxu0 %v2302
    %2424 = vmatpush.msra.mxu0 %v2299
    %2425 = vmatpush.msra.mxu0 %v2296
    %2426 = vmatpush.msra.mxu0 %v2293
    %2427 = vmatpush.msra.mxu0 %v2290
    %2428 = vmatpush.msra.mxu0 %v2287
    %2429 = vmatpush.msra.mxu0 %v2284
    %2430 = vmatpush.msra.mxu0 %v2281
    %2431 = vmatpush.msra.mxu0 %v2278
    %2432 = vmatpush.msra.mxu0 %v2275
    %2433 = vmatpush.msra.mxu0 %v2272
    %2434 = vmatmul.f32.gmra.mxu0 %v2029
    %v2435 = vpop.f32.mrf.mxu0
    %v2436 = vadd.f32 %v2416, %v2435
    %2437 = vdwg.mxu0
    %v2438 = vxor.u32 %v2356, 2147483648
    %v2439 = vxor.u32 %v2396, 2147483648
    %v2440 = vmul.f32 %v2438, 1.442695
    %v2441 = vpow.pop %v2440
    %v2442 = vmul.f32 %v2439, 1.442695
    %v2443 = vpow.pop %v2442
    %v2444 = vadd.f32 %v2441, 1.0
    %v2445 = vadd.f32 %v2443, 1.0
    %v2446 = vrcp.pop %v2444
    %v2447 = vmul.f32 %v2444, %v2446
    %v2448 = vsub.f32 1.0, %v2447
    %v2449 = vmul.f32 %v2446, %v2448
    %v2450 = vadd.f32 %v2446, %v2449
    %vm2451 = vweird.f32 %v2444
    %vm2452 = vweird.f32 %v2446
    %vm2453 = vmor %vm2451, %vm2452
    %v2454 = vsel %vm2453, %v2446, %v2450
    %v2455 = vand.u32 2147483647, %v2444
    %vm2456 = vcmp.eq.f32.partialorder %v2455, 8.507059e+37
    %v2457 = vand.u32 %v2444, 2147483648
    %v2458 = vor.u32 1.1754944e-38, %v2457
    %v2459 = vsel %vm2456, %v2458, %v2454
    %v2460 = vmul.f32 1.0, %v2459
    %v2461 = vrcp.pop %v2445
    %v2462 = vmul.f32 %v2445, %v2461
    %v2463 = vsub.f32 1.0, %v2462
    %v2464 = vmul.f32 %v2461, %v2463
    %v2465 = vadd.f32 %v2461, %v2464
    %vm2466 = vweird.f32 %v2445
    %vm2467 = vweird.f32 %v2461
    %vm2468 = vmor %vm2466, %vm2467
    %v2469 = vsel %vm2468, %v2461, %v2465
    %v2470 = vand.u32 2147483647, %v2445
    %vm2471 = vcmp.eq.f32.partialorder %v2470, 8.507059e+37
    %v2472 = vand.u32 %v2445, 2147483648
    %v2473 = vor.u32 1.1754944e-38, %v2472
    %v2474 = vsel %vm2471, %v2473, %v2469
    %v2475 = vmul.f32 1.0, %v2474
    %v2476 = vmul.f32 %v2460, %v2436
    %v2477 = vadd.f32 %v2220, %v2476
    %v2478 = vtanh.pop %v2477
    %v2479 = vsub.f32 1.0, %v2475
    %v2480 = vmul.f32 %v2479, %v2478
    %v2481 = vmul.f32 %v2475, %v2029
    %v2482 = vadd.f32 %v2480, %v2481
    %2483 = vst [vmem:[#allocation2 + $0x8] sm:$0x3] %v2482
    %v2484 = vld [vmem:[#allocation3 + $0x30] sm:$0xff]
    %v2485 = vld [vmem:[#allocation3 + $0x38] sm:$0xff]
    %v2486 = vld [vmem:[#allocation3 + $0x40] sm:$0xff]
    %v2487 = vld [vmem:[#allocation3 + $0x48] sm:$0xff]
    %v2488 = vld [vmem:[#allocation3 + $0x50] sm:$0xff]
    %v2489 = vld [vmem:[#allocation3 + $0x58] sm:$0xff]
    %v2490 = vld [vmem:[#allocation3 + $0x60] sm:$0xff]
    %v2491 = vld [vmem:[#allocation3 + $0x68] sm:$0xff]
    %v2492 = vld [vmem:[#allocation3 + $0x70] sm:$0xff]
    %v2493 = vld [vmem:[#allocation3 + $0x78] sm:$0xff]
    %v2494 = vld [vmem:[#allocation3 + $0x80] sm:$0xff]
    %v2495 = vld [vmem:[#allocation3 + $0x88] sm:$0xff]
    %v2496 = vld [vmem:[#allocation3 + $0x90] sm:$0xff]
    %v2497 = vld [vmem:[#allocation3 + $0x98] sm:$0xff]
    %v2498 = vld [vmem:[#allocation3 + $0xa0] sm:$0xff]
    %v2499 = vld [vmem:[#allocation3 + $0xa8] sm:$0xff]
    %v2500 = vld [vmem:[#allocation3 + $0xb0] sm:$0xff]
    %v2501 = vld [vmem:[#allocation3 + $0xb8] sm:$0xff]
    %v2502 = vld [vmem:[#allocation3 + $0xc0] sm:$0xff]
    %v2503 = vld [vmem:[#allocation3 + $0xc8] sm:$0xff]
    %v2504 = vld [vmem:[#allocation3 + $0xd0] sm:$0xff]
    %v2505 = vld [vmem:[#allocation3 + $0xd8] sm:$0xff]
    %v2506 = vld [vmem:[#allocation3 + $0xe0] sm:$0xff]
    %v2507 = vld [vmem:[#allocation3 + $0xe8] sm:$0xff]
    %v2508 = vld [vmem:[#allocation3 + $0xf0] sm:$0xff]
    %v2509 = vld [vmem:[#allocation3 + $0xf8] sm:$0xff]
    %v2510 = vld [vmem:[#allocation3 + $0x100] sm:$0xff]
    %v2511 = vld [vmem:[#allocation3 + $0x108] sm:$0xff]
    %v2512 = vld [vmem:[#allocation3 + $0x110] sm:$0xff]
    %v2513 = vld [vmem:[#allocation3 + $0x118] sm:$0xff]
    %v2514 = vld [vmem:[#allocation3 + $0x120] sm:$0xff]
    %v2515 = vld [vmem:[#allocation3 + $0x128] sm:$0xff]
    %v2516 = vld [vmem:[#allocation3 + $0x130] sm:$0xff]
    %v2517 = vld [vmem:[#allocation3 + $0x138] sm:$0xff]
    %v2518 = vld [vmem:[#allocation3 + $0x140] sm:$0xff]
    %v2519 = vld [vmem:[#allocation3 + $0x148] sm:$0xff]
    %v2520 = vld [vmem:[#allocation3 + $0x150] sm:$0xff]
    %v2521 = vld [vmem:[#allocation3 + $0x158] sm:$0xff]
    %v2522 = vld [vmem:[#allocation3 + $0x160] sm:$0xff]
    %v2523 = vld [vmem:[#allocation3 + $0x168] sm:$0xff]
    %v2524 = vld [vmem:[#allocation3 + $0x170] sm:$0xff]
    %v2525 = vld [vmem:[#allocation3 + $0x178] sm:$0xff]
    %v2526 = vld [vmem:[#allocation3 + $0x180] sm:$0xff]
    %v2527 = vld [vmem:[#allocation3 + $0x188] sm:$0xff]
    %v2528 = vld [vmem:[#allocation3 + $0x190] sm:$0xff]
    %v2529 = vld [vmem:[#allocation3 + $0x198] sm:$0xff]
    %v2530 = vld [vmem:[#allocation3 + $0x1a0] sm:$0xff]
    %v2531 = vld [vmem:[#allocation3 + $0x1a8] sm:$0xff]
    %2532 = vmatpush.msra.mxu0 %v2529
    %2533 = vmatpush.msra.mxu0 %v2526
    %2534 = vmatpush.msra.mxu0 %v2523
    %2535 = vmatpush.msra.mxu0 %v2520
    %2536 = vmatpush.msra.mxu0 %v2517
    %2537 = vmatpush.msra.mxu0 %v2514
    %2538 = vmatpush.msra.mxu0 %v2511
    %2539 = vmatpush.msra.mxu0 %v2508
    %2540 = vmatpush.msra.mxu0 %v2505
    %2541 = vmatpush.msra.mxu0 %v2502
    %2542 = vmatpush.msra.mxu0 %v2499
    %2543 = vmatpush.msra.mxu0 %v2496
    %2544 = vmatpush.msra.mxu0 %v2493
    %2545 = vmatpush.msra.mxu0 %v2490
    %2546 = vmatpush.msra.mxu0 %v2487
    %2547 = vmatpush.msra.mxu0 %v2484
    %2548 = vmatmul.f32.gmra.mxu0 %v2185
    %v2549 = vpop.f32.mrf.mxu0
    %v2550 = vadd.f32 %v148, %v2549
    %2551 = vdwg.mxu0
    %2552 = vmatpush.msra.mxu0 %v2530
    %2553 = vmatpush.msra.mxu0 %v2527
    %2554 = vmatpush.msra.mxu0 %v2524
    %2555 = vmatpush.msra.mxu0 %v2521
    %2556 = vmatpush.msra.mxu0 %v2518
    %2557 = vmatpush.msra.mxu0 %v2515
    %2558 = vmatpush.msra.mxu0 %v2512
    %2559 = vmatpush.msra.mxu0 %v2509
    %2560 = vmatpush.msra.mxu0 %v2506
    %2561 = vmatpush.msra.mxu0 %v2503
    %2562 = vmatpush.msra.mxu0 %v2500
    %2563 = vmatpush.msra.mxu0 %v2497
    %2564 = vmatpush.msra.mxu0 %v2494
    %2565 = vmatpush.msra.mxu0 %v2491
    %2566 = vmatpush.msra.mxu0 %v2488
    %2567 = vmatpush.msra.mxu0 %v2485
    %2568 = vmatmul.f32.gmra.mxu0 %v2185
    %v2569 = vpop.f32.mrf.mxu0
    %v2570 = vadd.f32 %v149, %v2569
    %2571 = vdwg.mxu0
    %2572 = vmatpush.msra.mxu0 %v2531
    %2573 = vmatpush.msra.mxu0 %v2528
    %2574 = vmatpush.msra.mxu0 %v2525
    %2575 = vmatpush.msra.mxu0 %v2522
    %2576 = vmatpush.msra.mxu0 %v2519
    %2577 = vmatpush.msra.mxu0 %v2516
    %2578 = vmatpush.msra.mxu0 %v2513
    %2579 = vmatpush.msra.mxu0 %v2510
    %2580 = vmatpush.msra.mxu0 %v2507
    %2581 = vmatpush.msra.mxu0 %v2504
    %2582 = vmatpush.msra.mxu0 %v2501
    %2583 = vmatpush.msra.mxu0 %v2498
    %2584 = vmatpush.msra.mxu0 %v2495
    %2585 = vmatpush.msra.mxu0 %v2492
    %2586 = vmatpush.msra.mxu0 %v2489
    %2587 = vmatpush.msra.mxu0 %v2486
    %2588 = vmatmul.f32.gmra.mxu0 %v2185
    %v2589 = vpop.f32.mrf.mxu0
    %v2590 = vadd.f32 %v150, %v2589
    %2591 = vdwg.mxu0
    %v2594 = vrot.slane %v2550, 6
    %v2595 = vrot.slane %v2570, 6
    %v2598 = vadd.f32 %v97, %v2594
    %v2599 = vadd.f32 %v120, %v2595
    %v2600 = vxor.u32 %v2598, 2147483648
    %v2601 = vxor.u32 %v2599, 2147483648
    %v2602 = vmul.f32 %v2600, 1.442695
    %v2603 = vpow.pop %v2602
    %v2604 = vmul.f32 %v2601, 1.442695
    %v2605 = vpow.pop %v2604
    %v2606 = vadd.f32 %v2603, 1.0
    %v2607 = vadd.f32 %v2605, 1.0
    %v2608 = vrcp.pop %v2606
    %v2609 = vmul.f32 %v2606, %v2608
    %v2610 = vsub.f32 1.0, %v2609
    %v2611 = vmul.f32 %v2608, %v2610
    %v2612 = vadd.f32 %v2608, %v2611
    %vm2613 = vweird.f32 %v2606
    %vm2614 = vweird.f32 %v2608
    %vm2615 = vmor %vm2613, %vm2614
    %v2616 = vsel %vm2615, %v2608, %v2612
    %v2617 = vand.u32 2147483647, %v2606
    %vm2618 = vcmp.eq.f32.partialorder %v2617, 8.507059e+37
    %v2619 = vand.u32 %v2606, 2147483648
    %v2620 = vor.u32 1.1754944e-38, %v2619
    %v2621 = vsel %vm2618, %v2620, %v2616
    %v2622 = vmul.f32 1.0, %v2621
    %v2623 = vrcp.pop %v2607
    %v2624 = vmul.f32 %v2607, %v2623
    %v2625 = vsub.f32 1.0, %v2624
    %v2626 = vmul.f32 %v2623, %v2625
    %v2627 = vadd.f32 %v2623, %v2626
    %vm2628 = vweird.f32 %v2607
    %vm2629 = vweird.f32 %v2623
    %vm2630 = vmor %vm2628, %vm2629
    %v2631 = vsel %vm2630, %v2623, %v2627
    %v2632 = vand.u32 2147483647, %v2607
    %vm2633 = vcmp.eq.f32.partialorder %v2632, 8.507059e+37
    %v2634 = vand.u32 %v2607, 2147483648
    %v2635 = vor.u32 1.1754944e-38, %v2634
    %v2636 = vsel %vm2633, %v2635, %v2631
    %v2637 = vmul.f32 1.0, %v2636
    %v2639 = vrot.slane %v2590, 6
    %v2641 = vmul.f32 %v2622, %v2639
    %v2642 = vadd.f32 %v143, %v2641
    %v2643 = vtanh.pop %v2642
    %v2644 = vsub.f32 1.0, %v2637
    %v2645 = vmul.f32 %v2644, %v2643
    %v2647 = vrot.slane %v2185, 6
    %v2649 = vmul.f32 %v2637, %v2647
    %v2650 = vadd.f32 %v2645, %v2649
    %v2651 = vld [vmem:[#allocation6] sm:$0xff]
    %v2652 = vld [vmem:[#allocation6 + $0x8] sm:$0xff]
    %v2653 = vld [vmem:[#allocation6 + $0x10] sm:$0xff]
    %v2654 = vld [vmem:[#allocation6 + $0x18] sm:$0xff]
    %v2655 = vld [vmem:[#allocation6 + $0x20] sm:$0xff]
    %v2656 = vld [vmem:[#allocation6 + $0x28] sm:$0xff]
    %v2657 = vld [vmem:[#allocation6 + $0x30] sm:$0xff]
    %v2658 = vld [vmem:[#allocation6 + $0x38] sm:$0xff]
    %v2659 = vld [vmem:[#allocation6 + $0x40] sm:$0xff]
    %v2660 = vld [vmem:[#allocation6 + $0x48] sm:$0xff]
    %v2661 = vld [vmem:[#allocation6 + $0x50] sm:$0xff]
    %v2662 = vld [vmem:[#allocation6 + $0x58] sm:$0xff]
    %v2663 = vld [vmem:[#allocation6 + $0x60] sm:$0xff]
    %v2664 = vld [vmem:[#allocation6 + $0x68] sm:$0xff]
    %v2665 = vld [vmem:[#allocation6 + $0x70] sm:$0xff]
    %v2666 = vld [vmem:[#allocation6 + $0x78] sm:$0xff]
    %v2668 = vrot.slane %v2650, 2
    %2670 = vmatpush.msra.mxu0 %v2666
    %2671 = vmatpush.msra.mxu0 %v2665
    %2672 = vmatpush.msra.mxu0 %v2664
    %2673 = vmatpush.msra.mxu0 %v2663
    %2674 = vmatpush.msra.mxu0 %v2662
    %2675 = vmatpush.msra.mxu0 %v2661
    %2676 = vmatpush.msra.mxu0 %v2660
    %2677 = vmatpush.msra.mxu0 %v2659
    %2678 = vmatpush.msra.mxu0 %v2658
    %2679 = vmatpush.msra.mxu0 %v2657
    %2680 = vmatpush.msra.mxu0 %v2656
    %2681 = vmatpush.msra.mxu0 %v2655
    %2682 = vmatpush.msra.mxu0 %v2654
    %2683 = vmatpush.msra.mxu0 %v2653
    %2684 = vmatpush.msra.mxu0 %v2652
    %2685 = vmatpush.msra.mxu0 %v2651
    %2686 = vmatmul.f32.gmra.mxu0 %v2668
    %v2687 = vpop.f32.mrf.mxu0
    %v2688 = vadd.f32 %v163, %v2687
    %2689 = vdwg.mxu0
    %v2691 = vrot.slane %v2482, 6
    %v2692 = vld [vmem:[#allocation3 + $0x1b0] sm:$0xff]
    %v2693 = vld [vmem:[#allocation3 + $0x1b8] sm:$0xff]
    %v2694 = vld [vmem:[#allocation3 + $0x1c0] sm:$0xff]
    %v2695 = vld [vmem:[#allocation3 + $0x1c8] sm:$0xff]
    %v2696 = vld [vmem:[#allocation3 + $0x1d0] sm:$0xff]
    %v2697 = vld [vmem:[#allocation3 + $0x1d8] sm:$0xff]
    %v2698 = vld [vmem:[#allocation3 + $0x1e0] sm:$0xff]
    %v2699 = vld [vmem:[#allocation3 + $0x1e8] sm:$0xff]
    %v2700 = vld [vmem:[#allocation3 + $0x1f0] sm:$0xff]
    %v2701 = vld [vmem:[#allocation3 + $0x1f8] sm:$0xff]
    %v2702 = vld [vmem:[#allocation3 + $0x200] sm:$0xff]
    %v2703 = vld [vmem:[#allocation3 + $0x208] sm:$0xff]
    %v2704 = vld [vmem:[#allocation3 + $0x210] sm:$0xff]
    %v2705 = vld [vmem:[#allocation3 + $0x218] sm:$0xff]
    %v2706 = vld [vmem:[#allocation3 + $0x220] sm:$0xff]
    %v2707 = vld [vmem:[#allocation3 + $0x228] sm:$0xff]
    %v2708 = vld [vmem:[#allocation3 + $0x230] sm:$0xff]
    %v2709 = vld [vmem:[#allocation3 + $0x238] sm:$0xff]
    %v2710 = vld [vmem:[#allocation3 + $0x240] sm:$0xff]
    %v2711 = vld [vmem:[#allocation3 + $0x248] sm:$0xff]
    %v2712 = vld [vmem:[#allocation3 + $0x250] sm:$0xff]
    %v2713 = vld [vmem:[#allocation3 + $0x258] sm:$0xff]
    %v2714 = vld [vmem:[#allocation3 + $0x260] sm:$0xff]
    %v2715 = vld [vmem:[#allocation3 + $0x268] sm:$0xff]
    %v2716 = vld [vmem:[#allocation3 + $0x270] sm:$0xff]
    %v2717 = vld [vmem:[#allocation3 + $0x278] sm:$0xff]
    %v2718 = vld [vmem:[#allocation3 + $0x280] sm:$0xff]
    %v2719 = vld [vmem:[#allocation3 + $0x288] sm:$0xff]
    %v2720 = vld [vmem:[#allocation3 + $0x290] sm:$0xff]
    %v2721 = vld [vmem:[#allocation3 + $0x298] sm:$0xff]
    %v2722 = vld [vmem:[#allocation3 + $0x2a0] sm:$0xff]
    %v2723 = vld [vmem:[#allocation3 + $0x2a8] sm:$0xff]
    %v2724 = vld [vmem:[#allocation3 + $0x2b0] sm:$0xff]
    %v2725 = vld [vmem:[#allocation3 + $0x2b8] sm:$0xff]
    %v2726 = vld [vmem:[#allocation3 + $0x2c0] sm:$0xff]
    %v2727 = vld [vmem:[#allocation3 + $0x2c8] sm:$0xff]
    %v2728 = vld [vmem:[#allocation3 + $0x2d0] sm:$0xff]
    %v2729 = vld [vmem:[#allocation3 + $0x2d8] sm:$0xff]
    %v2730 = vld [vmem:[#allocation3 + $0x2e0] sm:$0xff]
    %v2731 = vld [vmem:[#allocation3 + $0x2e8] sm:$0xff]
    %v2732 = vld [vmem:[#allocation3 + $0x2f0] sm:$0xff]
    %v2733 = vld [vmem:[#allocation3 + $0x2f8] sm:$0xff]
    %v2734 = vld [vmem:[#allocation3 + $0x300] sm:$0xff]
    %v2735 = vld [vmem:[#allocation3 + $0x308] sm:$0xff]
    %v2736 = vld [vmem:[#allocation3 + $0x310] sm:$0xff]
    %v2737 = vld [vmem:[#allocation3 + $0x318] sm:$0xff]
    %v2738 = vld [vmem:[#allocation3 + $0x320] sm:$0xff]
    %v2739 = vld [vmem:[#allocation3 + $0x328] sm:$0xff]
    %v2740 = vld [vmem:[#allocation3 + $0x330] sm:$0xff]
    %v2741 = vld [vmem:[#allocation3 + $0x338] sm:$0xff]
    %v2742 = vld [vmem:[#allocation3 + $0x340] sm:$0xff]
    %v2743 = vld [vmem:[#allocation3 + $0x348] sm:$0xff]
    %v2744 = vld [vmem:[#allocation3 + $0x350] sm:$0xff]
    %v2745 = vld [vmem:[#allocation3 + $0x358] sm:$0xff]
    %v2746 = vld [vmem:[#allocation3 + $0x360] sm:$0xff]
    %v2747 = vld [vmem:[#allocation3 + $0x368] sm:$0xff]
    %v2748 = vld [vmem:[#allocation3 + $0x370] sm:$0xff]
    %v2749 = vld [vmem:[#allocation3 + $0x378] sm:$0xff]
    %v2750 = vld [vmem:[#allocation3 + $0x380] sm:$0xff]
    %v2751 = vld [vmem:[#allocation3 + $0x388] sm:$0xff]
    %v2752 = vld [vmem:[#allocation3 + $0x390] sm:$0xff]
    %v2753 = vld [vmem:[#allocation3 + $0x398] sm:$0xff]
    %v2754 = vld [vmem:[#allocation3 + $0x3a0] sm:$0xff]
    %v2755 = vld [vmem:[#allocation3 + $0x3a8] sm:$0xff]
    %v2756 = vld [vmem:[#allocation3 + $0x3b0] sm:$0xff]
    %v2757 = vld [vmem:[#allocation3 + $0x3b8] sm:$0xff]
    %v2758 = vld [vmem:[#allocation3 + $0x3c0] sm:$0xff]
    %v2759 = vld [vmem:[#allocation3 + $0x3c8] sm:$0xff]
    %v2760 = vld [vmem:[#allocation3 + $0x3d0] sm:$0xff]
    %v2761 = vld [vmem:[#allocation3 + $0x3d8] sm:$0xff]
    %v2762 = vld [vmem:[#allocation3 + $0x3e0] sm:$0xff]
    %v2763 = vld [vmem:[#allocation3 + $0x3e8] sm:$0xff]
    %v2764 = vld [vmem:[#allocation3 + $0x3f0] sm:$0xff]
    %v2765 = vld [vmem:[#allocation3 + $0x3f8] sm:$0xff]
    %v2766 = vld [vmem:[#allocation3 + $0x400] sm:$0xff]
    %v2767 = vld [vmem:[#allocation3 + $0x408] sm:$0xff]
    %v2768 = vld [vmem:[#allocation3 + $0x410] sm:$0xff]
    %v2769 = vld [vmem:[#allocation3 + $0x418] sm:$0xff]
    %v2770 = vld [vmem:[#allocation3 + $0x420] sm:$0xff]
    %v2771 = vld [vmem:[#allocation3 + $0x428] sm:$0xff]
    %v2772 = vld [vmem:[#allocation3 + $0x430] sm:$0xff]
    %v2773 = vld [vmem:[#allocation3 + $0x438] sm:$0xff]
    %v2774 = vld [vmem:[#allocation3 + $0x440] sm:$0xff]
    %v2775 = vld [vmem:[#allocation3 + $0x448] sm:$0xff]
    %v2776 = vld [vmem:[#allocation3 + $0x450] sm:$0xff]
    %v2777 = vld [vmem:[#allocation3 + $0x458] sm:$0xff]
    %v2778 = vld [vmem:[#allocation3 + $0x460] sm:$0xff]
    %v2779 = vld [vmem:[#allocation3 + $0x468] sm:$0xff]
    %v2780 = vld [vmem:[#allocation3 + $0x470] sm:$0xff]
    %v2781 = vld [vmem:[#allocation3 + $0x478] sm:$0xff]
    %v2782 = vld [vmem:[#allocation3 + $0x480] sm:$0xff]
    %v2783 = vld [vmem:[#allocation3 + $0x488] sm:$0xff]
    %v2784 = vld [vmem:[#allocation3 + $0x490] sm:$0xff]
    %v2785 = vld [vmem:[#allocation3 + $0x498] sm:$0xff]
    %v2786 = vld [vmem:[#allocation3 + $0x4a0] sm:$0xff]
    %v2787 = vld [vmem:[#allocation3 + $0x4a8] sm:$0xff]
    %v2788 = vrot.slane %v2691, 2
    %2790 = vmatpush.msra.mxu0 %v2737
    %2791 = vmatpush.msra.mxu0 %v2734
    %2792 = vmatpush.msra.mxu0 %v2731
    %2793 = vmatpush.msra.mxu0 %v2728
    %2794 = vmatpush.msra.mxu0 %v2725
    %2795 = vmatpush.msra.mxu0 %v2722
    %2796 = vmatpush.msra.mxu0 %v2719
    %2797 = vmatpush.msra.mxu0 %v2716
    %2798 = vmatpush.msra.mxu0 %v2713
    %2799 = vmatpush.msra.mxu0 %v2710
    %2800 = vmatpush.msra.mxu0 %v2707
    %2801 = vmatpush.msra.mxu0 %v2704
    %2802 = vmatpush.msra.mxu0 %v2701
    %2803 = vmatpush.msra.mxu0 %v2698
    %2804 = vmatpush.msra.mxu0 %v2695
    %2805 = vmatpush.msra.mxu0 %v2692
    %2806 = vmatmul.f32.gmra.mxu0 %v2668
    %v2807 = vpop.f32.mrf.mxu0
    %v2808 = vadd.f32 %v157, %v2807
    %2809 = vdwg.mxu0
    %2810 = vmatpush.msra.mxu0 %v2785
    %2811 = vmatpush.msra.mxu0 %v2782
    %2812 = vmatpush.msra.mxu0 %v2779
    %2813 = vmatpush.msra.mxu0 %v2776
    %2814 = vmatpush.msra.mxu0 %v2773
    %2815 = vmatpush.msra.mxu0 %v2770
    %2816 = vmatpush.msra.mxu0 %v2767
    %2817 = vmatpush.msra.mxu0 %v2764
    %2818 = vmatpush.msra.mxu0 %v2761
    %2819 = vmatpush.msra.mxu0 %v2758
    %2820 = vmatpush.msra.mxu0 %v2755
    %2821 = vmatpush.msra.mxu0 %v2752
    %2822 = vmatpush.msra.mxu0 %v2749
    %2823 = vmatpush.msra.mxu0 %v2746
    %2824 = vmatpush.msra.mxu0 %v2743
    %2825 = vmatpush.msra.mxu0 %v2740
    %2826 = vmatmul.f32.gmra.mxu0 %v2788
    %v2827 = vpop.f32.mrf.mxu0
    %v2828 = vadd.f32 %v2808, %v2827
    %2829 = vdwg.mxu0
    %2830 = vmatpush.msra.mxu0 %v2738
    %2831 = vmatpush.msra.mxu0 %v2735
    %2832 = vmatpush.msra.mxu0 %v2732
    %2833 = vmatpush.msra.mxu0 %v2729
    %2834 = vmatpush.msra.mxu0 %v2726
    %2835 = vmatpush.msra.mxu0 %v2723
    %2836 = vmatpush.msra.mxu0 %v2720
    %2837 = vmatpush.msra.mxu0 %v2717
    %2838 = vmatpush.msra.mxu0 %v2714
    %2839 = vmatpush.msra.mxu0 %v2711
    %2840 = vmatpush.msra.mxu0 %v2708
    %2841 = vmatpush.msra.mxu0 %v2705
    %2842 = vmatpush.msra.mxu0 %v2702
    %2843 = vmatpush.msra.mxu0 %v2699
    %2844 = vmatpush.msra.mxu0 %v2696
    %2845 = vmatpush.msra.mxu0 %v2693
    %2846 = vmatmul.f32.gmra.mxu0 %v2668
    %v2847 = vpop.f32.mrf.mxu0
    %v2848 = vadd.f32 %v158, %v2847
    %2849 = vdwg.mxu0
    %2850 = vmatpush.msra.mxu0 %v2786
    %2851 = vmatpush.msra.mxu0 %v2783
    %2852 = vmatpush.msra.mxu0 %v2780
    %2853 = vmatpush.msra.mxu0 %v2777
    %2854 = vmatpush.msra.mxu0 %v2774
    %2855 = vmatpush.msra.mxu0 %v2771
    %2856 = vmatpush.msra.mxu0 %v2768
    %2857 = vmatpush.msra.mxu0 %v2765
    %2858 = vmatpush.msra.mxu0 %v2762
    %2859 = vmatpush.msra.mxu0 %v2759
    %2860 = vmatpush.msra.mxu0 %v2756
    %2861 = vmatpush.msra.mxu0 %v2753
    %2862 = vmatpush.msra.mxu0 %v2750
    %2863 = vmatpush.msra.mxu0 %v2747
    %2864 = vmatpush.msra.mxu0 %v2744
    %2865 = vmatpush.msra.mxu0 %v2741
    %2866 = vmatmul.f32.gmra.mxu0 %v2788
    %v2867 = vpop.f32.mrf.mxu0
    %v2868 = vadd.f32 %v2848, %v2867
    %2869 = vdwg.mxu0
    %2870 = vmatpush.msra.mxu0 %v2739
    %2871 = vmatpush.msra.mxu0 %v2736
    %2872 = vmatpush.msra.mxu0 %v2733
    %2873 = vmatpush.msra.mxu0 %v2730
    %2874 = vmatpush.msra.mxu0 %v2727
    %2875 = vmatpush.msra.mxu0 %v2724
    %2876 = vmatpush.msra.mxu0 %v2721
    %2877 = vmatpush.msra.mxu0 %v2718
    %2878 = vmatpush.msra.mxu0 %v2715
    %2879 = vmatpush.msra.mxu0 %v2712
    %2880 = vmatpush.msra.mxu0 %v2709
    %2881 = vmatpush.msra.mxu0 %v2706
    %2882 = vmatpush.msra.mxu0 %v2703
    %2883 = vmatpush.msra.mxu0 %v2700
    %2884 = vmatpush.msra.mxu0 %v2697
    %2885 = vmatpush.msra.mxu0 %v2694
    %2886 = vmatmul.f32.gmra.mxu0 %v2668
    %v2887 = vpop.f32.mrf.mxu0
    %v2888 = vadd.f32 %v159, %v2887
    %2889 = vdwg.mxu0
    %2890 = vmatpush.msra.mxu0 %v2787
    %2891 = vmatpush.msra.mxu0 %v2784
    %2892 = vmatpush.msra.mxu0 %v2781
    %2893 = vmatpush.msra.mxu0 %v2778
    %2894 = vmatpush.msra.mxu0 %v2775
    %2895 = vmatpush.msra.mxu0 %v2772
    %2896 = vmatpush.msra.mxu0 %v2769
    %2897 = vmatpush.msra.mxu0 %v2766
    %2898 = vmatpush.msra.mxu0 %v2763
    %2899 = vmatpush.msra.mxu0 %v2760
    %2900 = vmatpush.msra.mxu0 %v2757
    %2901 = vmatpush.msra.mxu0 %v2754
    %2902 = vmatpush.msra.mxu0 %v2751
    %2903 = vmatpush.msra.mxu0 %v2748
    %2904 = vmatpush.msra.mxu0 %v2745
    %2905 = vmatpush.msra.mxu0 %v2742
    %2906 = vmatmul.f32.gmra.mxu0 %v2788
    %v2907 = vpop.f32.mrf.mxu0
    %v2908 = vadd.f32 %v2888, %v2907
    %2909 = vdwg.mxu0
    %v2910 = vxor.u32 %v2828, 2147483648
    %v2911 = vxor.u32 %v2868, 2147483648
    %v2912 = vmul.f32 %v2910, 1.442695
    %v2913 = vpow.pop %v2912
    %v2914 = vmul.f32 %v2911, 1.442695
    %v2915 = vpow.pop %v2914
    %v2916 = vadd.f32 %v2913, 1.0
    %v2917 = vadd.f32 %v2915, 1.0
    %v2918 = vrcp.pop %v2916
    %v2919 = vmul.f32 %v2916, %v2918
    %v2920 = vsub.f32 1.0, %v2919
    %v2921 = vmul.f32 %v2918, %v2920
    %v2922 = vadd.f32 %v2918, %v2921
    %vm2923 = vweird.f32 %v2916
    %vm2924 = vweird.f32 %v2918
    %vm2925 = vmor %vm2923, %vm2924
    %v2926 = vsel %vm2925, %v2918, %v2922
    %v2927 = vand.u32 2147483647, %v2916
    %vm2928 = vcmp.eq.f32.partialorder %v2927, 8.507059e+37
    %v2929 = vand.u32 %v2916, 2147483648
    %v2930 = vor.u32 1.1754944e-38, %v2929
    %v2931 = vsel %vm2928, %v2930, %v2926
    %v2932 = vmul.f32 1.0, %v2931
    %v2933 = vrcp.pop %v2917
    %v2934 = vmul.f32 %v2917, %v2933
    %v2935 = vsub.f32 1.0, %v2934
    %v2936 = vmul.f32 %v2933, %v2935
    %v2937 = vadd.f32 %v2933, %v2936
    %vm2938 = vweird.f32 %v2917
    %vm2939 = vweird.f32 %v2933
    %vm2940 = vmor %vm2938, %vm2939
    %v2941 = vsel %vm2940, %v2933, %v2937
    %v2942 = vand.u32 2147483647, %v2917
    %vm2943 = vcmp.eq.f32.partialorder %v2942, 8.507059e+37
    %v2944 = vand.u32 %v2917, 2147483648
    %v2945 = vor.u32 1.1754944e-38, %v2944
    %v2946 = vsel %vm2943, %v2945, %v2941
    %v2947 = vmul.f32 1.0, %v2946
    %v2948 = vmul.f32 %v2932, %v2908
    %v2949 = vadd.f32 %v2688, %v2948
    %v2950 = vtanh.pop %v2949
    %v2951 = vsub.f32 1.0, %v2947
    %v2952 = vmul.f32 %v2951, %v2950
    %v2953 = vmul.f32 %v2947, %v2482
    %v2954 = vadd.f32 %v2952, %v2953
    %2955 = vst [vmem:[#allocation2 + $0xa] sm:$0x3] %v2954
    %v2956 = vld [vmem:[#allocation3 + $0x30] sm:$0xff]
    %v2957 = vld [vmem:[#allocation3 + $0x38] sm:$0xff]
    %v2958 = vld [vmem:[#allocation3 + $0x40] sm:$0xff]
    %v2959 = vld [vmem:[#allocation3 + $0x48] sm:$0xff]
    %v2960 = vld [vmem:[#allocation3 + $0x50] sm:$0xff]
    %v2961 = vld [vmem:[#allocation3 + $0x58] sm:$0xff]
    %v2962 = vld [vmem:[#allocation3 + $0x60] sm:$0xff]
    %v2963 = vld [vmem:[#allocation3 + $0x68] sm:$0xff]
    %v2964 = vld [vmem:[#allocation3 + $0x70] sm:$0xff]
    %v2965 = vld [vmem:[#allocation3 + $0x78] sm:$0xff]
    %v2966 = vld [vmem:[#allocation3 + $0x80] sm:$0xff]
    %v2967 = vld [vmem:[#allocation3 + $0x88] sm:$0xff]
    %v2968 = vld [vmem:[#allocation3 + $0x90] sm:$0xff]
    %v2969 = vld [vmem:[#allocation3 + $0x98] sm:$0xff]
    %v2970 = vld [vmem:[#allocation3 + $0xa0] sm:$0xff]
    %v2971 = vld [vmem:[#allocation3 + $0xa8] sm:$0xff]
    %v2972 = vld [vmem:[#allocation3 + $0xb0] sm:$0xff]
    %v2973 = vld [vmem:[#allocation3 + $0xb8] sm:$0xff]
    %v2974 = vld [vmem:[#allocation3 + $0xc0] sm:$0xff]
    %v2975 = vld [vmem:[#allocation3 + $0xc8] sm:$0xff]
    %v2976 = vld [vmem:[#allocation3 + $0xd0] sm:$0xff]
    %v2977 = vld [vmem:[#allocation3 + $0xd8] sm:$0xff]
    %v2978 = vld [vmem:[#allocation3 + $0xe0] sm:$0xff]
    %v2979 = vld [vmem:[#allocation3 + $0xe8] sm:$0xff]
    %v2980 = vld [vmem:[#allocation3 + $0xf0] sm:$0xff]
    %v2981 = vld [vmem:[#allocation3 + $0xf8] sm:$0xff]
    %v2982 = vld [vmem:[#allocation3 + $0x100] sm:$0xff]
    %v2983 = vld [vmem:[#allocation3 + $0x108] sm:$0xff]
    %v2984 = vld [vmem:[#allocation3 + $0x110] sm:$0xff]
    %v2985 = vld [vmem:[#allocation3 + $0x118] sm:$0xff]
    %v2986 = vld [vmem:[#allocation3 + $0x120] sm:$0xff]
    %v2987 = vld [vmem:[#allocation3 + $0x128] sm:$0xff]
    %v2988 = vld [vmem:[#allocation3 + $0x130] sm:$0xff]
    %v2989 = vld [vmem:[#allocation3 + $0x138] sm:$0xff]
    %v2990 = vld [vmem:[#allocation3 + $0x140] sm:$0xff]
    %v2991 = vld [vmem:[#allocation3 + $0x148] sm:$0xff]
    %v2992 = vld [vmem:[#allocation3 + $0x150] sm:$0xff]
    %v2993 = vld [vmem:[#allocation3 + $0x158] sm:$0xff]
    %v2994 = vld [vmem:[#allocation3 + $0x160] sm:$0xff]
    %v2995 = vld [vmem:[#allocation3 + $0x168] sm:$0xff]
    %v2996 = vld [vmem:[#allocation3 + $0x170] sm:$0xff]
    %v2997 = vld [vmem:[#allocation3 + $0x178] sm:$0xff]
    %v2998 = vld [vmem:[#allocation3 + $0x180] sm:$0xff]
    %v2999 = vld [vmem:[#allocation3 + $0x188] sm:$0xff]
    %v3000 = vld [vmem:[#allocation3 + $0x190] sm:$0xff]
    %v3001 = vld [vmem:[#allocation3 + $0x198] sm:$0xff]
    %v3002 = vld [vmem:[#allocation3 + $0x1a0] sm:$0xff]
    %v3003 = vld [vmem:[#allocation3 + $0x1a8] sm:$0xff]
    %3004 = vmatpush.msra.mxu0 %v3001
    %3005 = vmatpush.msra.mxu0 %v2998
    %3006 = vmatpush.msra.mxu0 %v2995
    %3007 = vmatpush.msra.mxu0 %v2992
    %3008 = vmatpush.msra.mxu0 %v2989
    %3009 = vmatpush.msra.mxu0 %v2986
    %3010 = vmatpush.msra.mxu0 %v2983
    %3011 = vmatpush.msra.mxu0 %v2980
    %3012 = vmatpush.msra.mxu0 %v2977
    %3013 = vmatpush.msra.mxu0 %v2974
    %3014 = vmatpush.msra.mxu0 %v2971
    %3015 = vmatpush.msra.mxu0 %v2968
    %3016 = vmatpush.msra.mxu0 %v2965
    %3017 = vmatpush.msra.mxu0 %v2962
    %3018 = vmatpush.msra.mxu0 %v2959
    %3019 = vmatpush.msra.mxu0 %v2956
    %3020 = vmatmul.f32.gmra.mxu0 %v2668
    %v3021 = vpop.f32.mrf.mxu0
    %v3022 = vadd.f32 %v148, %v3021
    %3023 = vdwg.mxu0
    %3024 = vmatpush.msra.mxu0 %v3002
    %3025 = vmatpush.msra.mxu0 %v2999
    %3026 = vmatpush.msra.mxu0 %v2996
    %3027 = vmatpush.msra.mxu0 %v2993
    %3028 = vmatpush.msra.mxu0 %v2990
    %3029 = vmatpush.msra.mxu0 %v2987
    %3030 = vmatpush.msra.mxu0 %v2984
    %3031 = vmatpush.msra.mxu0 %v2981
    %3032 = vmatpush.msra.mxu0 %v2978
    %3033 = vmatpush.msra.mxu0 %v2975
    %3034 = vmatpush.msra.mxu0 %v2972
    %3035 = vmatpush.msra.mxu0 %v2969
    %3036 = vmatpush.msra.mxu0 %v2966
    %3037 = vmatpush.msra.mxu0 %v2963
    %3038 = vmatpush.msra.mxu0 %v2960
    %3039 = vmatpush.msra.mxu0 %v2957
    %3040 = vmatmul.f32.gmra.mxu0 %v2668
    %v3041 = vpop.f32.mrf.mxu0
    %v3042 = vadd.f32 %v149, %v3041
    %3043 = vdwg.mxu0
    %3044 = vmatpush.msra.mxu0 %v3003
    %3045 = vmatpush.msra.mxu0 %v3000
    %3046 = vmatpush.msra.mxu0 %v2997
    %3047 = vmatpush.msra.mxu0 %v2994
    %3048 = vmatpush.msra.mxu0 %v2991
    %3049 = vmatpush.msra.mxu0 %v2988
    %3050 = vmatpush.msra.mxu0 %v2985
    %3051 = vmatpush.msra.mxu0 %v2982
    %3052 = vmatpush.msra.mxu0 %v2979
    %3053 = vmatpush.msra.mxu0 %v2976
    %3054 = vmatpush.msra.mxu0 %v2973
    %3055 = vmatpush.msra.mxu0 %v2970
    %3056 = vmatpush.msra.mxu0 %v2967
    %3057 = vmatpush.msra.mxu0 %v2964
    %3058 = vmatpush.msra.mxu0 %v2961
    %3059 = vmatpush.msra.mxu0 %v2958
    %3060 = vmatmul.f32.gmra.mxu0 %v2668
    %v3061 = vpop.f32.mrf.mxu0
    %v3062 = vadd.f32 %v150, %v3061
    %3063 = vdwg.mxu0
    %v3066 = vrot.slane %v3022, 4
    %v3067 = vrot.slane %v3042, 4
    %v3070 = vadd.f32 %v97, %v3066
    %v3071 = vadd.f32 %v120, %v3067
    %v3072 = vxor.u32 %v3070, 2147483648
    %v3073 = vxor.u32 %v3071, 2147483648
    %v3074 = vmul.f32 %v3072, 1.442695
    %v3075 = vpow.pop %v3074
    %v3076 = vmul.f32 %v3073, 1.442695
    %v3077 = vpow.pop %v3076
    %v3078 = vadd.f32 %v3075, 1.0
    %v3079 = vadd.f32 %v3077, 1.0
    %v3080 = vrcp.pop %v3078
    %v3081 = vmul.f32 %v3078, %v3080
    %v3082 = vsub.f32 1.0, %v3081
    %v3083 = vmul.f32 %v3080, %v3082
    %v3084 = vadd.f32 %v3080, %v3083
    %vm3085 = vweird.f32 %v3078
    %vm3086 = vweird.f32 %v3080
    %vm3087 = vmor %vm3085, %vm3086
    %v3088 = vsel %vm3087, %v3080, %v3084
    %v3089 = vand.u32 2147483647, %v3078
    %vm3090 = vcmp.eq.f32.partialorder %v3089, 8.507059e+37
    %v3091 = vand.u32 %v3078, 2147483648
    %v3092 = vor.u32 1.1754944e-38, %v3091
    %v3093 = vsel %vm3090, %v3092, %v3088
    %v3094 = vmul.f32 1.0, %v3093
    %v3095 = vrcp.pop %v3079
    %v3096 = vmul.f32 %v3079, %v3095
    %v3097 = vsub.f32 1.0, %v3096
    %v3098 = vmul.f32 %v3095, %v3097
    %v3099 = vadd.f32 %v3095, %v3098
    %vm3100 = vweird.f32 %v3079
    %vm3101 = vweird.f32 %v3095
    %vm3102 = vmor %vm3100, %vm3101
    %v3103 = vsel %vm3102, %v3095, %v3099
    %v3104 = vand.u32 2147483647, %v3079
    %vm3105 = vcmp.eq.f32.partialorder %v3104, 8.507059e+37
    %v3106 = vand.u32 %v3079, 2147483648
    %v3107 = vor.u32 1.1754944e-38, %v3106
    %v3108 = vsel %vm3105, %v3107, %v3103
    %v3109 = vmul.f32 1.0, %v3108
    %v3111 = vrot.slane %v3062, 4
    %v3113 = vmul.f32 %v3094, %v3111
    %v3114 = vadd.f32 %v143, %v3113
    %v3115 = vtanh.pop %v3114
    %v3116 = vsub.f32 1.0, %v3109
    %v3117 = vmul.f32 %v3116, %v3115
    %v3118 = vrot.slane %v2650, 6
    %v3120 = vmul.f32 %v3109, %v3118
    %v3121 = vadd.f32 %v3117, %v3120
    %v3122 = vld [vmem:[#allocation6] sm:$0xff]
    %v3123 = vld [vmem:[#allocation6 + $0x8] sm:$0xff]
    %v3124 = vld [vmem:[#allocation6 + $0x10] sm:$0xff]
    %v3125 = vld [vmem:[#allocation6 + $0x18] sm:$0xff]
    %v3126 = vld [vmem:[#allocation6 + $0x20] sm:$0xff]
    %v3127 = vld [vmem:[#allocation6 + $0x28] sm:$0xff]
    %v3128 = vld [vmem:[#allocation6 + $0x30] sm:$0xff]
    %v3129 = vld [vmem:[#allocation6 + $0x38] sm:$0xff]
    %v3130 = vld [vmem:[#allocation6 + $0x40] sm:$0xff]
    %v3131 = vld [vmem:[#allocation6 + $0x48] sm:$0xff]
    %v3132 = vld [vmem:[#allocation6 + $0x50] sm:$0xff]
    %v3133 = vld [vmem:[#allocation6 + $0x58] sm:$0xff]
    %v3134 = vld [vmem:[#allocation6 + $0x60] sm:$0xff]
    %v3135 = vld [vmem:[#allocation6 + $0x68] sm:$0xff]
    %v3136 = vld [vmem:[#allocation6 + $0x70] sm:$0xff]
    %v3137 = vld [vmem:[#allocation6 + $0x78] sm:$0xff]
    %v3139 = vrot.slane %v3121, 4
    %3141 = vmatpush.msra.mxu0 %v3137
    %3142 = vmatpush.msra.mxu0 %v3136
    %3143 = vmatpush.msra.mxu0 %v3135
    %3144 = vmatpush.msra.mxu0 %v3134
    %3145 = vmatpush.msra.mxu0 %v3133
    %3146 = vmatpush.msra.mxu0 %v3132
    %3147 = vmatpush.msra.mxu0 %v3131
    %3148 = vmatpush.msra.mxu0 %v3130
    %3149 = vmatpush.msra.mxu0 %v3129
    %3150 = vmatpush.msra.mxu0 %v3128
    %3151 = vmatpush.msra.mxu0 %v3127
    %3152 = vmatpush.msra.mxu0 %v3126
    %3153 = vmatpush.msra.mxu0 %v3125
    %3154 = vmatpush.msra.mxu0 %v3124
    %3155 = vmatpush.msra.mxu0 %v3123
    %3156 = vmatpush.msra.mxu0 %v3122
    %3157 = vmatmul.f32.gmra.mxu0 %v3139
    %v3158 = vpop.f32.mrf.mxu0
    %v3159 = vadd.f32 %v163, %v3158
    %3160 = vdwg.mxu0
    %v3162 = vrot.slane %v2954, 4
    %v3163 = vld [vmem:[#allocation3 + $0x1b0] sm:$0xff]
    %v3164 = vld [vmem:[#allocation3 + $0x1b8] sm:$0xff]
    %v3165 = vld [vmem:[#allocation3 + $0x1c0] sm:$0xff]
    %v3166 = vld [vmem:[#allocation3 + $0x1c8] sm:$0xff]
    %v3167 = vld [vmem:[#allocation3 + $0x1d0] sm:$0xff]
    %v3168 = vld [vmem:[#allocation3 + $0x1d8] sm:$0xff]
    %v3169 = vld [vmem:[#allocation3 + $0x1e0] sm:$0xff]
    %v3170 = vld [vmem:[#allocation3 + $0x1e8] sm:$0xff]
    %v3171 = vld [vmem:[#allocation3 + $0x1f0] sm:$0xff]
    %v3172 = vld [vmem:[#allocation3 + $0x1f8] sm:$0xff]
    %v3173 = vld [vmem:[#allocation3 + $0x200] sm:$0xff]
    %v3174 = vld [vmem:[#allocation3 + $0x208] sm:$0xff]
    %v3175 = vld [vmem:[#allocation3 + $0x210] sm:$0xff]
    %v3176 = vld [vmem:[#allocation3 + $0x218] sm:$0xff]
    %v3177 = vld [vmem:[#allocation3 + $0x220] sm:$0xff]
    %v3178 = vld [vmem:[#allocation3 + $0x228] sm:$0xff]
    %v3179 = vld [vmem:[#allocation3 + $0x230] sm:$0xff]
    %v3180 = vld [vmem:[#allocation3 + $0x238] sm:$0xff]
    %v3181 = vld [vmem:[#allocation3 + $0x240] sm:$0xff]
    %v3182 = vld [vmem:[#allocation3 + $0x248] sm:$0xff]
    %v3183 = vld [vmem:[#allocation3 + $0x250] sm:$0xff]
    %v3184 = vld [vmem:[#allocation3 + $0x258] sm:$0xff]
    %v3185 = vld [vmem:[#allocation3 + $0x260] sm:$0xff]
    %v3186 = vld [vmem:[#allocation3 + $0x268] sm:$0xff]
    %v3187 = vld [vmem:[#allocation3 + $0x270] sm:$0xff]
    %v3188 = vld [vmem:[#allocation3 + $0x278] sm:$0xff]
    %v3189 = vld [vmem:[#allocation3 + $0x280] sm:$0xff]
    %v3190 = vld [vmem:[#allocation3 + $0x288] sm:$0xff]
    %v3191 = vld [vmem:[#allocation3 + $0x290] sm:$0xff]
    %v3192 = vld [vmem:[#allocation3 + $0x298] sm:$0xff]
    %v3193 = vld [vmem:[#allocation3 + $0x2a0] sm:$0xff]
    %v3194 = vld [vmem:[#allocation3 + $0x2a8] sm:$0xff]
    %v3195 = vld [vmem:[#allocation3 + $0x2b0] sm:$0xff]
    %v3196 = vld [vmem:[#allocation3 + $0x2b8] sm:$0xff]
    %v3197 = vld [vmem:[#allocation3 + $0x2c0] sm:$0xff]
    %v3198 = vld [vmem:[#allocation3 + $0x2c8] sm:$0xff]
    %v3199 = vld [vmem:[#allocation3 + $0x2d0] sm:$0xff]
    %v3200 = vld [vmem:[#allocation3 + $0x2d8] sm:$0xff]
    %v3201 = vld [vmem:[#allocation3 + $0x2e0] sm:$0xff]
    %v3202 = vld [vmem:[#allocation3 + $0x2e8] sm:$0xff]
    %v3203 = vld [vmem:[#allocation3 + $0x2f0] sm:$0xff]
    %v3204 = vld [vmem:[#allocation3 + $0x2f8] sm:$0xff]
    %v3205 = vld [vmem:[#allocation3 + $0x300] sm:$0xff]
    %v3206 = vld [vmem:[#allocation3 + $0x308] sm:$0xff]
    %v3207 = vld [vmem:[#allocation3 + $0x310] sm:$0xff]
    %v3208 = vld [vmem:[#allocation3 + $0x318] sm:$0xff]
    %v3209 = vld [vmem:[#allocation3 + $0x320] sm:$0xff]
    %v3210 = vld [vmem:[#allocation3 + $0x328] sm:$0xff]
    %v3211 = vld [vmem:[#allocation3 + $0x330] sm:$0xff]
    %v3212 = vld [vmem:[#allocation3 + $0x338] sm:$0xff]
    %v3213 = vld [vmem:[#allocation3 + $0x340] sm:$0xff]
    %v3214 = vld [vmem:[#allocation3 + $0x348] sm:$0xff]
    %v3215 = vld [vmem:[#allocation3 + $0x350] sm:$0xff]
    %v3216 = vld [vmem:[#allocation3 + $0x358] sm:$0xff]
    %v3217 = vld [vmem:[#allocation3 + $0x360] sm:$0xff]
    %v3218 = vld [vmem:[#allocation3 + $0x368] sm:$0xff]
    %v3219 = vld [vmem:[#allocation3 + $0x370] sm:$0xff]
    %v3220 = vld [vmem:[#allocation3 + $0x378] sm:$0xff]
    %v3221 = vld [vmem:[#allocation3 + $0x380] sm:$0xff]
    %v3222 = vld [vmem:[#allocation3 + $0x388] sm:$0xff]
    %v3223 = vld [vmem:[#allocation3 + $0x390] sm:$0xff]
    %v3224 = vld [vmem:[#allocation3 + $0x398] sm:$0xff]
    %v3225 = vld [vmem:[#allocation3 + $0x3a0] sm:$0xff]
    %v3226 = vld [vmem:[#allocation3 + $0x3a8] sm:$0xff]
    %v3227 = vld [vmem:[#allocation3 + $0x3b0] sm:$0xff]
    %v3228 = vld [vmem:[#allocation3 + $0x3b8] sm:$0xff]
    %v3229 = vld [vmem:[#allocation3 + $0x3c0] sm:$0xff]
    %v3230 = vld [vmem:[#allocation3 + $0x3c8] sm:$0xff]
    %v3231 = vld [vmem:[#allocation3 + $0x3d0] sm:$0xff]
    %v3232 = vld [vmem:[#allocation3 + $0x3d8] sm:$0xff]
    %v3233 = vld [vmem:[#allocation3 + $0x3e0] sm:$0xff]
    %v3234 = vld [vmem:[#allocation3 + $0x3e8] sm:$0xff]
    %v3235 = vld [vmem:[#allocation3 + $0x3f0] sm:$0xff]
    %v3236 = vld [vmem:[#allocation3 + $0x3f8] sm:$0xff]
    %v3237 = vld [vmem:[#allocation3 + $0x400] sm:$0xff]
    %v3238 = vld [vmem:[#allocation3 + $0x408] sm:$0xff]
    %v3239 = vld [vmem:[#allocation3 + $0x410] sm:$0xff]
    %v3240 = vld [vmem:[#allocation3 + $0x418] sm:$0xff]
    %v3241 = vld [vmem:[#allocation3 + $0x420] sm:$0xff]
    %v3242 = vld [vmem:[#allocation3 + $0x428] sm:$0xff]
    %v3243 = vld [vmem:[#allocation3 + $0x430] sm:$0xff]
    %v3244 = vld [vmem:[#allocation3 + $0x438] sm:$0xff]
    %v3245 = vld [vmem:[#allocation3 + $0x440] sm:$0xff]
    %v3246 = vld [vmem:[#allocation3 + $0x448] sm:$0xff]
    %v3247 = vld [vmem:[#allocation3 + $0x450] sm:$0xff]
    %v3248 = vld [vmem:[#allocation3 + $0x458] sm:$0xff]
    %v3249 = vld [vmem:[#allocation3 + $0x460] sm:$0xff]
    %v3250 = vld [vmem:[#allocation3 + $0x468] sm:$0xff]
    %v3251 = vld [vmem:[#allocation3 + $0x470] sm:$0xff]
    %v3252 = vld [vmem:[#allocation3 + $0x478] sm:$0xff]
    %v3253 = vld [vmem:[#allocation3 + $0x480] sm:$0xff]
    %v3254 = vld [vmem:[#allocation3 + $0x488] sm:$0xff]
    %v3255 = vld [vmem:[#allocation3 + $0x490] sm:$0xff]
    %v3256 = vld [vmem:[#allocation3 + $0x498] sm:$0xff]
    %v3257 = vld [vmem:[#allocation3 + $0x4a0] sm:$0xff]
    %v3258 = vld [vmem:[#allocation3 + $0x4a8] sm:$0xff]
    %v3259 = vrot.slane %v3162, 4
    %3261 = vmatpush.msra.mxu0 %v3208
    %3262 = vmatpush.msra.mxu0 %v3205
    %3263 = vmatpush.msra.mxu0 %v3202
    %3264 = vmatpush.msra.mxu0 %v3199
    %3265 = vmatpush.msra.mxu0 %v3196
    %3266 = vmatpush.msra.mxu0 %v3193
    %3267 = vmatpush.msra.mxu0 %v3190
    %3268 = vmatpush.msra.mxu0 %v3187
    %3269 = vmatpush.msra.mxu0 %v3184
    %3270 = vmatpush.msra.mxu0 %v3181
    %3271 = vmatpush.msra.mxu0 %v3178
    %3272 = vmatpush.msra.mxu0 %v3175
    %3273 = vmatpush.msra.mxu0 %v3172
    %3274 = vmatpush.msra.mxu0 %v3169
    %3275 = vmatpush.msra.mxu0 %v3166
    %3276 = vmatpush.msra.mxu0 %v3163
    %3277 = vmatmul.f32.gmra.mxu0 %v3139
    %v3278 = vpop.f32.mrf.mxu0
    %v3279 = vadd.f32 %v157, %v3278
    %3280 = vdwg.mxu0
    %3281 = vmatpush.msra.mxu0 %v3256
    %3282 = vmatpush.msra.mxu0 %v3253
    %3283 = vmatpush.msra.mxu0 %v3250
    %3284 = vmatpush.msra.mxu0 %v3247
    %3285 = vmatpush.msra.mxu0 %v3244
    %3286 = vmatpush.msra.mxu0 %v3241
    %3287 = vmatpush.msra.mxu0 %v3238
    %3288 = vmatpush.msra.mxu0 %v3235
    %3289 = vmatpush.msra.mxu0 %v3232
    %3290 = vmatpush.msra.mxu0 %v3229
    %3291 = vmatpush.msra.mxu0 %v3226
    %3292 = vmatpush.msra.mxu0 %v3223
    %3293 = vmatpush.msra.mxu0 %v3220
    %3294 = vmatpush.msra.mxu0 %v3217
    %3295 = vmatpush.msra.mxu0 %v3214
    %3296 = vmatpush.msra.mxu0 %v3211
    %3297 = vmatmul.f32.gmra.mxu0 %v3259
    %v3298 = vpop.f32.mrf.mxu0
    %v3299 = vadd.f32 %v3279, %v3298
    %3300 = vdwg.mxu0
    %3301 = vmatpush.msra.mxu0 %v3209
    %3302 = vmatpush.msra.mxu0 %v3206
    %3303 = vmatpush.msra.mxu0 %v3203
    %3304 = vmatpush.msra.mxu0 %v3200
    %3305 = vmatpush.msra.mxu0 %v3197
    %3306 = vmatpush.msra.mxu0 %v3194
    %3307 = vmatpush.msra.mxu0 %v3191
    %3308 = vmatpush.msra.mxu0 %v3188
    %3309 = vmatpush.msra.mxu0 %v3185
    %3310 = vmatpush.msra.mxu0 %v3182
    %3311 = vmatpush.msra.mxu0 %v3179
    %3312 = vmatpush.msra.mxu0 %v3176
    %3313 = vmatpush.msra.mxu0 %v3173
    %3314 = vmatpush.msra.mxu0 %v3170
    %3315 = vmatpush.msra.mxu0 %v3167
    %3316 = vmatpush.msra.mxu0 %v3164
    %3317 = vmatmul.f32.gmra.mxu0 %v3139
    %v3318 = vpop.f32.mrf.mxu0
    %v3319 = vadd.f32 %v158, %v3318
    %3320 = vdwg.mxu0
    %3321 = vmatpush.msra.mxu0 %v3257
    %3322 = vmatpush.msra.mxu0 %v3254
    %3323 = vmatpush.msra.mxu0 %v3251
    %3324 = vmatpush.msra.mxu0 %v3248
    %3325 = vmatpush.msra.mxu0 %v3245
    %3326 = vmatpush.msra.mxu0 %v3242
    %3327 = vmatpush.msra.mxu0 %v3239
    %3328 = vmatpush.msra.mxu0 %v3236
    %3329 = vmatpush.msra.mxu0 %v3233
    %3330 = vmatpush.msra.mxu0 %v3230
    %3331 = vmatpush.msra.mxu0 %v3227
    %3332 = vmatpush.msra.mxu0 %v3224
    %3333 = vmatpush.msra.mxu0 %v3221
    %3334 = vmatpush.msra.mxu0 %v3218
    %3335 = vmatpush.msra.mxu0 %v3215
    %3336 = vmatpush.msra.mxu0 %v3212
    %3337 = vmatmul.f32.gmra.mxu0 %v3259
    %v3338 = vpop.f32.mrf.mxu0
    %v3339 = vadd.f32 %v3319, %v3338
    %3340 = vdwg.mxu0
    %3341 = vmatpush.msra.mxu0 %v3210
    %3342 = vmatpush.msra.mxu0 %v3207
    %3343 = vmatpush.msra.mxu0 %v3204
    %3344 = vmatpush.msra.mxu0 %v3201
    %3345 = vmatpush.msra.mxu0 %v3198
    %3346 = vmatpush.msra.mxu0 %v3195
    %3347 = vmatpush.msra.mxu0 %v3192
    %3348 = vmatpush.msra.mxu0 %v3189
    %3349 = vmatpush.msra.mxu0 %v3186
    %3350 = vmatpush.msra.mxu0 %v3183
    %3351 = vmatpush.msra.mxu0 %v3180
    %3352 = vmatpush.msra.mxu0 %v3177
    %3353 = vmatpush.msra.mxu0 %v3174
    %3354 = vmatpush.msra.mxu0 %v3171
    %3355 = vmatpush.msra.mxu0 %v3168
    %3356 = vmatpush.msra.mxu0 %v3165
    %3357 = vmatmul.f32.gmra.mxu0 %v3139
    %v3358 = vpop.f32.mrf.mxu0
    %v3359 = vadd.f32 %v159, %v3358
    %3360 = vdwg.mxu0
    %3361 = vmatpush.msra.mxu0 %v3258
    %3362 = vmatpush.msra.mxu0 %v3255
    %3363 = vmatpush.msra.mxu0 %v3252
    %3364 = vmatpush.msra.mxu0 %v3249
    %3365 = vmatpush.msra.mxu0 %v3246
    %3366 = vmatpush.msra.mxu0 %v3243
    %3367 = vmatpush.msra.mxu0 %v3240
    %3368 = vmatpush.msra.mxu0 %v3237
    %3369 = vmatpush.msra.mxu0 %v3234
    %3370 = vmatpush.msra.mxu0 %v3231
    %3371 = vmatpush.msra.mxu0 %v3228
    %3372 = vmatpush.msra.mxu0 %v3225
    %3373 = vmatpush.msra.mxu0 %v3222
    %3374 = vmatpush.msra.mxu0 %v3219
    %3375 = vmatpush.msra.mxu0 %v3216
    %3376 = vmatpush.msra.mxu0 %v3213
    %3377 = vmatmul.f32.gmra.mxu0 %v3259
    %v3378 = vpop.f32.mrf.mxu0
    %v3379 = vadd.f32 %v3359, %v3378
    %3380 = vdwg.mxu0
    %v3381 = vxor.u32 %v3299, 2147483648
    %v3382 = vxor.u32 %v3339, 2147483648
    %v3383 = vmul.f32 %v3381, 1.442695
    %v3384 = vpow.pop %v3383
    %v3385 = vmul.f32 %v3382, 1.442695
    %v3386 = vpow.pop %v3385
    %v3387 = vadd.f32 %v3384, 1.0
    %v3388 = vadd.f32 %v3386, 1.0
    %v3389 = vrcp.pop %v3387
    %v3390 = vmul.f32 %v3387, %v3389
    %v3391 = vsub.f32 1.0, %v3390
    %v3392 = vmul.f32 %v3389, %v3391
    %v3393 = vadd.f32 %v3389, %v3392
    %vm3394 = vweird.f32 %v3387
    %vm3395 = vweird.f32 %v3389
    %vm3396 = vmor %vm3394, %vm3395
    %v3397 = vsel %vm3396, %v3389, %v3393
    %v3398 = vand.u32 2147483647, %v3387
    %vm3399 = vcmp.eq.f32.partialorder %v3398, 8.507059e+37
    %v3400 = vand.u32 %v3387, 2147483648
    %v3401 = vor.u32 1.1754944e-38, %v3400
    %v3402 = vsel %vm3399, %v3401, %v3397
    %v3403 = vmul.f32 1.0, %v3402
    %v3404 = vrcp.pop %v3388
    %v3405 = vmul.f32 %v3388, %v3404
    %v3406 = vsub.f32 1.0, %v3405
    %v3407 = vmul.f32 %v3404, %v3406
    %v3408 = vadd.f32 %v3404, %v3407
    %vm3409 = vweird.f32 %v3388
    %vm3410 = vweird.f32 %v3404
    %vm3411 = vmor %vm3409, %vm3410
    %v3412 = vsel %vm3411, %v3404, %v3408
    %v3413 = vand.u32 2147483647, %v3388
    %vm3414 = vcmp.eq.f32.partialorder %v3413, 8.507059e+37
    %v3415 = vand.u32 %v3388, 2147483648
    %v3416 = vor.u32 1.1754944e-38, %v3415
    %v3417 = vsel %vm3414, %v3416, %v3412
    %v3418 = vmul.f32 1.0, %v3417
    %v3419 = vmul.f32 %v3403, %v3379
    %v3420 = vadd.f32 %v3159, %v3419
    %v3421 = vtanh.pop %v3420
    %v3422 = vsub.f32 1.0, %v3418
    %v3423 = vmul.f32 %v3422, %v3421
    %v3424 = vmul.f32 %v3418, %v2954
    %v3425 = vadd.f32 %v3423, %v3424
    %3426 = vst [vmem:[#allocation2 + $0xc] sm:$0x3] %v3425
    %v3427 = vld [vmem:[#allocation3 + $0x30] sm:$0xff]
    %v3428 = vld [vmem:[#allocation3 + $0x38] sm:$0xff]
    %v3429 = vld [vmem:[#allocation3 + $0x40] sm:$0xff]
    %v3430 = vld [vmem:[#allocation3 + $0x48] sm:$0xff]
    %v3431 = vld [vmem:[#allocation3 + $0x50] sm:$0xff]
    %v3432 = vld [vmem:[#allocation3 + $0x58] sm:$0xff]
    %v3433 = vld [vmem:[#allocation3 + $0x60] sm:$0xff]
    %v3434 = vld [vmem:[#allocation3 + $0x68] sm:$0xff]
    %v3435 = vld [vmem:[#allocation3 + $0x70] sm:$0xff]
    %v3436 = vld [vmem:[#allocation3 + $0x78] sm:$0xff]
    %v3437 = vld [vmem:[#allocation3 + $0x80] sm:$0xff]
    %v3438 = vld [vmem:[#allocation3 + $0x88] sm:$0xff]
    %v3439 = vld [vmem:[#allocation3 + $0x90] sm:$0xff]
    %v3440 = vld [vmem:[#allocation3 + $0x98] sm:$0xff]
    %v3441 = vld [vmem:[#allocation3 + $0xa0] sm:$0xff]
    %v3442 = vld [vmem:[#allocation3 + $0xa8] sm:$0xff]
    %v3443 = vld [vmem:[#allocation3 + $0xb0] sm:$0xff]
    %v3444 = vld [vmem:[#allocation3 + $0xb8] sm:$0xff]
    %v3445 = vld [vmem:[#allocation3 + $0xc0] sm:$0xff]
    %v3446 = vld [vmem:[#allocation3 + $0xc8] sm:$0xff]
    %v3447 = vld [vmem:[#allocation3 + $0xd0] sm:$0xff]
    %v3448 = vld [vmem:[#allocation3 + $0xd8] sm:$0xff]
    %v3449 = vld [vmem:[#allocation3 + $0xe0] sm:$0xff]
    %v3450 = vld [vmem:[#allocation3 + $0xe8] sm:$0xff]
    %v3451 = vld [vmem:[#allocation3 + $0xf0] sm:$0xff]
    %v3452 = vld [vmem:[#allocation3 + $0xf8] sm:$0xff]
    %v3453 = vld [vmem:[#allocation3 + $0x100] sm:$0xff]
    %v3454 = vld [vmem:[#allocation3 + $0x108] sm:$0xff]
    %v3455 = vld [vmem:[#allocation3 + $0x110] sm:$0xff]
    %v3456 = vld [vmem:[#allocation3 + $0x118] sm:$0xff]
    %v3457 = vld [vmem:[#allocation3 + $0x120] sm:$0xff]
    %v3458 = vld [vmem:[#allocation3 + $0x128] sm:$0xff]
    %v3459 = vld [vmem:[#allocation3 + $0x130] sm:$0xff]
    %v3460 = vld [vmem:[#allocation3 + $0x138] sm:$0xff]
    %v3461 = vld [vmem:[#allocation3 + $0x140] sm:$0xff]
    %v3462 = vld [vmem:[#allocation3 + $0x148] sm:$0xff]
    %v3463 = vld [vmem:[#allocation3 + $0x150] sm:$0xff]
    %v3464 = vld [vmem:[#allocation3 + $0x158] sm:$0xff]
    %v3465 = vld [vmem:[#allocation3 + $0x160] sm:$0xff]
    %v3466 = vld [vmem:[#allocation3 + $0x168] sm:$0xff]
    %v3467 = vld [vmem:[#allocation3 + $0x170] sm:$0xff]
    %v3468 = vld [vmem:[#allocation3 + $0x178] sm:$0xff]
    %v3469 = vld [vmem:[#allocation3 + $0x180] sm:$0xff]
    %v3470 = vld [vmem:[#allocation3 + $0x188] sm:$0xff]
    %v3471 = vld [vmem:[#allocation3 + $0x190] sm:$0xff]
    %v3472 = vld [vmem:[#allocation3 + $0x198] sm:$0xff]
    %v3473 = vld [vmem:[#allocation3 + $0x1a0] sm:$0xff]
    %v3474 = vld [vmem:[#allocation3 + $0x1a8] sm:$0xff]
    %3475 = vmatpush.msra.mxu0 %v3472
    %3476 = vmatpush.msra.mxu0 %v3469
    %3477 = vmatpush.msra.mxu0 %v3466
    %3478 = vmatpush.msra.mxu0 %v3463
    %3479 = vmatpush.msra.mxu0 %v3460
    %3480 = vmatpush.msra.mxu0 %v3457
    %3481 = vmatpush.msra.mxu0 %v3454
    %3482 = vmatpush.msra.mxu0 %v3451
    %3483 = vmatpush.msra.mxu0 %v3448
    %3484 = vmatpush.msra.mxu0 %v3445
    %3485 = vmatpush.msra.mxu0 %v3442
    %3486 = vmatpush.msra.mxu0 %v3439
    %3487 = vmatpush.msra.mxu0 %v3436
    %3488 = vmatpush.msra.mxu0 %v3433
    %3489 = vmatpush.msra.mxu0 %v3430
    %3490 = vmatpush.msra.mxu0 %v3427
    %3491 = vmatmul.f32.gmra.mxu0 %v3139
    %v3492 = vpop.f32.mrf.mxu0
    %v3493 = vadd.f32 %v148, %v3492
    %3494 = vdwg.mxu0
    %3495 = vmatpush.msra.mxu0 %v3473
    %3496 = vmatpush.msra.mxu0 %v3470
    %3497 = vmatpush.msra.mxu0 %v3467
    %3498 = vmatpush.msra.mxu0 %v3464
    %3499 = vmatpush.msra.mxu0 %v3461
    %3500 = vmatpush.msra.mxu0 %v3458
    %3501 = vmatpush.msra.mxu0 %v3455
    %3502 = vmatpush.msra.mxu0 %v3452
    %3503 = vmatpush.msra.mxu0 %v3449
    %3504 = vmatpush.msra.mxu0 %v3446
    %3505 = vmatpush.msra.mxu0 %v3443
    %3506 = vmatpush.msra.mxu0 %v3440
    %3507 = vmatpush.msra.mxu0 %v3437
    %3508 = vmatpush.msra.mxu0 %v3434
    %3509 = vmatpush.msra.mxu0 %v3431
    %3510 = vmatpush.msra.mxu0 %v3428
    %3511 = vmatmul.f32.gmra.mxu0 %v3139
    %v3512 = vpop.f32.mrf.mxu0
    %v3513 = vadd.f32 %v149, %v3512
    %3514 = vdwg.mxu0
    %3515 = vmatpush.msra.mxu0 %v3474
    %3516 = vmatpush.msra.mxu0 %v3471
    %3517 = vmatpush.msra.mxu0 %v3468
    %3518 = vmatpush.msra.mxu0 %v3465
    %3519 = vmatpush.msra.mxu0 %v3462
    %3520 = vmatpush.msra.mxu0 %v3459
    %3521 = vmatpush.msra.mxu0 %v3456
    %3522 = vmatpush.msra.mxu0 %v3453
    %3523 = vmatpush.msra.mxu0 %v3450
    %3524 = vmatpush.msra.mxu0 %v3447
    %3525 = vmatpush.msra.mxu0 %v3444
    %3526 = vmatpush.msra.mxu0 %v3441
    %3527 = vmatpush.msra.mxu0 %v3438
    %3528 = vmatpush.msra.mxu0 %v3435
    %3529 = vmatpush.msra.mxu0 %v3432
    %3530 = vmatpush.msra.mxu0 %v3429
    %3531 = vmatmul.f32.gmra.mxu0 %v3139
    %v3532 = vpop.f32.mrf.mxu0
    %v3533 = vadd.f32 %v150, %v3532
    %3534 = vdwg.mxu0
    %v3537 = vrot.slane %v3493, 2
    %v3538 = vrot.slane %v3513, 2
    %v3541 = vadd.f32 %v97, %v3537
    %v3542 = vadd.f32 %v120, %v3538
    %v3543 = vxor.u32 %v3541, 2147483648
    %v3544 = vxor.u32 %v3542, 2147483648
    %v3545 = vmul.f32 %v3543, 1.442695
    %v3546 = vpow.pop %v3545
    %v3547 = vmul.f32 %v3544, 1.442695
    %v3548 = vpow.pop %v3547
    %v3549 = vadd.f32 %v3546, 1.0
    %v3550 = vadd.f32 %v3548, 1.0
    %v3551 = vrcp.pop %v3549
    %v3552 = vmul.f32 %v3549, %v3551
    %v3553 = vsub.f32 1.0, %v3552
    %v3554 = vmul.f32 %v3551, %v3553
    %v3555 = vadd.f32 %v3551, %v3554
    %vm3556 = vweird.f32 %v3549
    %vm3557 = vweird.f32 %v3551
    %vm3558 = vmor %vm3556, %vm3557
    %v3559 = vsel %vm3558, %v3551, %v3555
    %v3560 = vand.u32 2147483647, %v3549
    %vm3561 = vcmp.eq.f32.partialorder %v3560, 8.507059e+37
    %v3562 = vand.u32 %v3549, 2147483648
    %v3563 = vor.u32 1.1754944e-38, %v3562
    %v3564 = vsel %vm3561, %v3563, %v3559
    %v3565 = vmul.f32 1.0, %v3564
    %v3566 = vrcp.pop %v3550
    %v3567 = vmul.f32 %v3550, %v3566
    %v3568 = vsub.f32 1.0, %v3567
    %v3569 = vmul.f32 %v3566, %v3568
    %v3570 = vadd.f32 %v3566, %v3569
    %vm3571 = vweird.f32 %v3550
    %vm3572 = vweird.f32 %v3566
    %vm3573 = vmor %vm3571, %vm3572
    %v3574 = vsel %vm3573, %v3566, %v3570
    %v3575 = vand.u32 2147483647, %v3550
    %vm3576 = vcmp.eq.f32.partialorder %v3575, 8.507059e+37
    %v3577 = vand.u32 %v3550, 2147483648
    %v3578 = vor.u32 1.1754944e-38, %v3577
    %v3579 = vsel %vm3576, %v3578, %v3574
    %v3580 = vmul.f32 1.0, %v3579
    %v3582 = vrot.slane %v3533, 2
    %v3584 = vmul.f32 %v3565, %v3582
    %v3585 = vadd.f32 %v143, %v3584
    %v3586 = vtanh.pop %v3585
    %v3587 = vsub.f32 1.0, %v3580
    %v3588 = vmul.f32 %v3587, %v3586
    %v3589 = vrot.slane %v3121, 6
    %v3591 = vmul.f32 %v3580, %v3589
    %v3592 = vadd.f32 %v3588, %v3591
    %v3593 = vld [vmem:[#allocation6] sm:$0xff]
    %v3594 = vld [vmem:[#allocation6 + $0x8] sm:$0xff]
    %v3595 = vld [vmem:[#allocation6 + $0x10] sm:$0xff]
    %v3596 = vld [vmem:[#allocation6 + $0x18] sm:$0xff]
    %v3597 = vld [vmem:[#allocation6 + $0x20] sm:$0xff]
    %v3598 = vld [vmem:[#allocation6 + $0x28] sm:$0xff]
    %v3599 = vld [vmem:[#allocation6 + $0x30] sm:$0xff]
    %v3600 = vld [vmem:[#allocation6 + $0x38] sm:$0xff]
    %v3601 = vld [vmem:[#allocation6 + $0x40] sm:$0xff]
    %v3602 = vld [vmem:[#allocation6 + $0x48] sm:$0xff]
    %v3603 = vld [vmem:[#allocation6 + $0x50] sm:$0xff]
    %v3604 = vld [vmem:[#allocation6 + $0x58] sm:$0xff]
    %v3605 = vld [vmem:[#allocation6 + $0x60] sm:$0xff]
    %v3606 = vld [vmem:[#allocation6 + $0x68] sm:$0xff]
    %v3607 = vld [vmem:[#allocation6 + $0x70] sm:$0xff]
    %v3608 = vld [vmem:[#allocation6 + $0x78] sm:$0xff]
    %v3610 = vrot.slane %v3592, 6
    %3612 = vmatpush.msra.mxu0 %v3608
    %3613 = vmatpush.msra.mxu0 %v3607
    %3614 = vmatpush.msra.mxu0 %v3606
    %3615 = vmatpush.msra.mxu0 %v3605
    %3616 = vmatpush.msra.mxu0 %v3604
    %3617 = vmatpush.msra.mxu0 %v3603
    %3618 = vmatpush.msra.mxu0 %v3602
    %3619 = vmatpush.msra.mxu0 %v3601
    %3620 = vmatpush.msra.mxu0 %v3600
    %3621 = vmatpush.msra.mxu0 %v3599
    %3622 = vmatpush.msra.mxu0 %v3598
    %3623 = vmatpush.msra.mxu0 %v3597
    %3624 = vmatpush.msra.mxu0 %v3596
    %3625 = vmatpush.msra.mxu0 %v3595
    %3626 = vmatpush.msra.mxu0 %v3594
    %3627 = vmatpush.msra.mxu0 %v3593
    %3628 = vmatmul.f32.gmra.mxu0 %v3610
    %v3629 = vpop.f32.mrf.mxu0
    %v3630 = vadd.f32 %v163, %v3629
    %3631 = vdwg.mxu0
    %v3633 = vrot.slane %v3425, 2
    %v3634 = vld [vmem:[#allocation3 + $0x1b0] sm:$0xff]
    %v3635 = vld [vmem:[#allocation3 + $0x1b8] sm:$0xff]
    %v3636 = vld [vmem:[#allocation3 + $0x1c0] sm:$0xff]
    %v3637 = vld [vmem:[#allocation3 + $0x1c8] sm:$0xff]
    %v3638 = vld [vmem:[#allocation3 + $0x1d0] sm:$0xff]
    %v3639 = vld [vmem:[#allocation3 + $0x1d8] sm:$0xff]
    %v3640 = vld [vmem:[#allocation3 + $0x1e0] sm:$0xff]
    %v3641 = vld [vmem:[#allocation3 + $0x1e8] sm:$0xff]
    %v3642 = vld [vmem:[#allocation3 + $0x1f0] sm:$0xff]
    %v3643 = vld [vmem:[#allocation3 + $0x1f8] sm:$0xff]
    %v3644 = vld [vmem:[#allocation3 + $0x200] sm:$0xff]
    %v3645 = vld [vmem:[#allocation3 + $0x208] sm:$0xff]
    %v3646 = vld [vmem:[#allocation3 + $0x210] sm:$0xff]
    %v3647 = vld [vmem:[#allocation3 + $0x218] sm:$0xff]
    %v3648 = vld [vmem:[#allocation3 + $0x220] sm:$0xff]
    %v3649 = vld [vmem:[#allocation3 + $0x228] sm:$0xff]
    %v3650 = vld [vmem:[#allocation3 + $0x230] sm:$0xff]
    %v3651 = vld [vmem:[#allocation3 + $0x238] sm:$0xff]
    %v3652 = vld [vmem:[#allocation3 + $0x240] sm:$0xff]
    %v3653 = vld [vmem:[#allocation3 + $0x248] sm:$0xff]
    %v3654 = vld [vmem:[#allocation3 + $0x250] sm:$0xff]
    %v3655 = vld [vmem:[#allocation3 + $0x258] sm:$0xff]
    %v3656 = vld [vmem:[#allocation3 + $0x260] sm:$0xff]
    %v3657 = vld [vmem:[#allocation3 + $0x268] sm:$0xff]
    %v3658 = vld [vmem:[#allocation3 + $0x270] sm:$0xff]
    %v3659 = vld [vmem:[#allocation3 + $0x278] sm:$0xff]
    %v3660 = vld [vmem:[#allocation3 + $0x280] sm:$0xff]
    %v3661 = vld [vmem:[#allocation3 + $0x288] sm:$0xff]
    %v3662 = vld [vmem:[#allocation3 + $0x290] sm:$0xff]
    %v3663 = vld [vmem:[#allocation3 + $0x298] sm:$0xff]
    %v3664 = vld [vmem:[#allocation3 + $0x2a0] sm:$0xff]
    %v3665 = vld [vmem:[#allocation3 + $0x2a8] sm:$0xff]
    %v3666 = vld [vmem:[#allocation3 + $0x2b0] sm:$0xff]
    %v3667 = vld [vmem:[#allocation3 + $0x2b8] sm:$0xff]
    %v3668 = vld [vmem:[#allocation3 + $0x2c0] sm:$0xff]
    %v3669 = vld [vmem:[#allocation3 + $0x2c8] sm:$0xff]
    %v3670 = vld [vmem:[#allocation3 + $0x2d0] sm:$0xff]
    %v3671 = vld [vmem:[#allocation3 + $0x2d8] sm:$0xff]
    %v3672 = vld [vmem:[#allocation3 + $0x2e0] sm:$0xff]
    %v3673 = vld [vmem:[#allocation3 + $0x2e8] sm:$0xff]
    %v3674 = vld [vmem:[#allocation3 + $0x2f0] sm:$0xff]
    %v3675 = vld [vmem:[#allocation3 + $0x2f8] sm:$0xff]
    %v3676 = vld [vmem:[#allocation3 + $0x300] sm:$0xff]
    %v3677 = vld [vmem:[#allocation3 + $0x308] sm:$0xff]
    %v3678 = vld [vmem:[#allocation3 + $0x310] sm:$0xff]
    %v3679 = vld [vmem:[#allocation3 + $0x318] sm:$0xff]
    %v3680 = vld [vmem:[#allocation3 + $0x320] sm:$0xff]
    %v3681 = vld [vmem:[#allocation3 + $0x328] sm:$0xff]
    %v3682 = vld [vmem:[#allocation3 + $0x330] sm:$0xff]
    %v3683 = vld [vmem:[#allocation3 + $0x338] sm:$0xff]
    %v3684 = vld [vmem:[#allocation3 + $0x340] sm:$0xff]
    %v3685 = vld [vmem:[#allocation3 + $0x348] sm:$0xff]
    %v3686 = vld [vmem:[#allocation3 + $0x350] sm:$0xff]
    %v3687 = vld [vmem:[#allocation3 + $0x358] sm:$0xff]
    %v3688 = vld [vmem:[#allocation3 + $0x360] sm:$0xff]
    %v3689 = vld [vmem:[#allocation3 + $0x368] sm:$0xff]
    %v3690 = vld [vmem:[#allocation3 + $0x370] sm:$0xff]
    %v3691 = vld [vmem:[#allocation3 + $0x378] sm:$0xff]
    %v3692 = vld [vmem:[#allocation3 + $0x380] sm:$0xff]
    %v3693 = vld [vmem:[#allocation3 + $0x388] sm:$0xff]
    %v3694 = vld [vmem:[#allocation3 + $0x390] sm:$0xff]
    %v3695 = vld [vmem:[#allocation3 + $0x398] sm:$0xff]
    %v3696 = vld [vmem:[#allocation3 + $0x3a0] sm:$0xff]
    %v3697 = vld [vmem:[#allocation3 + $0x3a8] sm:$0xff]
    %v3698 = vld [vmem:[#allocation3 + $0x3b0] sm:$0xff]
    %v3699 = vld [vmem:[#allocation3 + $0x3b8] sm:$0xff]
    %v3700 = vld [vmem:[#allocation3 + $0x3c0] sm:$0xff]
    %v3701 = vld [vmem:[#allocation3 + $0x3c8] sm:$0xff]
    %v3702 = vld [vmem:[#allocation3 + $0x3d0] sm:$0xff]
    %v3703 = vld [vmem:[#allocation3 + $0x3d8] sm:$0xff]
    %v3704 = vld [vmem:[#allocation3 + $0x3e0] sm:$0xff]
    %v3705 = vld [vmem:[#allocation3 + $0x3e8] sm:$0xff]
    %v3706 = vld [vmem:[#allocation3 + $0x3f0] sm:$0xff]
    %v3707 = vld [vmem:[#allocation3 + $0x3f8] sm:$0xff]
    %v3708 = vld [vmem:[#allocation3 + $0x400] sm:$0xff]
    %v3709 = vld [vmem:[#allocation3 + $0x408] sm:$0xff]
    %v3710 = vld [vmem:[#allocation3 + $0x410] sm:$0xff]
    %v3711 = vld [vmem:[#allocation3 + $0x418] sm:$0xff]
    %v3712 = vld [vmem:[#allocation3 + $0x420] sm:$0xff]
    %v3713 = vld [vmem:[#allocation3 + $0x428] sm:$0xff]
    %v3714 = vld [vmem:[#allocation3 + $0x430] sm:$0xff]
    %v3715 = vld [vmem:[#allocation3 + $0x438] sm:$0xff]
    %v3716 = vld [vmem:[#allocation3 + $0x440] sm:$0xff]
    %v3717 = vld [vmem:[#allocation3 + $0x448] sm:$0xff]
    %v3718 = vld [vmem:[#allocation3 + $0x450] sm:$0xff]
    %v3719 = vld [vmem:[#allocation3 + $0x458] sm:$0xff]
    %v3720 = vld [vmem:[#allocation3 + $0x460] sm:$0xff]
    %v3721 = vld [vmem:[#allocation3 + $0x468] sm:$0xff]
    %v3722 = vld [vmem:[#allocation3 + $0x470] sm:$0xff]
    %v3723 = vld [vmem:[#allocation3 + $0x478] sm:$0xff]
    %v3724 = vld [vmem:[#allocation3 + $0x480] sm:$0xff]
    %v3725 = vld [vmem:[#allocation3 + $0x488] sm:$0xff]
    %v3726 = vld [vmem:[#allocation3 + $0x490] sm:$0xff]
    %v3727 = vld [vmem:[#allocation3 + $0x498] sm:$0xff]
    %v3728 = vld [vmem:[#allocation3 + $0x4a0] sm:$0xff]
    %v3729 = vld [vmem:[#allocation3 + $0x4a8] sm:$0xff]
    %v3730 = vrot.slane %v3633, 6
    %3732 = vmatpush.msra.mxu0 %v3679
    %3733 = vmatpush.msra.mxu0 %v3676
    %3734 = vmatpush.msra.mxu0 %v3673
    %3735 = vmatpush.msra.mxu0 %v3670
    %3736 = vmatpush.msra.mxu0 %v3667
    %3737 = vmatpush.msra.mxu0 %v3664
    %3738 = vmatpush.msra.mxu0 %v3661
    %3739 = vmatpush.msra.mxu0 %v3658
    %3740 = vmatpush.msra.mxu0 %v3655
    %3741 = vmatpush.msra.mxu0 %v3652
    %3742 = vmatpush.msra.mxu0 %v3649
    %3743 = vmatpush.msra.mxu0 %v3646
    %3744 = vmatpush.msra.mxu0 %v3643
    %3745 = vmatpush.msra.mxu0 %v3640
    %3746 = vmatpush.msra.mxu0 %v3637
    %3747 = vmatpush.msra.mxu0 %v3634
    %3748 = vmatmul.f32.gmra.mxu0 %v3610
    %v3749 = vpop.f32.mrf.mxu0
    %v3750 = vadd.f32 %v157, %v3749
    %3751 = vdwg.mxu0
    %3752 = vmatpush.msra.mxu0 %v3727
    %3753 = vmatpush.msra.mxu0 %v3724
    %3754 = vmatpush.msra.mxu0 %v3721
    %3755 = vmatpush.msra.mxu0 %v3718
    %3756 = vmatpush.msra.mxu0 %v3715
    %3757 = vmatpush.msra.mxu0 %v3712
    %3758 = vmatpush.msra.mxu0 %v3709
    %3759 = vmatpush.msra.mxu0 %v3706
    %3760 = vmatpush.msra.mxu0 %v3703
    %3761 = vmatpush.msra.mxu0 %v3700
    %3762 = vmatpush.msra.mxu0 %v3697
    %3763 = vmatpush.msra.mxu0 %v3694
    %3764 = vmatpush.msra.mxu0 %v3691
    %3765 = vmatpush.msra.mxu0 %v3688
    %3766 = vmatpush.msra.mxu0 %v3685
    %3767 = vmatpush.msra.mxu0 %v3682
    %3768 = vmatmul.f32.gmra.mxu0 %v3730
    %v3769 = vpop.f32.mrf.mxu0
    %v3770 = vadd.f32 %v3750, %v3769
    %3771 = vdwg.mxu0
    %3772 = vmatpush.msra.mxu0 %v3680
    %3773 = vmatpush.msra.mxu0 %v3677
    %3774 = vmatpush.msra.mxu0 %v3674
    %3775 = vmatpush.msra.mxu0 %v3671
    %3776 = vmatpush.msra.mxu0 %v3668
    %3777 = vmatpush.msra.mxu0 %v3665
    %3778 = vmatpush.msra.mxu0 %v3662
    %3779 = vmatpush.msra.mxu0 %v3659
    %3780 = vmatpush.msra.mxu0 %v3656
    %3781 = vmatpush.msra.mxu0 %v3653
    %3782 = vmatpush.msra.mxu0 %v3650
    %3783 = vmatpush.msra.mxu0 %v3647
    %3784 = vmatpush.msra.mxu0 %v3644
    %3785 = vmatpush.msra.mxu0 %v3641
    %3786 = vmatpush.msra.mxu0 %v3638
    %3787 = vmatpush.msra.mxu0 %v3635
    %3788 = vmatmul.f32.gmra.mxu0 %v3610
    %v3789 = vpop.f32.mrf.mxu0
    %v3790 = vadd.f32 %v158, %v3789
    %3791 = vdwg.mxu0
    %3792 = vmatpush.msra.mxu0 %v3728
    %3793 = vmatpush.msra.mxu0 %v3725
    %3794 = vmatpush.msra.mxu0 %v3722
    %3795 = vmatpush.msra.mxu0 %v3719
    %3796 = vmatpush.msra.mxu0 %v3716
    %3797 = vmatpush.msra.mxu0 %v3713
    %3798 = vmatpush.msra.mxu0 %v3710
    %3799 = vmatpush.msra.mxu0 %v3707
    %3800 = vmatpush.msra.mxu0 %v3704
    %3801 = vmatpush.msra.mxu0 %v3701
    %3802 = vmatpush.msra.mxu0 %v3698
    %3803 = vmatpush.msra.mxu0 %v3695
    %3804 = vmatpush.msra.mxu0 %v3692
    %3805 = vmatpush.msra.mxu0 %v3689
    %3806 = vmatpush.msra.mxu0 %v3686
    %3807 = vmatpush.msra.mxu0 %v3683
    %3808 = vmatmul.f32.gmra.mxu0 %v3730
    %v3809 = vpop.f32.mrf.mxu0
    %v3810 = vadd.f32 %v3790, %v3809
    %3811 = vdwg.mxu0
    %3812 = vmatpush.msra.mxu0 %v3681
    %3813 = vmatpush.msra.mxu0 %v3678
    %3814 = vmatpush.msra.mxu0 %v3675
    %3815 = vmatpush.msra.mxu0 %v3672
    %3816 = vmatpush.msra.mxu0 %v3669
    %3817 = vmatpush.msra.mxu0 %v3666
    %3818 = vmatpush.msra.mxu0 %v3663
    %3819 = vmatpush.msra.mxu0 %v3660
    %3820 = vmatpush.msra.mxu0 %v3657
    %3821 = vmatpush.msra.mxu0 %v3654
    %3822 = vmatpush.msra.mxu0 %v3651
    %3823 = vmatpush.msra.mxu0 %v3648
    %3824 = vmatpush.msra.mxu0 %v3645
    %3825 = vmatpush.msra.mxu0 %v3642
    %3826 = vmatpush.msra.mxu0 %v3639
    %3827 = vmatpush.msra.mxu0 %v3636
    %3828 = vmatmul.f32.gmra.mxu0 %v3610
    %v3829 = vpop.f32.mrf.mxu0
    %v3830 = vadd.f32 %v159, %v3829
    %3831 = vdwg.mxu0
    %3832 = vmatpush.msra.mxu0 %v3729
    %3833 = vmatpush.msra.mxu0 %v3726
    %3834 = vmatpush.msra.mxu0 %v3723
    %3835 = vmatpush.msra.mxu0 %v3720
    %3836 = vmatpush.msra.mxu0 %v3717
    %3837 = vmatpush.msra.mxu0 %v3714
    %3838 = vmatpush.msra.mxu0 %v3711
    %3839 = vmatpush.msra.mxu0 %v3708
    %3840 = vmatpush.msra.mxu0 %v3705
    %3841 = vmatpush.msra.mxu0 %v3702
    %3842 = vmatpush.msra.mxu0 %v3699
    %3843 = vmatpush.msra.mxu0 %v3696
    %3844 = vmatpush.msra.mxu0 %v3693
    %3845 = vmatpush.msra.mxu0 %v3690
    %3846 = vmatpush.msra.mxu0 %v3687
    %3847 = vmatpush.msra.mxu0 %v3684
    %3848 = vmatmul.f32.gmra.mxu0 %v3730
    %v3849 = vpop.f32.mrf.mxu0
    %v3850 = vadd.f32 %v3830, %v3849
    %3851 = vdwg.mxu0
    %v3852 = vxor.u32 %v3770, 2147483648
    %v3853 = vxor.u32 %v3810, 2147483648
    %v3854 = vmul.f32 %v3852, 1.442695
    %v3855 = vpow.pop %v3854
    %v3856 = vmul.f32 %v3853, 1.442695
    %v3857 = vpow.pop %v3856
    %v3858 = vadd.f32 %v3855, 1.0
    %v3859 = vadd.f32 %v3857, 1.0
    %v3860 = vrcp.pop %v3858
    %v3861 = vmul.f32 %v3858, %v3860
    %v3862 = vsub.f32 1.0, %v3861
    %v3863 = vmul.f32 %v3860, %v3862
    %v3864 = vadd.f32 %v3860, %v3863
    %vm3865 = vweird.f32 %v3858
    %vm3866 = vweird.f32 %v3860
    %vm3867 = vmor %vm3865, %vm3866
    %v3868 = vsel %vm3867, %v3860, %v3864
    %v3869 = vand.u32 2147483647, %v3858
    %vm3870 = vcmp.eq.f32.partialorder %v3869, 8.507059e+37
    %v3871 = vand.u32 %v3858, 2147483648
    %v3872 = vor.u32 1.1754944e-38, %v3871
    %v3873 = vsel %vm3870, %v3872, %v3868
    %v3874 = vmul.f32 1.0, %v3873
    %v3875 = vrcp.pop %v3859
    %v3876 = vmul.f32 %v3859, %v3875
    %v3877 = vsub.f32 1.0, %v3876
    %v3878 = vmul.f32 %v3875, %v3877
    %v3879 = vadd.f32 %v3875, %v3878
    %vm3880 = vweird.f32 %v3859
    %vm3881 = vweird.f32 %v3875
    %vm3882 = vmor %vm3880, %vm3881
    %v3883 = vsel %vm3882, %v3875, %v3879
    %v3884 = vand.u32 2147483647, %v3859
    %vm3885 = vcmp.eq.f32.partialorder %v3884, 8.507059e+37
    %v3886 = vand.u32 %v3859, 2147483648
    %v3887 = vor.u32 1.1754944e-38, %v3886
    %v3888 = vsel %vm3885, %v3887, %v3883
    %v3889 = vmul.f32 1.0, %v3888
    %v3890 = vmul.f32 %v3874, %v3850
    %v3891 = vadd.f32 %v3630, %v3890
    %v3892 = vtanh.pop %v3891
    %v3893 = vsub.f32 1.0, %v3889
    %v3894 = vmul.f32 %v3893, %v3892
    %v3895 = vmul.f32 %v3889, %v3425
    %v3896 = vadd.f32 %v3894, %v3895
    %3897 = vst [vmem:[#allocation2 + $0xe] sm:$0x3] %v3896
    %vm3898 = vcmask 261126
    %3899 = vst.msk [vmem:[#allocation8 - $0x6] sm:$0xc0] %vm3898, %v3592
    %s3900 = scalar_lea.vmem [#allocation8], 2
    %vm3901 = vcmask 254976
    %3902 = vst.msk [vmem:[%s3900] sm:$0x3] %vm3901, %v3896
    %v3903 = vld [vmem:[#allocation2] sm:$0xff]
    %v3904 = vld [vmem:[#allocation2 + $0x8] sm:$0xff]
    %v3905 = vld [vmem:[#allocation6 + $0x80] sm:$0xff]
    %v3906 = vld [vmem:[#allocation6 + $0x88] sm:$0xff]
    %v3907 = vld [vmem:[#allocation6 + $0x90] sm:$0xff]
    %v3908 = vld [vmem:[#allocation6 + $0x98] sm:$0xff]
    %v3909 = vld [vmem:[#allocation6 + $0xa0] sm:$0xff]
    %v3910 = vld [vmem:[#allocation6 + $0xa8] sm:$0xff]
    %v3911 = vld [vmem:[#allocation6 + $0xb0] sm:$0xff]
    %v3912 = vld [vmem:[#allocation6 + $0xb8] sm:$0xff]
    %v3913 = vld [vmem:[#allocation6 + $0xc0] sm:$0xff]
    %v3914 = vld [vmem:[#allocation6 + $0xc8] sm:$0xff]
    %v3915 = vld [vmem:[#allocation6 + $0xd0] sm:$0xff]
    %v3916 = vld [vmem:[#allocation6 + $0xd8] sm:$0xff]
    %v3917 = vld [vmem:[#allocation6 + $0xe0] sm:$0xff]
    %v3918 = vld [vmem:[#allocation6 + $0xe8] sm:$0xff]
    %v3919 = vld [vmem:[#allocation6 + $0xf0] sm:$0xff]
    %v3920 = vld [vmem:[#allocation6 + $0xf8] sm:$0xff]
    %v3921 = vld [vmem:[#allocation6 + $0x218] sm:$0x1]
    %v3922 = vperm.slane %v3921, 0
    %3923 = vmatpush.msra.mxu0 %v3920
    %3924 = vmatpush.msra.mxu0 %v3919
    %3925 = vmatpush.msra.mxu0 %v3918
    %3926 = vmatpush.msra.mxu0 %v3917
    %3927 = vmatpush.msra.mxu0 %v3916
    %3928 = vmatpush.msra.mxu0 %v3915
    %3929 = vmatpush.msra.mxu0 %v3914
    %3930 = vmatpush.msra.mxu0 %v3913
    %3931 = vmatpush.msra.mxu0 %v3912
    %3932 = vmatpush.msra.mxu0 %v3911
    %3933 = vmatpush.msra.mxu0 %v3910
    %3934 = vmatpush.msra.mxu0 %v3909
    %3935 = vmatpush.msra.mxu0 %v3908
    %3936 = vmatpush.msra.mxu0 %v3907
    %3937 = vmatpush.msra.mxu0 %v3906
    %3938 = vmatpush.msra.mxu0 %v3905
    %3939 = vmatmul.f32.gmra.mxu0 %v3903
    %v3940 = vpop.f32.mrf.mxu0
    %v3941 = vadd.f32 %v3922, %v3940
    %3942 = vmatmul.f32.gmra.mxu0 %v3904
    %v3943 = vpop.f32.mrf.mxu0
    %v3944 = vadd.f32 %v3922, %v3943
    %3945 = vdwg.mxu0
    %v3946 = vmax.f32 %v3941, 0.0
    %v3947 = vmax.f32 %v3944, 0.0
    %v3948 = vld [vmem:[#allocation6 + $0x100] sm:$0xff]
    %v3949 = vld [vmem:[#allocation6 + $0x108] sm:$0xff]
    %v3950 = vld [vmem:[#allocation6 + $0x219] sm:$0x1]
    %v3951 = vperm.slane %v3950, 0
    %v3953 = vsel %vm69, %v3946, 0
    %v3956 = vsel %vm69, %v3947, 0
    %3958 = vmatpush.msra.mxu0 0.0
    %3959 = vmatpush.msra.mxu0 0.0
    %3960 = vmatpush.msra.mxu0 0.0
    %3961 = vmatpush.msra.mxu0 0.0
    %3962 = vmatpush.msra.mxu0 0.0
    %3963 = vmatpush.msra.mxu0 0.0
    %3964 = vmatpush.msra.mxu0 0.0
    %3965 = vmatpush.msra.mxu0 0.0
    %3966 = vmatpush.msra.mxu0 0.0
    %3967 = vmatpush.msra.mxu0 0.0
    %3968 = vmatpush.msra.mxu0 0.0
    %3969 = vmatpush.msra.mxu0 0.0
    %3970 = vmatpush.msra.mxu0 0.0
    %3971 = vmatpush.msra.mxu0 0.0
    %3972 = vmatpush.msra.mxu0 %v3949
    %3973 = vmatpush.msra.mxu0 %v3948
    %3974 = vmatmul.f32.gmra.mxu0 %v3953
    %v3975 = vpop.f32.mrf.mxu0
    %v3976 = vadd.f32 %v3951, %v3975
    %3977 = vmatmul.f32.gmra.mxu0 %v3956
    %v3978 = vpop.f32.mrf.mxu0
    %v3979 = vadd.f32 %v3951, %v3978
    %3980 = vdwg.mxu0
    %v3982 = vrot.slane %v3976, 2
    %v3984 = vmax.f32 %v3976, %v3982
    %v3985 = vrot.slane %v3976, 4
    %v3987 = vmax.f32 %v3984, %v3985
    %v3988 = vrot.slane %v3976, 6
    %v3990 = vmax.f32 %v3987, %v3988
    %v3991 = vmax.f32 %v3990, %v3979
    %v3993 = vrot.slane %v3979, 2
    %v3995 = vmax.f32 %v3991, %v3993
    %v3996 = vrot.slane %v3979, 4
    %v3998 = vmax.f32 %v3995, %v3996
    %v3999 = vrot.slane %v3979, 6
    %v4001 = vmax.f32 %v3998, %v3999
    %v4002 = vsub.f32 %v3976, %v4001
    %v4003 = vmul.f32 %v4002, 1.442695
    %v4004 = vpow.pop %v4003
    %v4005 = vadd.f32 %v4004, 0.0
    %v4006 = vld [vmem:[#allocation2] sm:$0x3]
    %4008 = vset.pattern.permute.xlu0 0
    %4009 = vperm.xlu0 %4008, %v4004
    %v4010 = vpop.permute.xlu0 %4009
    %v4012 = vmul.f32 %v4010, %v4006
    %v4013 = vadd.f32 %v4012, 0.0
    %v4015 = vrot.slane %v4001, 6
    %v4017 = vsub.f32 %v3976, %v4015
    %v4018 = vmul.f32 %v4017, 1.442695
    %v4019 = vpow.pop %v4018
    %v4021 = vrot.slane %v4019, 2
    %v4023 = vadd.f32 %v4005, %v4021
    %v4024 = vld [vmem:[#allocation2 + $0x2] sm:$0x3]
    %4025 = vset.pattern.permute.xlu0 0
    %4026 = vperm.xlu0 %4025, %v4019
    %v4027 = vpop.permute.xlu0 %4026
    %v4030 = vrot.slane %v4024, 6
    %v4032 = vmul.f32 %v4027, %v4030
    %v4034 = vrot.slane %v4032, 2
    %v4036 = vadd.f32 %v4013, %v4034
    %v4037 = vrot.slane %v4001, 4
    %v4039 = vsub.f32 %v3976, %v4037
    %v4040 = vmul.f32 %v4039, 1.442695
    %v4041 = vpow.pop %v4040
    %v4043 = vrot.slane %v4041, 4
    %v4045 = vadd.f32 %v4023, %v4043
    %v4046 = vld [vmem:[#allocation2 + $0x4] sm:$0x3]
    %4047 = vset.pattern.permute.xlu0 0
    %4048 = vperm.xlu0 %4047, %v4041
    %v4049 = vpop.permute.xlu0 %4048
    %v4052 = vrot.slane %v4046, 4
    %v4054 = vmul.f32 %v4049, %v4052
    %v4056 = vrot.slane %v4054, 4
    %v4058 = vadd.f32 %v4036, %v4056
    %v4059 = vrot.slane %v4001, 2
    %v4061 = vsub.f32 %v3976, %v4059
    %v4062 = vmul.f32 %v4061, 1.442695
    %v4063 = vpow.pop %v4062
    %v4065 = vrot.slane %v4063, 6
    %v4067 = vadd.f32 %v4045, %v4065
    %v4068 = vld [vmem:[#allocation2 + $0x6] sm:$0x3]
    %4069 = vset.pattern.permute.xlu0 0
    %4070 = vperm.xlu0 %4069, %v4063
    %v4071 = vpop.permute.xlu0 %4070
    %v4074 = vrot.slane %v4068, 2
    %v4076 = vmul.f32 %v4071, %v4074
    %v4078 = vrot.slane %v4076, 6
    %v4080 = vadd.f32 %v4058, %v4078
    %v4081 = vsub.f32 %v3979, %v4001
    %v4082 = vmul.f32 %v4081, 1.442695
    %v4083 = vpow.pop %v4082
    %v4084 = vadd.f32 %v4067, %v4083
    %v4085 = vld [vmem:[#allocation2 + $0x8] sm:$0x3]
    %4087 = vset.pattern.permute.xlu0 0
    %4088 = vperm.xlu0 %4087, %v4083
    %v4089 = vpop.permute.xlu0 %4088
    %v4091 = vmul.f32 %v4089, %v4085
    %v4092 = vadd.f32 %v4080, %v4091
    %v4093 = vsub.f32 %v3979, %v4015
    %v4094 = vmul.f32 %v4093, 1.442695
    %v4095 = vpow.pop %v4094
    %v4097 = vrot.slane %v4095, 2
    %v4099 = vadd.f32 %v4084, %v4097
    %v4100 = vld [vmem:[#allocation2 + $0xa] sm:$0x3]
    %4101 = vset.pattern.permute.xlu0 0
    %4102 = vperm.xlu0 %4101, %v4095
    %v4103 = vpop.permute.xlu0 %4102
    %v4106 = vrot.slane %v4100, 6
    %v4108 = vmul.f32 %v4103, %v4106
    %v4110 = vrot.slane %v4108, 2
    %v4112 = vadd.f32 %v4092, %v4110
    %v4113 = vsub.f32 %v3979, %v4037
    %v4114 = vmul.f32 %v4113, 1.442695
    %v4115 = vpow.pop %v4114
    %v4117 = vrot.slane %v4115, 4
    %v4119 = vadd.f32 %v4099, %v4117
    %v4120 = vld [vmem:[#allocation2 + $0xc] sm:$0x3]
    %4121 = vset.pattern.permute.xlu0 0
    %4122 = vperm.xlu0 %4121, %v4115
    %v4123 = vpop.permute.xlu0 %4122
    %v4126 = vrot.slane %v4120, 4
    %v4128 = vmul.f32 %v4123, %v4126
    %v4130 = vrot.slane %v4128, 4
    %v4132 = vadd.f32 %v4112, %v4130
    %v4133 = vsub.f32 %v3979, %v4059
    %v4134 = vmul.f32 %v4133, 1.442695
    %v4135 = vpow.pop %v4134
    %v4137 = vrot.slane %v4135, 6
    %v4139 = vadd.f32 %v4119, %v4137
    %v4140 = vld [vmem:[#allocation2 + $0xe] sm:$0x3]
    %4141 = vset.pattern.permute.xlu0 0
    %4142 = vperm.xlu0 %4141, %v4135
    %v4143 = vpop.permute.xlu0 %4142
    %v4146 = vrot.slane %v4140, 2
    %v4148 = vmul.f32 %v4143, %v4146
    %v4150 = vrot.slane %v4148, 6
    %v4152 = vadd.f32 %v4132, %v4150
    %4154 = vset.pattern.permute.xlu0 0
    %4155 = vperm.xlu0 %4154, %v4139
    %v4156 = vpop.permute.xlu0 %4155
    %v4158 = vrcp.pop %v4156
    %v4159 = vmul.f32 %v4156, %v4158
    %v4160 = vsub.f32 1.0, %v4159
    %v4161 = vmul.f32 %v4158, %v4160
    %v4162 = vadd.f32 %v4158, %v4161
    %vm4163 = vweird.f32 %v4156
    %vm4164 = vweird.f32 %v4158
    %vm4165 = vmor %vm4163, %vm4164
    %v4166 = vsel %vm4165, %v4158, %v4162
    %v4167 = vand.u32 2147483647, %v4156
    %vm4168 = vcmp.eq.f32.partialorder %v4167, 8.507059e+37
    %v4169 = vand.u32 %v4156, 2147483648
    %v4170 = vor.u32 1.1754944e-38, %v4169
    %v4171 = vsel %vm4168, %v4170, %v4166
    %v4172 = vmul.f32 %v4152, %v4171
    %v4173 = vld [vmem:[%s1] sm:$0x3]
    %v4174 = vld [vmem:[#allocation6 + $0x110] sm:$0xff]
    %v4175 = vld [vmem:[#allocation6 + $0x118] sm:$0xff]
    %v4176 = vld [vmem:[#allocation6 + $0x120] sm:$0xff]
    %v4177 = vld [vmem:[#allocation6 + $0x128] sm:$0xff]
    %v4178 = vld [vmem:[#allocation6 + $0x130] sm:$0xff]
    %v4179 = vld [vmem:[#allocation6 + $0x138] sm:$0xff]
    %v4180 = vld [vmem:[#allocation6 + $0x140] sm:$0xff]
    %v4181 = vld [vmem:[#allocation6 + $0x148] sm:$0xff]
    %v4182 = vld [vmem:[#allocation6 + $0x150] sm:$0xff]
    %v4183 = vld [vmem:[#allocation6 + $0x158] sm:$0xff]
    %v4184 = vld [vmem:[#allocation6 + $0x160] sm:$0xff]
    %v4185 = vld [vmem:[#allocation6 + $0x168] sm:$0xff]
    %v4186 = vld [vmem:[#allocation6 + $0x170] sm:$0xff]
    %v4187 = vld [vmem:[#allocation6 + $0x178] sm:$0xff]
    %v4188 = vld [vmem:[#allocation6 + $0x180] sm:$0xff]
    %v4189 = vld [vmem:[#allocation6 + $0x188] sm:$0xff]
    %v4190 = vld [vmem:[#allocation6 + $0x190] sm:$0xff]
    %vm4191 = vcmask 64512
    %v4193 = vsel %vm4191, %v4173, 0
    %4195 = vmatpush.msra.mxu0 0.0
    %4196 = vmatpush.msra.mxu0 0.0
    %4197 = vmatpush.msra.mxu0 0.0
    %4198 = vmatpush.msra.mxu0 0.0
    %4199 = vmatpush.msra.mxu0 0.0
    %4200 = vmatpush.msra.mxu0 0.0
    %4201 = vmatpush.msra.mxu0 0.0
    %4202 = vmatpush.msra.mxu0 0.0
    %4203 = vmatpush.msra.mxu0 0.0
    %4204 = vmatpush.msra.mxu0 0.0
    %4205 = vmatpush.msra.mxu0 0.0
    %4206 = vmatpush.msra.mxu0 0.0
    %4207 = vmatpush.msra.mxu0 0.0
    %4208 = vmatpush.msra.mxu0 0.0
    %4209 = vmatpush.msra.mxu0 0.0
    %4210 = vmatpush.msra.mxu0 %v4190
    %4211 = vmatmul.f32.gmra.mxu0 %v4193
    %v4212 = vpop.f32.mrf.mxu0
    %v4213 = vadd.f32 0.0, %v4212
    %4214 = vdwg.mxu0
    %4215 = vmatpush.msra.mxu0 %v4189
    %4216 = vmatpush.msra.mxu0 %v4188
    %4217 = vmatpush.msra.mxu0 %v4187
    %4218 = vmatpush.msra.mxu0 %v4186
    %4219 = vmatpush.msra.mxu0 %v4185
    %4220 = vmatpush.msra.mxu0 %v4184
    %4221 = vmatpush.msra.mxu0 %v4183
    %4222 = vmatpush.msra.mxu0 %v4182
    %4223 = vmatpush.msra.mxu0 %v4181
    %4224 = vmatpush.msra.mxu0 %v4180
    %4225 = vmatpush.msra.mxu0 %v4179
    %4226 = vmatpush.msra.mxu0 %v4178
    %4227 = vmatpush.msra.mxu0 %v4177
    %4228 = vmatpush.msra.mxu0 %v4176
    %4229 = vmatpush.msra.mxu0 %v4175
    %4230 = vmatpush.msra.mxu0 %v4174
    %4231 = vmatmul.f32.gmra.mxu0 %v4172
    %v4232 = vpop.f32.mrf.mxu0
    %v4233 = vadd.f32 %v4213, %v4232
    %4234 = vdwg.mxu0
    %v4235 = vld [vmem:[#allocation6 + $0x21a] sm:$0x1]
    %v4236 = vperm.slane %v4235, 0
    %v4237 = vadd.f32 %v4233, %v4236
    %v4238 = vmax.f32 %v4237, 0.0
    %v4239 = vld [vmem:[#allocation6 + $0x198] sm:$0xff]
    %v4240 = vld [vmem:[#allocation6 + $0x1a0] sm:$0xff]
    %v4241 = vld [vmem:[#allocation6 + $0x1a8] sm:$0xff]
    %v4242 = vld [vmem:[#allocation6 + $0x1b0] sm:$0xff]
    %v4243 = vld [vmem:[#allocation6 + $0x1b8] sm:$0xff]
    %v4244 = vld [vmem:[#allocation6 + $0x1c0] sm:$0xff]
    %v4245 = vld [vmem:[#allocation6 + $0x1c8] sm:$0xff]
    %v4246 = vld [vmem:[#allocation6 + $0x1d0] sm:$0xff]
    %v4247 = vld [vmem:[#allocation6 + $0x21b] sm:$0x1]
    %v4248 = vperm.slane %v4247, 0
    %vm4249 = vcmask 523264
    %v4251 = vsel %vm4249, %v4238, 0
    %4253 = vmatpush.msra.mxu0 0.0
    %4254 = vmatpush.msra.mxu0 0.0
    %4255 = vmatpush.msra.mxu0 0.0
    %4256 = vmatpush.msra.mxu0 0.0
    %4257 = vmatpush.msra.mxu0 0.0
    %4258 = vmatpush.msra.mxu0 0.0
    %4259 = vmatpush.msra.mxu0 0.0
    %4260 = vmatpush.msra.mxu0 0.0
    %4261 = vmatpush.msra.mxu0 %v4246
    %4262 = vmatpush.msra.mxu0 %v4245
    %4263 = vmatpush.msra.mxu0 %v4244
    %4264 = vmatpush.msra.mxu0 %v4243
    %4265 = vmatpush.msra.mxu0 %v4242
    %4266 = vmatpush.msra.mxu0 %v4241
    %4267 = vmatpush.msra.mxu0 %v4240
    %4268 = vmatpush.msra.mxu0 %v4239
    %4269 = vmatmul.f32.gmra.mxu0 %v4251
    %v4270 = vpop.f32.mrf.mxu0
    %v4271 = vadd.f32 %v4248, %v4270
    %4272 = vdwg.mxu0
    %v4273 = vmax.f32 %v4271, 0.0
    %v4274 = vld [vmem:[#allocation6 + $0x1d8] sm:$0xff]
    %v4275 = vld [vmem:[#allocation6 + $0x1e0] sm:$0xff]
    %v4276 = vld [vmem:[#allocation6 + $0x1e8] sm:$0xff]
    %v4277 = vld [vmem:[#allocation6 + $0x1f0] sm:$0xff]
    %v4278 = vld [vmem:[#allocation6 + $0x1f8] sm:$0xff]
    %v4279 = vld [vmem:[#allocation6 + $0x200] sm:$0xff]
    %v4280 = vld [vmem:[#allocation6 + $0x208] sm:$0xff]
    %v4281 = vld [vmem:[#allocation6 + $0x210] sm:$0xff]
    %v4282 = vld [vmem:[#allocation6 + $0x21c] sm:$0x1]
    %v4283 = vperm.slane %v4282, 0
    %v4285 = vsel %vm4249, %v4273, 0
    %4287 = vmatpush.msra.mxu0 0.0
    %4288 = vmatpush.msra.mxu0 0.0
    %4289 = vmatpush.msra.mxu0 0.0
    %4290 = vmatpush.msra.mxu0 0.0
    %4291 = vmatpush.msra.mxu0 0.0
    %4292 = vmatpush.msra.mxu0 0.0
    %4293 = vmatpush.msra.mxu0 0.0
    %4294 = vmatpush.msra.mxu0 0.0
    %4295 = vmatpush.msra.mxu0 %v4281
    %4296 = vmatpush.msra.mxu0 %v4280
    %4297 = vmatpush.msra.mxu0 %v4279
    %4298 = vmatpush.msra.mxu0 %v4278
    %4299 = vmatpush.msra.mxu0 %v4277
    %4300 = vmatpush.msra.mxu0 %v4276
    %4301 = vmatpush.msra.mxu0 %v4275
    %4302 = vmatpush.msra.mxu0 %v4274
    %4303 = vmatmul.f32.gmra.mxu0 %v4285
    %v4304 = vpop.f32.mrf.mxu0
    %v4305 = vadd.f32 %v4283, %v4304
    %4306 = vdwg.mxu0
    %vm4307 = vcmask 9216
    %4308 = vst.msk [vmem:[%s4] sm:$0x3] %vm4307, %v4305
    // Predicated region
    $region26: #{flood_gru_critic.1} parent=1 // pred_check
      _
    $region27: #{flood_gru_critic.1} parent=1 // pred_check_branch
      %4310 = sbr.rel (0) target = $region29
    $region28: #{flood_gru_critic.1} parent=1 // pred_region
      _
    $region29: #{flood_gru_critic.1} parent=1 // pred_fallthru
      _
    // Predicated region
    $region30: #{flood_gru_critic.1} parent=1 // pred_check
      _
    $region31: #{flood_gru_critic.1} parent=1 // pred_check_branch
      %4312 = sbr.rel (0) target = $region33
    $region32: #{flood_gru_critic.1} parent=1 // pred_region
      %4314 = vsyncadd [#allocation5], 0
      %s4315 = sshll.u32 [#allocation8], 4
      %s4316 = int_to_ptr.vmem [resolvable:$true] %s4315
      %s4317 = sshll.u32 %s5, 4
      %s4318 = int_to_ptr.hbm [resolvable:$true] %s4317
      %4323 = dma.vmem_to_hbm [thread:$0]  %s4316, 64, %s4318, [#allocation5], 32, 32, 2
    $region33: #{flood_gru_critic.1} parent=1 // pred_fallthru
      _
    // Predicated region
    $region34: #{flood_gru_critic.1} parent=1 // pred_check
      _
    $region35: #{flood_gru_critic.1} parent=1 // pred_check_branch
      %4325 = sbr.rel (0) target = $region37
    $region36: #{flood_gru_critic.1} parent=1 // pred_region
      _
    $region37: #{flood_gru_critic.1} parent=1 // pred_fallthru
      _
    // Predicated region
    $region38: #{flood_gru_critic.1} parent=1 // pred_check
      _
    $region39: #{flood_gru_critic.1} parent=1 // pred_check_branch
      %4327 = sbr.rel (0) target = $region41
    $region40: #{flood_gru_critic.1} parent=1 // pred_region
      %4329 = dma.done [#allocation5], 64
    $region41: #{flood_gru_critic.1} parent=1 // pred_fallthru
      _
    %4330 = vsyncpa [#allocation4], 1
    %4331 = vsyncpa [#allocation7], 1
    %4332 = vsyncpa [#allocation5], 1

</llo_original>
